<compile_context>
chip_gen: v7x
topology: tpu7x:2x2x1
jax: 0.10.0
libtpu: 0.0.40
codegen_flags: <defaults>
</compile_context>

<pallas_src>
import math

import jax
import jax.numpy as jnp
from jax import lax
from jax.experimental import pallas as pl
from jax.experimental.pallas import tpu as pltpu

TILE_B = 8   # batch rows handled per grid step (biggest tile that fits VMEM here)
K_PAD = 8    # pad the conv1 im2col contraction dim (36) up to a multiple of this


# --------------------------- wrapper-side im2col ------------------------------

def _conv1_patches(x, oh, ow, k=3, stride=2):
    """im2col for the stride-2 3x3 VALID conv; feature index = ci*k*k + i*k + j."""
    B, C, H, W = x.shape
    cols = []
    for i in range(k):
        for j in range(k):
            cols.append(x[:, :, i:i + stride * (oh - 1) + 1:stride,
                             j:j + stride * (ow - 1) + 1:stride])
    p = jnp.stack(cols, axis=2)                  # (B, C, k*k, oh, ow)
    p = p.reshape(B, C * k * k, oh * ow)
    return p.transpose(0, 2, 1)                  # (B, oh*ow, C*k*k)


# ------------------------------ fused forward ---------------------------------

def dynamics_forward(x, action, kp):
    B, C, H, W = x.shape
    A = action.shape[1]
    KP, C1 = kp['w1'].shape                      # padded patch dim (40), conv1 out ch
    C2 = kp['w2'].shape[2]                       # conv2 out channels
    feat = kp['wt'].shape[2]
    hid = kp['wm2'].shape[0]

    oh1 = (H - 3) // 2 + 1                       # 7
    ow1 = (W - 3) // 2 + 1                       # 7
    oh2, ow2 = oh1 - 2, ow1 - 2                  # 5, 5
    q1 = oh1 * ow1                               # 49 conv1 spatial positions
    q2 = (oh2 - 1) * ow1 + ow2                   # 33-row conv2 strip (covers valid 5x5)

    TB = min(TILE_B, B)
    Bp = ((B + TB - 1) // TB) * TB
    nt = Bp // TB

    # --- wrapper side: only the input im2col + batch tiling (pure layout) -----
    patches = _conv1_patches(x, oh1, ow1)                               # (B, 49, 36)
    patches = jnp.pad(patches, ((0, Bp - B), (0, 0), (0, KP - patches.shape[2])))
    patches = patches.reshape(nt, TB, q1, KP).transpose(0, 2, 1, 3)
    patches = patches.reshape(nt, q1 * TB, KP)                          # row = q*TB + b
    act = jnp.pad(action, ((0, Bp - B), (0, 0))).reshape(nt, TB, A)

    def kernel(p1_ref, a_ref, w1_ref, b1_ref, w2_ref, b2_ref, wt_ref, bt_ref,
               g_ref, beta_ref, w1h_ref, w1a_ref, bm1_ref, wm2_ref, bm2_ref,
               wm3_ref, bm3_ref, o_ref, h1_scr, h2_scr):
        f32 = jnp.float32
        # conv1: im2col patches @ W1 + b, ReLU            -> (q1*TB, C1)
        h1 = jnp.dot(p1_ref[0], w1_ref[...], preferred_element_type=f32)
        h1_scr[...] = jnp.maximum(h1 + b1_ref[...], 0.0)
        # conv2: 9 shifted, accumulating matmuls, all VMEM resident -> (q2*TB, C2)
        acc = jnp.zeros((q2 * TB, C2), f32) + b2_ref[...]
        for i in range(3):
            for j in range(3):
                off = (i * ow1 + j) * TB
                acc = acc + jnp.dot(h1_scr[off:off + q2 * TB, :],
                                    w2_ref[i * 3 + j],
                                    preferred_element_type=f32)
        h2_scr[...] = jnp.maximum(acc, 0.0)
        # trunk Linear: contract the valid 5x5 window with per-position slabs
        tr = jnp.zeros((TB, feat), f32) + bt_ref[...]
        for oy in range(oh2):
            for ox in range(ow2):
                q = oy * ow1 + ox
                tr = tr + jnp.dot(h2_scr[q * TB:(q + 1) * TB, :],
                                  wt_ref[oy * ow2 + ox],
                                  preferred_element_type=f32)
        # LayerNorm(eps=1e-5) + Tanh
        mu = jnp.mean(tr, axis=-1, keepdims=True)
        var = jnp.mean(jnp.square(tr - mu), axis=-1, keepdims=True)
        h = (tr - mu) * lax.rsqrt(var + 1e-5) * g_ref[...] + beta_ref[...]
        h = jnp.tanh(h)
        # mlp: cat([h, action], 1) @ W1 done as split matmul, then 2 more layers
        z = (jnp.dot(h, w1h_ref[...], preferred_element_type=f32)
             + jnp.dot(a_ref[0], w1a_ref[...], preferred_element_type=f32)
             + bm1_ref[...])
        z = jnp.maximum(z, 0.0)
        z = jnp.maximum(jnp.dot(z, wm2_ref[...], preferred_element_type=f32)
                        + bm2_ref[...], 0.0)
        o_ref[0] = (jnp.dot(z, wm3_ref[...], preferred_element_type=f32)
                    + bm3_ref[...])

    weights = [kp['w1'], kp['b1'], kp['w2'], kp['b2'], kp['wt'], kp['bt'],
               kp['g'], kp['beta'], kp['w1h'], kp['w1a'], kp['bm1'],
               kp['wm2'], kp['bm2'], kp['wm3'], kp['bm3']]

    def resident(a):
        nd = a.ndim
        return pl.BlockSpec(a.shape, lambda i, _nd=nd: (0,) * _nd)

    flops = 2 * Bp * (q1 * KP * C1 + 9 * q2 * C1 * C2 + oh2 * ow2 * C2 * feat
                      + feat * hid + A * hid + hid * hid + hid * feat)
    bytes_accessed = 4 * (patches.size + act.size + Bp * feat
                          + sum(int(w.size) for w in weights))

    out = pl.pallas_call(
        kernel,
        out_shape=jax.ShapeDtypeStruct((nt, TB, feat), jnp.float32),
        grid=(nt,),
        in_specs=[pl.BlockSpec((1, q1 * TB, KP), lambda i: (i, 0, 0)),
                  pl.BlockSpec((1, TB, A), lambda i: (i, 0, 0))]
                 + [resident(w) for w in weights],
        out_specs=pl.BlockSpec((1, TB, feat), lambda i: (i, 0, 0)),
        scratch_shapes=[pltpu.VMEM((q1 * TB, C1), jnp.float32),
                        pltpu.VMEM((q2 * TB, C2), jnp.float32)],
        compiler_params=pltpu.CompilerParams(
            dimension_semantics=("parallel",),
            vmem_limit_bytes=32 * 1024 * 1024),
        cost_estimate=pl.CostEstimate(flops=flops,
                                      transcendentals=Bp * (feat + 1),
                                      bytes_accessed=bytes_accessed),
    )(patches, act, *weights)
    return out.reshape(Bp, feat)[:B]


# ------------------------- deterministic weight init --------------------------

def orthogonal(key, rows, cols, gain=1.0):
    """Semantics of nn.init.orthogonal_: orthonormal rows (rows<cols) or cols."""
    a = jax.random.normal(key, (max(rows, cols), min(rows, cols)), dtype=jnp.float32)
    q, r = jnp.linalg.qr(a)
    q = q * jnp.sign(jnp.diagonal(r))
    if rows < cols:
        q = q.T
    return (gain * q).astype(jnp.float32)


def init_params(key, in_ch, action_shape, feature_dim, hidden_dim):
    ks = jax.random.split(key, 8)
    relu_gain = math.sqrt(2.0)  # nn.init.calculate_gain('relu')

    def conv_w(k, out_c, in_c, ksz):
        # spec's weight_init: zero-fill then orthogonal on the center tap only
        w = jnp.zeros((out_c, in_c, ksz, ksz), jnp.float32)
        mid = ksz // 2
        return w.at[:, :, mid, mid].set(orthogonal(k, out_c, in_c, relu_gain))

    conv1_w = conv_w(ks[0], 32, in_ch, 3)
    conv2_w = conv_w(ks[1], 32, 32, 3)
    repr_dim = 32 * 5 * 5   # 16 -> (s2,k3) 7 -> (s1,k3) 5

    wt = orthogonal(ks[2], feature_dim, repr_dim).T                 # (repr, feat)
    w1 = orthogonal(ks[3], hidden_dim, action_shape + feature_dim)  # torch (out, in)
    w1h = w1[:, :feature_dim].T                                     # (feat, hidden)
    w1a = w1[:, feature_dim:].T                                     # (act, hidden)
    w2 = orthogonal(ks[4], hidden_dim, hidden_dim).T
    w3 = orthogonal(ks[5], feature_dim, hidden_dim).T

    return dict(
        conv1_w=conv1_w, conv1_b=jnp.zeros((32,), jnp.float32),
        conv2_w=conv2_w, conv2_b=jnp.zeros((32,), jnp.float32),
        wt=wt, bt=jnp.zeros((feature_dim,), jnp.float32),
        ln_g=jnp.ones((feature_dim,), jnp.float32),
        ln_b=jnp.zeros((feature_dim,), jnp.float32),
        w1h=w1h, w1a=w1a, b1=jnp.zeros((hidden_dim,), jnp.float32),
        w2=w2, b2=jnp.zeros((hidden_dim,), jnp.float32),
        w3=w3, b3=jnp.zeros((feature_dim,), jnp.float32),
    )


def prepare_kernel_params(p):
    """One-time re-layout of the canonical (PyTorch-style) params for the kernel."""
    c1w = p['conv1_w']                                   # (O1, C, 3, 3)
    O1, Cin = c1w.shape[0], c1w.shape[1]
    kk = Cin * 9
    kp_dim = ((kk + K_PAD - 1) // K_PAD) * K_PAD
    w1 = jnp.pad(c1w.reshape(O1, kk).T, ((0, kp_dim - kk), (0, 0)))   # (40, 32)

    c2w = p['conv2_w']                                   # (O2, O1, 3, 3)
    O2 = c2w.shape[0]
    w2 = c2w.transpose(2, 3, 1, 0).reshape(9, O1, O2)    # per-tap (in, out) slabs

    wt = p['wt']                                         # (O2*25, feat), row = c*25 + p
    feat = wt.shape[1]
    sp = wt.shape[0] // O2                               # 25
    wt3 = wt.reshape(O2, sp, feat).transpose(1, 0, 2)    # (25, O2, feat)

    r = lambda v: v.reshape(1, -1)
    return dict(w1=w1, b1=r(p['conv1_b']), w2=w2, b2=r(p['conv2_b']),
                wt=wt3, bt=r(p['bt']), g=r(p['ln_g']), beta=r(p['ln_b']),
                w1h=p['w1h'], w1a=p['w1a'], bm1=r(p['b1']),
                wm2=p['w2'], bm2=r(p['b2']), wm3=p['w3'], bm3=r(p['b3']))


# ------------------------------ pure-JAX reference ----------------------------

def reference_forward(x, action, p):
    def conv(x, W, b, s):
        y = lax.conv_general_dilated(x, W, (s, s), 'VALID',
                                     dimension_numbers=('NCHW', 'OIHW', 'NCHW'))
        return jax.nn.relu(y + b.reshape(1, -1, 1, 1))
    h = conv(x, p['conv1_w'], p['conv1_b'], 2)
    h = conv(h, p['conv2_w'], p['conv2_b'], 1)
    h = h.reshape(h.shape[0], -1)
    h = h @ p['wt'] + p['bt']
    mu = h.mean(-1, keepdims=True)
    var = ((h - mu) ** 2).mean(-1, keepdims=True)
    h = jnp.tanh((h - mu) / jnp.sqrt(var + 1e-5) * p['ln_g'] + p['ln_b'])
    z = jnp.maximum(h @ p['w1h'] + action @ p['w1a'] + p['b1'], 0.0)
    z = jnp.maximum(z @ p['w2'] + p['b2'], 0.0)
    return z @ p['w3'] + p['b3']


if __name__ == "__main__":
    B, C, HW = 2, 4, 16
    action_shape, feature_dim, hidden_dim = 6, 32, 32

    key = jax.random.PRNGKey(0)
    kx, ka, kparam = jax.random.split(key, 3)
    x = jax.random.normal(kx, (B, C, HW, HW), dtype=jnp.float32)
    action = jax.random.normal(ka, (B, action_shape), dtype=jnp.float32)
    params = init_params(kparam, C, action_shape, feature_dim, hidden_dim)
    kparams = prepare_kernel_params(params)

    fwd = jax.jit(dynamics_forward)
    out = jax.block_until_ready(fwd(x, action, kparams))

    ref = jax.block_until_ready(reference_forward(x, action, params))
    assert out.shape == (B, feature_dim)
    assert jnp.allclose(out, ref, atol=2e-3, rtol=2e-3), "mismatch vs JAX reference"
    print("KERNEL_OK")
</pallas_src>

<mosaic_0001>
module attributes {stable_mosaic.version = 11 : i64} {
  func.func @kernel(%arg0: i32, %arg1: memref<1x98x40xf32, #tpu.memory_space<vmem>>, %arg2: memref<1x2x6xf32, #tpu.memory_space<vmem>>, %arg3: memref<40x32xf32, #tpu.memory_space<vmem>>, %arg4: memref<1x32xf32, #tpu.memory_space<vmem>>, %arg5: memref<9x32x32xf32, #tpu.memory_space<vmem>>, %arg6: memref<1x32xf32, #tpu.memory_space<vmem>>, %arg7: memref<25x32x32xf32, #tpu.memory_space<vmem>>, %arg8: memref<1x32xf32, #tpu.memory_space<vmem>>, %arg9: memref<1x32xf32, #tpu.memory_space<vmem>>, %arg10: memref<1x32xf32, #tpu.memory_space<vmem>>, %arg11: memref<32x32xf32, #tpu.memory_space<vmem>>, %arg12: memref<6x32xf32, #tpu.memory_space<vmem>>, %arg13: memref<1x32xf32, #tpu.memory_space<vmem>>, %arg14: memref<32x32xf32, #tpu.memory_space<vmem>>, %arg15: memref<1x32xf32, #tpu.memory_space<vmem>>, %arg16: memref<32x32xf32, #tpu.memory_space<vmem>>, %arg17: memref<1x32xf32, #tpu.memory_space<vmem>>, %arg18: memref<1x2x32xf32, #tpu.memory_space<vmem>>, %arg19: memref<98x32xf32, #tpu.memory_space<vmem>>, %arg20: memref<66x32xf32, #tpu.memory_space<vmem>>) attributes {dimension_semantics = [#tpu.dimension_semantics<parallel>], iteration_bounds = array<i64: 1>, scalar_prefetch = 0 : i64, scratch_operands = 2 : i64, tpu.core_type = #tpu.core_type<tc>, window_params = [{transform_indices = @transform_0, window_bounds = array<i64: 1, 98, 40>}, {transform_indices = @transform_1, window_bounds = array<i64: 1, 2, 6>}, {pipeline_mode = #tpu.pipeline_mode<synchronous>, transform_indices = @transform_2, window_bounds = array<i64: 40, 32>}, {pipeline_mode = #tpu.pipeline_mode<synchronous>, transform_indices = @transform_3, window_bounds = array<i64: 1, 32>}, {pipeline_mode = #tpu.pipeline_mode<synchronous>, transform_indices = @transform_4, window_bounds = array<i64: 9, 32, 32>}, {pipeline_mode = #tpu.pipeline_mode<synchronous>, transform_indices = @transform_5, window_bounds = array<i64: 1, 32>}, {pipeline_mode = #tpu.pipeline_mode<synchronous>, transform_indices = @transform_6, window_bounds = array<i64: 25, 32, 32>}, {pipeline_mode = #tpu.pipeline_mode<synchronous>, transform_indices = @transform_7, window_bounds = array<i64: 1, 32>}, {pipeline_mode = #tpu.pipeline_mode<synchronous>, transform_indices = @transform_8, window_bounds = array<i64: 1, 32>}, {pipeline_mode = #tpu.pipeline_mode<synchronous>, transform_indices = @transform_9, window_bounds = array<i64: 1, 32>}, {pipeline_mode = #tpu.pipeline_mode<synchronous>, transform_indices = @transform_10, window_bounds = array<i64: 32, 32>}, {pipeline_mode = #tpu.pipeline_mode<synchronous>, transform_indices = @transform_11, window_bounds = array<i64: 6, 32>}, {pipeline_mode = #tpu.pipeline_mode<synchronous>, transform_indices = @transform_12, window_bounds = array<i64: 1, 32>}, {pipeline_mode = #tpu.pipeline_mode<synchronous>, transform_indices = @transform_13, window_bounds = array<i64: 32, 32>}, {pipeline_mode = #tpu.pipeline_mode<synchronous>, transform_indices = @transform_14, window_bounds = array<i64: 1, 32>}, {pipeline_mode = #tpu.pipeline_mode<synchronous>, transform_indices = @transform_15, window_bounds = array<i64: 32, 32>}, {pipeline_mode = #tpu.pipeline_mode<synchronous>, transform_indices = @transform_16, window_bounds = array<i64: 1, 32>}, {transform_indices = @transform_17, window_bounds = array<i64: 1, 2, 32>}]} {
    %c0 = arith.constant 0 : index
    %c0_0 = arith.constant 0 : index
    %c0_1 = arith.constant 0 : index
    %0 = vector.load %arg1[%c0, %c0_0, %c0_1] : memref<1x98x40xf32, #tpu.memory_space<vmem>>, vector<1x98x40xf32>
    %1 = vector.shape_cast %0 : vector<1x98x40xf32> to vector<98x40xf32>
    %c0_2 = arith.constant 0 : index
    %c0_3 = arith.constant 0 : index
    %2 = vector.load %arg3[%c0_2, %c0_3] : memref<40x32xf32, #tpu.memory_space<vmem>>, vector<40x32xf32>
    %cst = arith.constant dense<0.000000e+00> : vector<98x32xf32>
    %3 = tpu.matmul %1, %2, %cst {dimension_numbers = #tpu.dot_dimension_numbers<[1], [0], [0], [1], [0, 0, 1, 1], [], []>} : vector<98x40xf32>, vector<40x32xf32>, vector<98x32xf32> -> vector<98x32xf32>
    %c0_4 = arith.constant 0 : index
    %c0_5 = arith.constant 0 : index
    %4 = vector.load %arg4[%c0_4, %c0_5] : memref<1x32xf32, #tpu.memory_space<vmem>>, vector<1x32xf32>
    %5 = vector.broadcast %4 : vector<1x32xf32> to vector<98x32xf32>
    %6 = arith.addf %3, %5 : vector<98x32xf32>
    %cst_6 = arith.constant 0.000000e+00 : f32
    %7 = vector.broadcast %cst_6 : f32 to vector<98x32xf32>
    %8 = arith.maximumf %6, %7 : vector<98x32xf32>
    %c0_7 = arith.constant 0 : index
    %c0_8 = arith.constant 0 : index
    %9 = vector.load %arg19[%c0_7, %c0_8] : memref<98x32xf32, #tpu.memory_space<vmem>>, vector<98x32xf32>
    tpu.vector_store %arg19[%c0_7, %c0_8], %8 {strides = array<i32>} : memref<98x32xf32, #tpu.memory_space<vmem>>, vector<98x32xf32>,
    %cst_9 = arith.constant 0.000000e+00 : f32
    %10 = vector.broadcast %cst_9 : f32 to vector<66x32xf32>
    %c0_10 = arith.constant 0 : index
    %c0_11 = arith.constant 0 : index
    %11 = vector.load %arg6[%c0_10, %c0_11] : memref<1x32xf32, #tpu.memory_space<vmem>>, vector<1x32xf32>
    %12 = vector.broadcast %11 : vector<1x32xf32> to vector<66x32xf32>
    %13 = arith.addf %10, %12 : vector<66x32xf32>
    %c0_12 = arith.constant 0 : index
    %c0_13 = arith.constant 0 : index
    %14 = vector.load %arg19[%c0_12, %c0_13] : memref<98x32xf32, #tpu.memory_space<vmem>>, vector<66x32xf32>
    %c0_14 = arith.constant 0 : index
    %c0_15 = arith.constant 0 : index
    %c0_16 = arith.constant 0 : index
    %15 = vector.load %arg5[%c0_14, %c0_15, %c0_16] : memref<9x32x32xf32, #tpu.memory_space<vmem>>, vector<1x32x32xf32>
    %16 = vector.shape_cast %15 : vector<1x32x32xf32> to vector<32x32xf32>
    %cst_17 = arith.constant dense<0.000000e+00> : vector<66x32xf32>
    %17 = tpu.matmul %14, %16, %cst_17 {dimension_numbers = #tpu.dot_dimension_numbers<[1], [0], [0], [1], [0, 0, 1, 1], [], []>} : vector<66x32xf32>, vector<32x32xf32>, vector<66x32xf32> -> vector<66x32xf32>
    %18 = arith.addf %13, %17 : vector<66x32xf32>
    %c2 = arith.constant 2 : index
    %c0_18 = arith.constant 0 : index
    %19 = vector.load %arg19[%c2, %c0_18] : memref<98x32xf32, #tpu.memory_space<vmem>>, vector<66x32xf32>
    %c1 = arith.constant 1 : index
    %c0_19 = arith.constant 0 : index
    %c0_20 = arith.constant 0 : index
    %20 = vector.load %arg5[%c1, %c0_19, %c0_20] : memref<9x32x32xf32, #tpu.memory_space<vmem>>, vector<1x32x32xf32>
    %21 = vector.shape_cast %20 : vector<1x32x32xf32> to vector<32x32xf32>
    %cst_21 = arith.constant dense<0.000000e+00> : vector<66x32xf32>
    %22 = tpu.matmul %19, %21, %cst_21 {dimension_numbers = #tpu.dot_dimension_numbers<[1], [0], [0], [1], [0, 0, 1, 1], [], []>} : vector<66x32xf32>, vector<32x32xf32>, vector<66x32xf32> -> vector<66x32xf32>
    %23 = arith.addf %18, %22 : vector<66x32xf32>
    %c4 = arith.constant 4 : index
    %c0_22 = arith.constant 0 : index
    %24 = vector.load %arg19[%c4, %c0_22] : memref<98x32xf32, #tpu.memory_space<vmem>>, vector<66x32xf32>
    %c2_23 = arith.constant 2 : index
    %c0_24 = arith.constant 0 : index
    %c0_25 = arith.constant 0 : index
    %25 = vector.load %arg5[%c2_23, %c0_24, %c0_25] : memref<9x32x32xf32, #tpu.memory_space<vmem>>, vector<1x32x32xf32>
    %26 = vector.shape_cast %25 : vector<1x32x32xf32> to vector<32x32xf32>
    %cst_26 = arith.constant dense<0.000000e+00> : vector<66x32xf32>
    %27 = tpu.matmul %24, %26, %cst_26 {dimension_numbers = #tpu.dot_dimension_numbers<[1], [0], [0], [1], [0, 0, 1, 1], [], []>} : vector<66x32xf32>, vector<32x32xf32>, vector<66x32xf32> -> vector<66x32xf32>
    %28 = arith.addf %23, %27 : vector<66x32xf32>
    %c14 = arith.constant 14 : index
    %c0_27 = arith.constant 0 : index
    %29 = vector.load %arg19[%c14, %c0_27] : memref<98x32xf32, #tpu.memory_space<vmem>>, vector<66x32xf32>
    %c3 = arith.constant 3 : index
    %c0_28 = arith.constant 0 : index
    %c0_29 = arith.constant 0 : index
    %30 = vector.load %arg5[%c3, %c0_28, %c0_29] : memref<9x32x32xf32, #tpu.memory_space<vmem>>, vector<1x32x32xf32>
    %31 = vector.shape_cast %30 : vector<1x32x32xf32> to vector<32x32xf32>
    %cst_30 = arith.constant dense<0.000000e+00> : vector<66x32xf32>
    %32 = tpu.matmul %29, %31, %cst_30 {dimension_numbers = #tpu.dot_dimension_numbers<[1], [0], [0], [1], [0, 0, 1, 1], [], []>} : vector<66x32xf32>, vector<32x32xf32>, vector<66x32xf32> -> vector<66x32xf32>
    %33 = arith.addf %28, %32 : vector<66x32xf32>
    %c16 = arith.constant 16 : index
    %c0_31 = arith.constant 0 : index
    %34 = vector.load %arg19[%c16, %c0_31] : memref<98x32xf32, #tpu.memory_space<vmem>>, vector<66x32xf32>
    %c4_32 = arith.constant 4 : index
    %c0_33 = arith.constant 0 : index
    %c0_34 = arith.constant 0 : index
    %35 = vector.load %arg5[%c4_32, %c0_33, %c0_34] : memref<9x32x32xf32, #tpu.memory_space<vmem>>, vector<1x32x32xf32>
    %36 = vector.shape_cast %35 : vector<1x32x32xf32> to vector<32x32xf32>
    %cst_35 = arith.constant dense<0.000000e+00> : vector<66x32xf32>
    %37 = tpu.matmul %34, %36, %cst_35 {dimension_numbers = #tpu.dot_dimension_numbers<[1], [0], [0], [1], [0, 0, 1, 1], [], []>} : vector<66x32xf32>, vector<32x32xf32>, vector<66x32xf32> -> vector<66x32xf32>
    %38 = arith.addf %33, %37 : vector<66x32xf32>
    %c18 = arith.constant 18 : index
    %c0_36 = arith.constant 0 : index
    %39 = vector.load %arg19[%c18, %c0_36] : memref<98x32xf32, #tpu.memory_space<vmem>>, vector<66x32xf32>
    %c5 = arith.constant 5 : index
    %c0_37 = arith.constant 0 : index
    %c0_38 = arith.constant 0 : index
    %40 = vector.load %arg5[%c5, %c0_37, %c0_38] : memref<9x32x32xf32, #tpu.memory_space<vmem>>, vector<1x32x32xf32>
    %41 = vector.shape_cast %40 : vector<1x32x32xf32> to vector<32x32xf32>
    %cst_39 = arith.constant dense<0.000000e+00> : vector<66x32xf32>
    %42 = tpu.matmul %39, %41, %cst_39 {dimension_numbers = #tpu.dot_dimension_numbers<[1], [0], [0], [1], [0, 0, 1, 1], [], []>} : vector<66x32xf32>, vector<32x32xf32>, vector<66x32xf32> -> vector<66x32xf32>
    %43 = arith.addf %38, %42 : vector<66x32xf32>
    %c28 = arith.constant 28 : index
    %c0_40 = arith.constant 0 : index
    %44 = vector.load %arg19[%c28, %c0_40] : memref<98x32xf32, #tpu.memory_space<vmem>>, vector<66x32xf32>
    %c6 = arith.constant 6 : index
    %c0_41 = arith.constant 0 : index
    %c0_42 = arith.constant 0 : index
    %45 = vector.load %arg5[%c6, %c0_41, %c0_42] : memref<9x32x32xf32, #tpu.memory_space<vmem>>, vector<1x32x32xf32>
    %46 = vector.shape_cast %45 : vector<1x32x32xf32> to vector<32x32xf32>
    %cst_43 = arith.constant dense<0.000000e+00> : vector<66x32xf32>
    %47 = tpu.matmul %44, %46, %cst_43 {dimension_numbers = #tpu.dot_dimension_numbers<[1], [0], [0], [1], [0, 0, 1, 1], [], []>} : vector<66x32xf32>, vector<32x32xf32>, vector<66x32xf32> -> vector<66x32xf32>
    %48 = arith.addf %43, %47 : vector<66x32xf32>
    %c30 = arith.constant 30 : index
    %c0_44 = arith.constant 0 : index
    %49 = vector.load %arg19[%c30, %c0_44] : memref<98x32xf32, #tpu.memory_space<vmem>>, vector<66x32xf32>
    %c7 = arith.constant 7 : index
    %c0_45 = arith.constant 0 : index
    %c0_46 = arith.constant 0 : index
    %50 = vector.load %arg5[%c7, %c0_45, %c0_46] : memref<9x32x32xf32, #tpu.memory_space<vmem>>, vector<1x32x32xf32>
    %51 = vector.shape_cast %50 : vector<1x32x32xf32> to vector<32x32xf32>
    %cst_47 = arith.constant dense<0.000000e+00> : vector<66x32xf32>
    %52 = tpu.matmul %49, %51, %cst_47 {dimension_numbers = #tpu.dot_dimension_numbers<[1], [0], [0], [1], [0, 0, 1, 1], [], []>} : vector<66x32xf32>, vector<32x32xf32>, vector<66x32xf32> -> vector<66x32xf32>
    %53 = arith.addf %48, %52 : vector<66x32xf32>
    %c32 = arith.constant 32 : index
    %c0_48 = arith.constant 0 : index
    %54 = vector.load %arg19[%c32, %c0_48] : memref<98x32xf32, #tpu.memory_space<vmem>>, vector<66x32xf32>
    %c8 = arith.constant 8 : index
    %c0_49 = arith.constant 0 : index
    %c0_50 = arith.constant 0 : index
    %55 = vector.load %arg5[%c8, %c0_49, %c0_50] : memref<9x32x32xf32, #tpu.memory_space<vmem>>, vector<1x32x32xf32>
    %56 = vector.shape_cast %55 : vector<1x32x32xf32> to vector<32x32xf32>
    %cst_51 = arith.constant dense<0.000000e+00> : vector<66x32xf32>
    %57 = tpu.matmul %54, %56, %cst_51 {dimension_numbers = #tpu.dot_dimension_numbers<[1], [0], [0], [1], [0, 0, 1, 1], [], []>} : vector<66x32xf32>, vector<32x32xf32>, vector<66x32xf32> -> vector<66x32xf32>
    %58 = arith.addf %53, %57 : vector<66x32xf32>
    %cst_52 = arith.constant 0.000000e+00 : f32
    %59 = vector.broadcast %cst_52 : f32 to vector<66x32xf32>
    %60 = arith.maximumf %58, %59 : vector<66x32xf32>
    %c0_53 = arith.constant 0 : index
    %c0_54 = arith.constant 0 : index
    %61 = vector.load %arg20[%c0_53, %c0_54] : memref<66x32xf32, #tpu.memory_space<vmem>>, vector<66x32xf32>
    tpu.vector_store %arg20[%c0_53, %c0_54], %60 {strides = array<i32>} : memref<66x32xf32, #tpu.memory_space<vmem>>, vector<66x32xf32>,
    %cst_55 = arith.constant 0.000000e+00 : f32
    %62 = vector.broadcast %cst_55 : f32 to vector<2x32xf32>
    %c0_56 = arith.constant 0 : index
    %c0_57 = arith.constant 0 : index
    %63 = vector.load %arg8[%c0_56, %c0_57] : memref<1x32xf32, #tpu.memory_space<vmem>>, vector<1x32xf32>
    %64 = vector.broadcast %63 : vector<1x32xf32> to vector<2x32xf32>
    %65 = arith.addf %62, %64 : vector<2x32xf32>
    %c0_58 = arith.constant 0 : index
    %c0_59 = arith.constant 0 : index
    %66 = vector.load %arg20[%c0_58, %c0_59] : memref<66x32xf32, #tpu.memory_space<vmem>>, vector<2x32xf32>
    %c0_60 = arith.constant 0 : index
    %c0_61 = arith.constant 0 : index
    %c0_62 = arith.constant 0 : index
    %67 = vector.load %arg7[%c0_60, %c0_61, %c0_62] : memref<25x32x32xf32, #tpu.memory_space<vmem>>, vector<1x32x32xf32>
    %68 = vector.shape_cast %67 : vector<1x32x32xf32> to vector<32x32xf32>
    %cst_63 = arith.constant dense<0.000000e+00> : vector<2x32xf32>
    %69 = tpu.matmul %66, %68, %cst_63 {dimension_numbers = #tpu.dot_dimension_numbers<[1], [0], [0], [1], [0, 0, 1, 1], [], []>} : vector<2x32xf32>, vector<32x32xf32>, vector<2x32xf32> -> vector<2x32xf32>
    %70 = arith.addf %65, %69 : vector<2x32xf32>
    %c2_64 = arith.constant 2 : index
    %c0_65 = arith.constant 0 : index
    %71 = vector.load %arg20[%c2_64, %c0_65] : memref<66x32xf32, #tpu.memory_space<vmem>>, vector<2x32xf32>
    %c1_66 = arith.constant 1 : index
    %c0_67 = arith.constant 0 : index
    %c0_68 = arith.constant 0 : index
    %72 = vector.load %arg7[%c1_66, %c0_67, %c0_68] : memref<25x32x32xf32, #tpu.memory_space<vmem>>, vector<1x32x32xf32>
    %73 = vector.shape_cast %72 : vector<1x32x32xf32> to vector<32x32xf32>
    %cst_69 = arith.constant dense<0.000000e+00> : vector<2x32xf32>
    %74 = tpu.matmul %71, %73, %cst_69 {dimension_numbers = #tpu.dot_dimension_numbers<[1], [0], [0], [1], [0, 0, 1, 1], [], []>} : vector<2x32xf32>, vector<32x32xf32>, vector<2x32xf32> -> vector<2x32xf32>
    %75 = arith.addf %70, %74 : vector<2x32xf32>
    %c4_70 = arith.constant 4 : index
    %c0_71 = arith.constant 0 : index
    %76 = vector.load %arg20[%c4_70, %c0_71] : memref<66x32xf32, #tpu.memory_space<vmem>>, vector<2x32xf32>
    %c2_72 = arith.constant 2 : index
    %c0_73 = arith.constant 0 : index
    %c0_74 = arith.constant 0 : index
    %77 = vector.load %arg7[%c2_72, %c0_73, %c0_74] : memref<25x32x32xf32, #tpu.memory_space<vmem>>, vector<1x32x32xf32>
    %78 = vector.shape_cast %77 : vector<1x32x32xf32> to vector<32x32xf32>
    %cst_75 = arith.constant dense<0.000000e+00> : vector<2x32xf32>
    %79 = tpu.matmul %76, %78, %cst_75 {dimension_numbers = #tpu.dot_dimension_numbers<[1], [0], [0], [1], [0, 0, 1, 1], [], []>} : vector<2x32xf32>, vector<32x32xf32>, vector<2x32xf32> -> vector<2x32xf32>
    %80 = arith.addf %75, %79 : vector<2x32xf32>
    %c6_76 = arith.constant 6 : index
    %c0_77 = arith.constant 0 : index
    %81 = vector.load %arg20[%c6_76, %c0_77] : memref<66x32xf32, #tpu.memory_space<vmem>>, vector<2x32xf32>
    %c3_78 = arith.constant 3 : index
    %c0_79 = arith.constant 0 : index
    %c0_80 = arith.constant 0 : index
    %82 = vector.load %arg7[%c3_78, %c0_79, %c0_80] : memref<25x32x32xf32, #tpu.memory_space<vmem>>, vector<1x32x32xf32>
    %83 = vector.shape_cast %82 : vector<1x32x32xf32> to vector<32x32xf32>
    %cst_81 = arith.constant dense<0.000000e+00> : vector<2x32xf32>
    %84 = tpu.matmul %81, %83, %cst_81 {dimension_numbers = #tpu.dot_dimension_numbers<[1], [0], [0], [1], [0, 0, 1, 1], [], []>} : vector<2x32xf32>, vector<32x32xf32>, vector<2x32xf32> -> vector<2x32xf32>
    %85 = arith.addf %80, %84 : vector<2x32xf32>
    %c8_82 = arith.constant 8 : index
    %c0_83 = arith.constant 0 : index
    %86 = vector.load %arg20[%c8_82, %c0_83] : memref<66x32xf32, #tpu.memory_space<vmem>>, vector<2x32xf32>
    %c4_84 = arith.constant 4 : index
    %c0_85 = arith.constant 0 : index
    %c0_86 = arith.constant 0 : index
    %87 = vector.load %arg7[%c4_84, %c0_85, %c0_86] : memref<25x32x32xf32, #tpu.memory_space<vmem>>, vector<1x32x32xf32>
    %88 = vector.shape_cast %87 : vector<1x32x32xf32> to vector<32x32xf32>
    %cst_87 = arith.constant dense<0.000000e+00> : vector<2x32xf32>
    %89 = tpu.matmul %86, %88, %cst_87 {dimension_numbers = #tpu.dot_dimension_numbers<[1], [0], [0], [1], [0, 0, 1, 1], [], []>} : vector<2x32xf32>, vector<32x32xf32>, vector<2x32xf32> -> vector<2x32xf32>
    %90 = arith.addf %85, %89 : vector<2x32xf32>
    %c14_88 = arith.constant 14 : index
    %c0_89 = arith.constant 0 : index
    %91 = vector.load %arg20[%c14_88, %c0_89] : memref<66x32xf32, #tpu.memory_space<vmem>>, vector<2x32xf32>
    %c5_90 = arith.constant 5 : index
    %c0_91 = arith.constant 0 : index
    %c0_92 = arith.constant 0 : index
    %92 = vector.load %arg7[%c5_90, %c0_91, %c0_92] : memref<25x32x32xf32, #tpu.memory_space<vmem>>, vector<1x32x32xf32>
    %93 = vector.shape_cast %92 : vector<1x32x32xf32> to vector<32x32xf32>
    %cst_93 = arith.constant dense<0.000000e+00> : vector<2x32xf32>
    %94 = tpu.matmul %91, %93, %cst_93 {dimension_numbers = #tpu.dot_dimension_numbers<[1], [0], [0], [1], [0, 0, 1, 1], [], []>} : vector<2x32xf32>, vector<32x32xf32>, vector<2x32xf32> -> vector<2x32xf32>
    %95 = arith.addf %90, %94 : vector<2x32xf32>
    %c16_94 = arith.constant 16 : index
    %c0_95 = arith.constant 0 : index
    %96 = vector.load %arg20[%c16_94, %c0_95] : memref<66x32xf32, #tpu.memory_space<vmem>>, vector<2x32xf32>
    %c6_96 = arith.constant 6 : index
    %c0_97 = arith.constant 0 : index
    %c0_98 = arith.constant 0 : index
    %97 = vector.load %arg7[%c6_96, %c0_97, %c0_98] : memref<25x32x32xf32, #tpu.memory_space<vmem>>, vector<1x32x32xf32>
    %98 = vector.shape_cast %97 : vector<1x32x32xf32> to vector<32x32xf32>
    %cst_99 = arith.constant dense<0.000000e+00> : vector<2x32xf32>
    %99 = tpu.matmul %96, %98, %cst_99 {dimension_numbers = #tpu.dot_dimension_numbers<[1], [0], [0], [1], [0, 0, 1, 1], [], []>} : vector<2x32xf32>, vector<32x32xf32>, vector<2x32xf32> -> vector<2x32xf32>
    %100 = arith.addf %95, %99 : vector<2x32xf32>
    %c18_100 = arith.constant 18 : index
    %c0_101 = arith.constant 0 : index
    %101 = vector.load %arg20[%c18_100, %c0_101] : memref<66x32xf32, #tpu.memory_space<vmem>>, vector<2x32xf32>
    %c7_102 = arith.constant 7 : index
    %c0_103 = arith.constant 0 : index
    %c0_104 = arith.constant 0 : index
    %102 = vector.load %arg7[%c7_102, %c0_103, %c0_104] : memref<25x32x32xf32, #tpu.memory_space<vmem>>, vector<1x32x32xf32>
    %103 = vector.shape_cast %102 : vector<1x32x32xf32> to vector<32x32xf32>
    %cst_105 = arith.constant dense<0.000000e+00> : vector<2x32xf32>
    %104 = tpu.matmul %101, %103, %cst_105 {dimension_numbers = #tpu.dot_dimension_numbers<[1], [0], [0], [1], [0, 0, 1, 1], [], []>} : vector<2x32xf32>, vector<32x32xf32>, vector<2x32xf32> -> vector<2x32xf32>
    %105 = arith.addf %100, %104 : vector<2x32xf32>
    %c20 = arith.constant 20 : index
    %c0_106 = arith.constant 0 : index
    %106 = vector.load %arg20[%c20, %c0_106] : memref<66x32xf32, #tpu.memory_space<vmem>>, vector<2x32xf32>
    %c8_107 = arith.constant 8 : index
    %c0_108 = arith.constant 0 : index
    %c0_109 = arith.constant 0 : index
    %107 = vector.load %arg7[%c8_107, %c0_108, %c0_109] : memref<25x32x32xf32, #tpu.memory_space<vmem>>, vector<1x32x32xf32>
    %108 = vector.shape_cast %107 : vector<1x32x32xf32> to vector<32x32xf32>
    %cst_110 = arith.constant dense<0.000000e+00> : vector<2x32xf32>
    %109 = tpu.matmul %106, %108, %cst_110 {dimension_numbers = #tpu.dot_dimension_numbers<[1], [0], [0], [1], [0, 0, 1, 1], [], []>} : vector<2x32xf32>, vector<32x32xf32>, vector<2x32xf32> -> vector<2x32xf32>
    %110 = arith.addf %105, %109 : vector<2x32xf32>
    %c22 = arith.constant 22 : index
    %c0_111 = arith.constant 0 : index
    %111 = vector.load %arg20[%c22, %c0_111] : memref<66x32xf32, #tpu.memory_space<vmem>>, vector<2x32xf32>
    %c9 = arith.constant 9 : index
    %c0_112 = arith.constant 0 : index
    %c0_113 = arith.constant 0 : index
    %112 = vector.load %arg7[%c9, %c0_112, %c0_113] : memref<25x32x32xf32, #tpu.memory_space<vmem>>, vector<1x32x32xf32>
    %113 = vector.shape_cast %112 : vector<1x32x32xf32> to vector<32x32xf32>
    %cst_114 = arith.constant dense<0.000000e+00> : vector<2x32xf32>
    %114 = tpu.matmul %111, %113, %cst_114 {dimension_numbers = #tpu.dot_dimension_numbers<[1], [0], [0], [1], [0, 0, 1, 1], [], []>} : vector<2x32xf32>, vector<32x32xf32>, vector<2x32xf32> -> vector<2x32xf32>
    %115 = arith.addf %110, %114 : vector<2x32xf32>
    %c28_115 = arith.constant 28 : index
    %c0_116 = arith.constant 0 : index
    %116 = vector.load %arg20[%c28_115, %c0_116] : memref<66x32xf32, #tpu.memory_space<vmem>>, vector<2x32xf32>
    %c10 = arith.constant 10 : index
    %c0_117 = arith.constant 0 : index
    %c0_118 = arith.constant 0 : index
    %117 = vector.load %arg7[%c10, %c0_117, %c0_118] : memref<25x32x32xf32, #tpu.memory_space<vmem>>, vector<1x32x32xf32>
    %118 = vector.shape_cast %117 : vector<1x32x32xf32> to vector<32x32xf32>
    %cst_119 = arith.constant dense<0.000000e+00> : vector<2x32xf32>
    %119 = tpu.matmul %116, %118, %cst_119 {dimension_numbers = #tpu.dot_dimension_numbers<[1], [0], [0], [1], [0, 0, 1, 1], [], []>} : vector<2x32xf32>, vector<32x32xf32>, vector<2x32xf32> -> vector<2x32xf32>
    %120 = arith.addf %115, %119 : vector<2x32xf32>
    %c30_120 = arith.constant 30 : index
    %c0_121 = arith.constant 0 : index
    %121 = vector.load %arg20[%c30_120, %c0_121] : memref<66x32xf32, #tpu.memory_space<vmem>>, vector<2x32xf32>
    %c11 = arith.constant 11 : index
    %c0_122 = arith.constant 0 : index
    %c0_123 = arith.constant 0 : index
    %122 = vector.load %arg7[%c11, %c0_122, %c0_123] : memref<25x32x32xf32, #tpu.memory_space<vmem>>, vector<1x32x32xf32>
    %123 = vector.shape_cast %122 : vector<1x32x32xf32> to vector<32x32xf32>
    %cst_124 = arith.constant dense<0.000000e+00> : vector<2x32xf32>
    %124 = tpu.matmul %121, %123, %cst_124 {dimension_numbers = #tpu.dot_dimension_numbers<[1], [0], [0], [1], [0, 0, 1, 1], [], []>} : vector<2x32xf32>, vector<32x32xf32>, vector<2x32xf32> -> vector<2x32xf32>
    %125 = arith.addf %120, %124 : vector<2x32xf32>
    %c32_125 = arith.constant 32 : index
    %c0_126 = arith.constant 0 : index
    %126 = vector.load %arg20[%c32_125, %c0_126] : memref<66x32xf32, #tpu.memory_space<vmem>>, vector<2x32xf32>
    %c12 = arith.constant 12 : index
    %c0_127 = arith.constant 0 : index
    %c0_128 = arith.constant 0 : index
    %127 = vector.load %arg7[%c12, %c0_127, %c0_128] : memref<25x32x32xf32, #tpu.memory_space<vmem>>, vector<1x32x32xf32>
    %128 = vector.shape_cast %127 : vector<1x32x32xf32> to vector<32x32xf32>
    %cst_129 = arith.constant dense<0.000000e+00> : vector<2x32xf32>
    %129 = tpu.matmul %126, %128, %cst_129 {dimension_numbers = #tpu.dot_dimension_numbers<[1], [0], [0], [1], [0, 0, 1, 1], [], []>} : vector<2x32xf32>, vector<32x32xf32>, vector<2x32xf32> -> vector<2x32xf32>
    %130 = arith.addf %125, %129 : vector<2x32xf32>
    %c34 = arith.constant 34 : index
    %c0_130 = arith.constant 0 : index
    %131 = vector.load %arg20[%c34, %c0_130] : memref<66x32xf32, #tpu.memory_space<vmem>>, vector<2x32xf32>
    %c13 = arith.constant 13 : index
    %c0_131 = arith.constant 0 : index
    %c0_132 = arith.constant 0 : index
    %132 = vector.load %arg7[%c13, %c0_131, %c0_132] : memref<25x32x32xf32, #tpu.memory_space<vmem>>, vector<1x32x32xf32>
    %133 = vector.shape_cast %132 : vector<1x32x32xf32> to vector<32x32xf32>
    %cst_133 = arith.constant dense<0.000000e+00> : vector<2x32xf32>
    %134 = tpu.matmul %131, %133, %cst_133 {dimension_numbers = #tpu.dot_dimension_numbers<[1], [0], [0], [1], [0, 0, 1, 1], [], []>} : vector<2x32xf32>, vector<32x32xf32>, vector<2x32xf32> -> vector<2x32xf32>
    %135 = arith.addf %130, %134 : vector<2x32xf32>
    %c36 = arith.constant 36 : index
    %c0_134 = arith.constant 0 : index
    %136 = vector.load %arg20[%c36, %c0_134] : memref<66x32xf32, #tpu.memory_space<vmem>>, vector<2x32xf32>
    %c14_135 = arith.constant 14 : index
    %c0_136 = arith.constant 0 : index
    %c0_137 = arith.constant 0 : index
    %137 = vector.load %arg7[%c14_135, %c0_136, %c0_137] : memref<25x32x32xf32, #tpu.memory_space<vmem>>, vector<1x32x32xf32>
    %138 = vector.shape_cast %137 : vector<1x32x32xf32> to vector<32x32xf32>
    %cst_138 = arith.constant dense<0.000000e+00> : vector<2x32xf32>
    %139 = tpu.matmul %136, %138, %cst_138 {dimension_numbers = #tpu.dot_dimension_numbers<[1], [0], [0], [1], [0, 0, 1, 1], [], []>} : vector<2x32xf32>, vector<32x32xf32>, vector<2x32xf32> -> vector<2x32xf32>
    %140 = arith.addf %135, %139 : vector<2x32xf32>
    %c42 = arith.constant 42 : index
    %c0_139 = arith.constant 0 : index
    %141 = vector.load %arg20[%c42, %c0_139] : memref<66x32xf32, #tpu.memory_space<vmem>>, vector<2x32xf32>
    %c15 = arith.constant 15 : index
    %c0_140 = arith.constant 0 : index
    %c0_141 = arith.constant 0 : index
    %142 = vector.load %arg7[%c15, %c0_140, %c0_141] : memref<25x32x32xf32, #tpu.memory_space<vmem>>, vector<1x32x32xf32>
    %143 = vector.shape_cast %142 : vector<1x32x32xf32> to vector<32x32xf32>
    %cst_142 = arith.constant dense<0.000000e+00> : vector<2x32xf32>
    %144 = tpu.matmul %141, %143, %cst_142 {dimension_numbers = #tpu.dot_dimension_numbers<[1], [0], [0], [1], [0, 0, 1, 1], [], []>} : vector<2x32xf32>, vector<32x32xf32>, vector<2x32xf32> -> vector<2x32xf32>
    %145 = arith.addf %140, %144 : vector<2x32xf32>
    %c44 = arith.constant 44 : index
    %c0_143 = arith.constant 0 : index
    %146 = vector.load %arg20[%c44, %c0_143] : memref<66x32xf32, #tpu.memory_space<vmem>>, vector<2x32xf32>
    %c16_144 = arith.constant 16 : index
    %c0_145 = arith.constant 0 : index
    %c0_146 = arith.constant 0 : index
    %147 = vector.load %arg7[%c16_144, %c0_145, %c0_146] : memref<25x32x32xf32, #tpu.memory_space<vmem>>, vector<1x32x32xf32>
    %148 = vector.shape_cast %147 : vector<1x32x32xf32> to vector<32x32xf32>
    %cst_147 = arith.constant dense<0.000000e+00> : vector<2x32xf32>
    %149 = tpu.matmul %146, %148, %cst_147 {dimension_numbers = #tpu.dot_dimension_numbers<[1], [0], [0], [1], [0, 0, 1, 1], [], []>} : vector<2x32xf32>, vector<32x32xf32>, vector<2x32xf32> -> vector<2x32xf32>
    %150 = arith.addf %145, %149 : vector<2x32xf32>
    %c46 = arith.constant 46 : index
    %c0_148 = arith.constant 0 : index
    %151 = vector.load %arg20[%c46, %c0_148] : memref<66x32xf32, #tpu.memory_space<vmem>>, vector<2x32xf32>
    %c17 = arith.constant 17 : index
    %c0_149 = arith.constant 0 : index
    %c0_150 = arith.constant 0 : index
    %152 = vector.load %arg7[%c17, %c0_149, %c0_150] : memref<25x32x32xf32, #tpu.memory_space<vmem>>, vector<1x32x32xf32>
    %153 = vector.shape_cast %152 : vector<1x32x32xf32> to vector<32x32xf32>
    %cst_151 = arith.constant dense<0.000000e+00> : vector<2x32xf32>
    %154 = tpu.matmul %151, %153, %cst_151 {dimension_numbers = #tpu.dot_dimension_numbers<[1], [0], [0], [1], [0, 0, 1, 1], [], []>} : vector<2x32xf32>, vector<32x32xf32>, vector<2x32xf32> -> vector<2x32xf32>
    %155 = arith.addf %150, %154 : vector<2x32xf32>
    %c48 = arith.constant 48 : index
    %c0_152 = arith.constant 0 : index
    %156 = vector.load %arg20[%c48, %c0_152] : memref<66x32xf32, #tpu.memory_space<vmem>>, vector<2x32xf32>
    %c18_153 = arith.constant 18 : index
    %c0_154 = arith.constant 0 : index
    %c0_155 = arith.constant 0 : index
    %157 = vector.load %arg7[%c18_153, %c0_154, %c0_155] : memref<25x32x32xf32, #tpu.memory_space<vmem>>, vector<1x32x32xf32>
    %158 = vector.shape_cast %157 : vector<1x32x32xf32> to vector<32x32xf32>
    %cst_156 = arith.constant dense<0.000000e+00> : vector<2x32xf32>
    %159 = tpu.matmul %156, %158, %cst_156 {dimension_numbers = #tpu.dot_dimension_numbers<[1], [0], [0], [1], [0, 0, 1, 1], [], []>} : vector<2x32xf32>, vector<32x32xf32>, vector<2x32xf32> -> vector<2x32xf32>
    %160 = arith.addf %155, %159 : vector<2x32xf32>
    %c50 = arith.constant 50 : index
    %c0_157 = arith.constant 0 : index
    %161 = vector.load %arg20[%c50, %c0_157] : memref<66x32xf32, #tpu.memory_space<vmem>>, vector<2x32xf32>
    %c19 = arith.constant 19 : index
    %c0_158 = arith.constant 0 : index
    %c0_159 = arith.constant 0 : index
    %162 = vector.load %arg7[%c19, %c0_158, %c0_159] : memref<25x32x32xf32, #tpu.memory_space<vmem>>, vector<1x32x32xf32>
    %163 = vector.shape_cast %162 : vector<1x32x32xf32> to vector<32x32xf32>
    %cst_160 = arith.constant dense<0.000000e+00> : vector<2x32xf32>
    %164 = tpu.matmul %161, %163, %cst_160 {dimension_numbers = #tpu.dot_dimension_numbers<[1], [0], [0], [1], [0, 0, 1, 1], [], []>} : vector<2x32xf32>, vector<32x32xf32>, vector<2x32xf32> -> vector<2x32xf32>
    %165 = arith.addf %160, %164 : vector<2x32xf32>
    %c56 = arith.constant 56 : index
    %c0_161 = arith.constant 0 : index
    %166 = vector.load %arg20[%c56, %c0_161] : memref<66x32xf32, #tpu.memory_space<vmem>>, vector<2x32xf32>
    %c20_162 = arith.constant 20 : index
    %c0_163 = arith.constant 0 : index
    %c0_164 = arith.constant 0 : index
    %167 = vector.load %arg7[%c20_162, %c0_163, %c0_164] : memref<25x32x32xf32, #tpu.memory_space<vmem>>, vector<1x32x32xf32>
    %168 = vector.shape_cast %167 : vector<1x32x32xf32> to vector<32x32xf32>
    %cst_165 = arith.constant dense<0.000000e+00> : vector<2x32xf32>
    %169 = tpu.matmul %166, %168, %cst_165 {dimension_numbers = #tpu.dot_dimension_numbers<[1], [0], [0], [1], [0, 0, 1, 1], [], []>} : vector<2x32xf32>, vector<32x32xf32>, vector<2x32xf32> -> vector<2x32xf32>
    %170 = arith.addf %165, %169 : vector<2x32xf32>
    %c58 = arith.constant 58 : index
    %c0_166 = arith.constant 0 : index
    %171 = vector.load %arg20[%c58, %c0_166] : memref<66x32xf32, #tpu.memory_space<vmem>>, vector<2x32xf32>
    %c21 = arith.constant 21 : index
    %c0_167 = arith.constant 0 : index
    %c0_168 = arith.constant 0 : index
    %172 = vector.load %arg7[%c21, %c0_167, %c0_168] : memref<25x32x32xf32, #tpu.memory_space<vmem>>, vector<1x32x32xf32>
    %173 = vector.shape_cast %172 : vector<1x32x32xf32> to vector<32x32xf32>
    %cst_169 = arith.constant dense<0.000000e+00> : vector<2x32xf32>
    %174 = tpu.matmul %171, %173, %cst_169 {dimension_numbers = #tpu.dot_dimension_numbers<[1], [0], [0], [1], [0, 0, 1, 1], [], []>} : vector<2x32xf32>, vector<32x32xf32>, vector<2x32xf32> -> vector<2x32xf32>
    %175 = arith.addf %170, %174 : vector<2x32xf32>
    %c60 = arith.constant 60 : index
    %c0_170 = arith.constant 0 : index
    %176 = vector.load %arg20[%c60, %c0_170] : memref<66x32xf32, #tpu.memory_space<vmem>>, vector<2x32xf32>
    %c22_171 = arith.constant 22 : index
    %c0_172 = arith.constant 0 : index
    %c0_173 = arith.constant 0 : index
    %177 = vector.load %arg7[%c22_171, %c0_172, %c0_173] : memref<25x32x32xf32, #tpu.memory_space<vmem>>, vector<1x32x32xf32>
    %178 = vector.shape_cast %177 : vector<1x32x32xf32> to vector<32x32xf32>
    %cst_174 = arith.constant dense<0.000000e+00> : vector<2x32xf32>
    %179 = tpu.matmul %176, %178, %cst_174 {dimension_numbers = #tpu.dot_dimension_numbers<[1], [0], [0], [1], [0, 0, 1, 1], [], []>} : vector<2x32xf32>, vector<32x32xf32>, vector<2x32xf32> -> vector<2x32xf32>
    %180 = arith.addf %175, %179 : vector<2x32xf32>
    %c62 = arith.constant 62 : index
    %c0_175 = arith.constant 0 : index
    %181 = vector.load %arg20[%c62, %c0_175] : memref<66x32xf32, #tpu.memory_space<vmem>>, vector<2x32xf32>
    %c23 = arith.constant 23 : index
    %c0_176 = arith.constant 0 : index
    %c0_177 = arith.constant 0 : index
    %182 = vector.load %arg7[%c23, %c0_176, %c0_177] : memref<25x32x32xf32, #tpu.memory_space<vmem>>, vector<1x32x32xf32>
    %183 = vector.shape_cast %182 : vector<1x32x32xf32> to vector<32x32xf32>
    %cst_178 = arith.constant dense<0.000000e+00> : vector<2x32xf32>
    %184 = tpu.matmul %181, %183, %cst_178 {dimension_numbers = #tpu.dot_dimension_numbers<[1], [0], [0], [1], [0, 0, 1, 1], [], []>} : vector<2x32xf32>, vector<32x32xf32>, vector<2x32xf32> -> vector<2x32xf32>
    %185 = arith.addf %180, %184 : vector<2x32xf32>
    %c64 = arith.constant 64 : index
    %c0_179 = arith.constant 0 : index
    %186 = vector.load %arg20[%c64, %c0_179] : memref<66x32xf32, #tpu.memory_space<vmem>>, vector<2x32xf32>
    %c24 = arith.constant 24 : index
    %c0_180 = arith.constant 0 : index
    %c0_181 = arith.constant 0 : index
    %187 = vector.load %arg7[%c24, %c0_180, %c0_181] : memref<25x32x32xf32, #tpu.memory_space<vmem>>, vector<1x32x32xf32>
    %188 = vector.shape_cast %187 : vector<1x32x32xf32> to vector<32x32xf32>
    %cst_182 = arith.constant dense<0.000000e+00> : vector<2x32xf32>
    %189 = tpu.matmul %186, %188, %cst_182 {dimension_numbers = #tpu.dot_dimension_numbers<[1], [0], [0], [1], [0, 0, 1, 1], [], []>} : vector<2x32xf32>, vector<32x32xf32>, vector<2x32xf32> -> vector<2x32xf32>
    %190 = arith.addf %185, %189 : vector<2x32xf32>
    %cst_183 = arith.constant dense<0.000000e+00> : vector<2xf32>
    %191 = vector.multi_reduction <add>, %190, %cst_183 [1] : vector<2x32xf32> to vector<2xf32>
    %192 = vector.shape_cast %191 : vector<2xf32> to vector<2x1xf32>
    %cst_184 = arith.constant 3.200000e+01 : f32
    %193 = vector.broadcast %cst_184 : f32 to vector<2x1xf32>
    %194 = arith.divf %192, %193 : vector<2x1xf32>
    %195 = vector.broadcast %194 : vector<2x1xf32> to vector<2x32xf32>
    %196 = arith.subf %190, %195 : vector<2x32xf32>
    %197 = arith.mulf %196, %196 : vector<2x32xf32>
    %cst_185 = arith.constant dense<0.000000e+00> : vector<2xf32>
    %198 = vector.multi_reduction <add>, %197, %cst_185 [1] : vector<2x32xf32> to vector<2xf32>
    %199 = vector.shape_cast %198 : vector<2xf32> to vector<2x1xf32>
    %cst_186 = arith.constant 3.200000e+01 : f32
    %200 = vector.broadcast %cst_186 : f32 to vector<2x1xf32>
    %201 = arith.divf %199, %200 : vector<2x1xf32>
    %202 = vector.broadcast %194 : vector<2x1xf32> to vector<2x32xf32>
    %203 = arith.subf %190, %202 : vector<2x32xf32>
    %cst_187 = arith.constant 9.99999974E-6 : f32
    %204 = vector.broadcast %cst_187 : f32 to vector<2x1xf32>
    %205 = arith.addf %201, %204 : vector<2x1xf32>
    %206 = math.rsqrt %205 : vector<2x1xf32>
    %207 = vector.broadcast %206 : vector<2x1xf32> to vector<2x32xf32>
    %208 = arith.mulf %203, %207 : vector<2x32xf32>
    %c0_188 = arith.constant 0 : index
    %c0_189 = arith.constant 0 : index
    %209 = vector.load %arg9[%c0_188, %c0_189] : memref<1x32xf32, #tpu.memory_space<vmem>>, vector<1x32xf32>
    %210 = vector.broadcast %209 : vector<1x32xf32> to vector<2x32xf32>
    %211 = arith.mulf %208, %210 : vector<2x32xf32>
    %c0_190 = arith.constant 0 : index
    %c0_191 = arith.constant 0 : index
    %212 = vector.load %arg10[%c0_190, %c0_191] : memref<1x32xf32, #tpu.memory_space<vmem>>, vector<1x32xf32>
    %213 = vector.broadcast %212 : vector<1x32xf32> to vector<2x32xf32>
    %214 = arith.addf %211, %213 : vector<2x32xf32>
    %215 = math.tanh %214 : vector<2x32xf32>
    %c0_192 = arith.constant 0 : index
    %c0_193 = arith.constant 0 : index
    %216 = vector.load %arg11[%c0_192, %c0_193] : memref<32x32xf32, #tpu.memory_space<vmem>>, vector<32x32xf32>
    %cst_194 = arith.constant dense<0.000000e+00> : vector<2x32xf32>
    %217 = tpu.matmul %215, %216, %cst_194 {dimension_numbers = #tpu.dot_dimension_numbers<[1], [0], [0], [1], [0, 0, 1, 1], [], []>} : vector<2x32xf32>, vector<32x32xf32>, vector<2x32xf32> -> vector<2x32xf32>
    %c0_195 = arith.constant 0 : index
    %c0_196 = arith.constant 0 : index
    %c0_197 = arith.constant 0 : index
    %218 = vector.load %arg2[%c0_195, %c0_196, %c0_197] : memref<1x2x6xf32, #tpu.memory_space<vmem>>, vector<1x2x6xf32>
    %219 = vector.shape_cast %218 : vector<1x2x6xf32> to vector<2x6xf32>
    %c0_198 = arith.constant 0 : index
    %c0_199 = arith.constant 0 : index
    %220 = vector.load %arg12[%c0_198, %c0_199] : memref<6x32xf32, #tpu.memory_space<vmem>>, vector<6x32xf32>
    %cst_200 = arith.constant dense<0.000000e+00> : vector<2x32xf32>
    %221 = tpu.matmul %219, %220, %cst_200 {dimension_numbers = #tpu.dot_dimension_numbers<[1], [0], [0], [1], [0, 0, 1, 1], [], []>} : vector<2x6xf32>, vector<6x32xf32>, vector<2x32xf32> -> vector<2x32xf32>
    %222 = arith.addf %217, %221 : vector<2x32xf32>
    %c0_201 = arith.constant 0 : index
    %c0_202 = arith.constant 0 : index
    %223 = vector.load %arg13[%c0_201, %c0_202] : memref<1x32xf32, #tpu.memory_space<vmem>>, vector<1x32xf32>
    %224 = vector.broadcast %223 : vector<1x32xf32> to vector<2x32xf32>
    %225 = arith.addf %222, %224 : vector<2x32xf32>
    %cst_203 = arith.constant 0.000000e+00 : f32
    %226 = vector.broadcast %cst_203 : f32 to vector<2x32xf32>
    %227 = arith.maximumf %225, %226 : vector<2x32xf32>
    %c0_204 = arith.constant 0 : index
    %c0_205 = arith.constant 0 : index
    %228 = vector.load %arg14[%c0_204, %c0_205] : memref<32x32xf32, #tpu.memory_space<vmem>>, vector<32x32xf32>
    %cst_206 = arith.constant dense<0.000000e+00> : vector<2x32xf32>
    %229 = tpu.matmul %227, %228, %cst_206 {dimension_numbers = #tpu.dot_dimension_numbers<[1], [0], [0], [1], [0, 0, 1, 1], [], []>} : vector<2x32xf32>, vector<32x32xf32>, vector<2x32xf32> -> vector<2x32xf32>
    %c0_207 = arith.constant 0 : index
    %c0_208 = arith.constant 0 : index
    %230 = vector.load %arg15[%c0_207, %c0_208] : memref<1x32xf32, #tpu.memory_space<vmem>>, vector<1x32xf32>
    %231 = vector.broadcast %230 : vector<1x32xf32> to vector<2x32xf32>
    %232 = arith.addf %229, %231 : vector<2x32xf32>
    %cst_209 = arith.constant 0.000000e+00 : f32
    %233 = vector.broadcast %cst_209 : f32 to vector<2x32xf32>
    %234 = arith.maximumf %232, %233 : vector<2x32xf32>
    %c0_210 = arith.constant 0 : index
    %c0_211 = arith.constant 0 : index
    %235 = vector.load %arg16[%c0_210, %c0_211] : memref<32x32xf32, #tpu.memory_space<vmem>>, vector<32x32xf32>
    %cst_212 = arith.constant dense<0.000000e+00> : vector<2x32xf32>
    %236 = tpu.matmul %234, %235, %cst_212 {dimension_numbers = #tpu.dot_dimension_numbers<[1], [0], [0], [1], [0, 0, 1, 1], [], []>} : vector<2x32xf32>, vector<32x32xf32>, vector<2x32xf32> -> vector<2x32xf32>
    %c0_213 = arith.constant 0 : index
    %c0_214 = arith.constant 0 : index
    %237 = vector.load %arg17[%c0_213, %c0_214] : memref<1x32xf32, #tpu.memory_space<vmem>>, vector<1x32xf32>
    %238 = vector.broadcast %237 : vector<1x32xf32> to vector<2x32xf32>
    %239 = arith.addf %236, %238 : vector<2x32xf32>
    %c0_215 = arith.constant 0 : index
    %c0_216 = arith.constant 0 : index
    %c0_217 = arith.constant 0 : index
    %240 = vector.load %arg18[%c0_215, %c0_216, %c0_217] : memref<1x2x32xf32, #tpu.memory_space<vmem>>, vector<1x2x32xf32>
    %241 = vector.shape_cast %240 : vector<1x2x32xf32> to vector<2x32xf32>
    %242 = vector.shape_cast %239 : vector<2x32xf32> to vector<1x2x32xf32>
    tpu.vector_store %arg18[%c0_215, %c0_216, %c0_217], %242 {strides = array<i32>} : memref<1x2x32xf32, #tpu.memory_space<vmem>>, vector<1x2x32xf32>,
    return
  }
  func.func @transform_0(%arg0: i32) -> (i32, i32, i32) {
    %c0_i32 = arith.constant 0 : i32
    %c0_i32_0 = arith.constant 0 : i32
    %c0_i32_1 = arith.constant 0 : i32
    return %arg0, %c0_i32, %c0_i32_0 : i32, i32, i32
  }
  func.func @transform_1(%arg0: i32) -> (i32, i32, i32) {
    %c0_i32 = arith.constant 0 : i32
    %c0_i32_0 = arith.constant 0 : i32
    %c0_i32_1 = arith.constant 0 : i32
    return %arg0, %c0_i32, %c0_i32_0 : i32, i32, i32
  }
  func.func @transform_2(%arg0: i32) -> (i32, i32) {
    %c0_i32 = arith.constant 0 : i32
    %c0_i32_0 = arith.constant 0 : i32
    %c0_i32_1 = arith.constant 0 : i32
    return %c0_i32, %c0_i32_0 : i32, i32
  }
  func.func @transform_3(%arg0: i32) -> (i32, i32) {
    %c0_i32 = arith.constant 0 : i32
    %c0_i32_0 = arith.constant 0 : i32
    %c0_i32_1 = arith.constant 0 : i32
    return %c0_i32, %c0_i32_0 : i32, i32
  }
  func.func @transform_4(%arg0: i32) -> (i32, i32, i32) {
    %c0_i32 = arith.constant 0 : i32
    %c0_i32_0 = arith.constant 0 : i32
    %c0_i32_1 = arith.constant 0 : i32
    %c0_i32_2 = arith.constant 0 : i32
    return %c0_i32, %c0_i32_0, %c0_i32_1 : i32, i32, i32
  }
  func.func @transform_5(%arg0: i32) -> (i32, i32) {
    %c0_i32 = arith.constant 0 : i32
    %c0_i32_0 = arith.constant 0 : i32
    %c0_i32_1 = arith.constant 0 : i32
    return %c0_i32, %c0_i32_0 : i32, i32
  }
  func.func @transform_6(%arg0: i32) -> (i32, i32, i32) {
    %c0_i32 = arith.constant 0 : i32
    %c0_i32_0 = arith.constant 0 : i32
    %c0_i32_1 = arith.constant 0 : i32
    %c0_i32_2 = arith.constant 0 : i32
    return %c0_i32, %c0_i32_0, %c0_i32_1 : i32, i32, i32
  }
  func.func @transform_7(%arg0: i32) -> (i32, i32) {
    %c0_i32 = arith.constant 0 : i32
    %c0_i32_0 = arith.constant 0 : i32
    %c0_i32_1 = arith.constant 0 : i32
    return %c0_i32, %c0_i32_0 : i32, i32
  }
  func.func @transform_8(%arg0: i32) -> (i32, i32) {
    %c0_i32 = arith.constant 0 : i32
    %c0_i32_0 = arith.constant 0 : i32
    %c0_i32_1 = arith.constant 0 : i32
    return %c0_i32, %c0_i32_0 : i32, i32
  }
  func.func @transform_9(%arg0: i32) -> (i32, i32) {
    %c0_i32 = arith.constant 0 : i32
    %c0_i32_0 = arith.constant 0 : i32
    %c0_i32_1 = arith.constant 0 : i32
    return %c0_i32, %c0_i32_0 : i32, i32
  }
  func.func @transform_10(%arg0: i32) -> (i32, i32) {
    %c0_i32 = arith.constant 0 : i32
    %c0_i32_0 = arith.constant 0 : i32
    %c0_i32_1 = arith.constant 0 : i32
    return %c0_i32, %c0_i32_0 : i32, i32
  }
  func.func @transform_11(%arg0: i32) -> (i32, i32) {
    %c0_i32 = arith.constant 0 : i32
    %c0_i32_0 = arith.constant 0 : i32
    %c0_i32_1 = arith.constant 0 : i32
    return %c0_i32, %c0_i32_0 : i32, i32
  }
  func.func @transform_12(%arg0: i32) -> (i32, i32) {
    %c0_i32 = arith.constant 0 : i32
    %c0_i32_0 = arith.constant 0 : i32
    %c0_i32_1 = arith.constant 0 : i32
    return %c0_i32, %c0_i32_0 : i32, i32
  }
  func.func @transform_13(%arg0: i32) -> (i32, i32) {
    %c0_i32 = arith.constant 0 : i32
    %c0_i32_0 = arith.constant 0 : i32
    %c0_i32_1 = arith.constant 0 : i32
    return %c0_i32, %c0_i32_0 : i32, i32
  }
  func.func @transform_14(%arg0: i32) -> (i32, i32) {
    %c0_i32 = arith.constant 0 : i32
    %c0_i32_0 = arith.constant 0 : i32
    %c0_i32_1 = arith.constant 0 : i32
    return %c0_i32, %c0_i32_0 : i32, i32
  }
  func.func @transform_15(%arg0: i32) -> (i32, i32) {
    %c0_i32 = arith.constant 0 : i32
    %c0_i32_0 = arith.constant 0 : i32
    %c0_i32_1 = arith.constant 0 : i32
    return %c0_i32, %c0_i32_0 : i32, i32
  }
  func.func @transform_16(%arg0: i32) -> (i32, i32) {
    %c0_i32 = arith.constant 0 : i32
    %c0_i32_0 = arith.constant 0 : i32
    %c0_i32_1 = arith.constant 0 : i32
    return %c0_i32, %c0_i32_0 : i32, i32
  }
  func.func @transform_17(%arg0: i32) -> (i32, i32, i32) {
    %c0_i32 = arith.constant 0 : i32
    %c0_i32_0 = arith.constant 0 : i32
    %c0_i32_1 = arith.constant 0 : i32
    return %arg0, %c0_i32, %c0_i32_0 : i32, i32, i32
  }
}

</mosaic_0001>

<llo_original>
// kernel: dynamics_forward.1
$region0: #{dynamics_forward.1}
  #allocation0 [shape = 'u32[]', space=smem, size = 0x4, offset = 0x4, fixed_abs, tag = 'smem constant byte address 0x4 - core index']
  #allocation1 [shape = 'u32[144,128]{1,0:T(1,128)}', space=vmem, size = 0x12000, scoped, tag = 'internal scratch']
  #allocation2 [shape = 'f32[98,32]{1,0:T(8,128)}', space=vmem, size = 0xd000, scoped, tag = 'scratch operand']
  #allocation3 [shape = 'f32[66,32]{1,0:T(8,128)}', space=vmem, size = 0x9000, scoped, tag = 'scratch operand']
  %s0 = inlined_call_operand.vmem [shape: f32[1,98,40], index: 0, kind: input, shape index: {}]
  %s1 = inlined_call_operand.vmem [shape: f32[1,2,6], index: 1, kind: input, shape index: {}]
  %s2 = inlined_call_operand.vmem [shape: f32[40,32], index: 2, kind: input, shape index: {}]
  %s3 = inlined_call_operand.vmem [shape: f32[1,32], index: 3, kind: input, shape index: {}]
  %s4 = inlined_call_operand.vmem [shape: f32[9,32,32], index: 4, kind: input, shape index: {}]
  %s5 = inlined_call_operand.vmem [shape: f32[1,32], index: 5, kind: input, shape index: {}]
  %s6 = inlined_call_operand.vmem [shape: f32[25,32,32], index: 6, kind: input, shape index: {}]
  %s7 = inlined_call_operand.vmem [shape: f32[1,32], index: 7, kind: input, shape index: {}]
  %s8 = inlined_call_operand.vmem [shape: f32[1,32], index: 8, kind: input, shape index: {}]
  %s9 = inlined_call_operand.vmem [shape: f32[1,32], index: 9, kind: input, shape index: {}]
  %s10 = inlined_call_operand.vmem [shape: f32[32,32], index: 10, kind: input, shape index: {}]
  %s11 = inlined_call_operand.vmem [shape: f32[6,32], index: 11, kind: input, shape index: {}]
  %s12 = inlined_call_operand.vmem [shape: f32[1,32], index: 12, kind: input, shape index: {}]
  %s13 = inlined_call_operand.vmem [shape: f32[32,32], index: 13, kind: input, shape index: {}]
  %s14 = inlined_call_operand.vmem [shape: f32[1,32], index: 14, kind: input, shape index: {}]
  %s15 = inlined_call_operand.vmem [shape: f32[32,32], index: 15, kind: input, shape index: {}]
  %s16 = inlined_call_operand.vmem [shape: f32[1,32], index: 16, kind: input, shape index: {}]
  %s17 = inlined_call_operand.hbm [shape: f32[1,2,32], index: 17, kind: output, shape index: {}]
  %s18 = sld [smem:[#allocation0]]
  $region78: #{dynamics_forward.1} parent=0
    _
  %s20 = ssub.s32 1, %s18
  %s21 = scalar_select 0, %s20, %s18
  $region1: #{dynamics_forward.1} parent=0
    #allocation4 [shape = 'u8[1024]{0}', space=vmem, size = 0x400, scoped, tag = 'output window, operand 0, single buffered']
    #allocation5 [shape = 's32[1]{0}', space=sflag, size = 0x4, scoped, tag = 'scoped memory for dynamics_forward.1']
    %22 = vsyncpa [#allocation5], 0
    // Predicated region
    $region2: #{dynamics_forward.1} parent=1 // pred_check
      _
    $region3: #{dynamics_forward.1} parent=1 // pred_check_branch
      %24 = sbr.rel (0) target = $region5
    $region4: #{dynamics_forward.1} parent=1 // pred_region
      _
    $region5: #{dynamics_forward.1} parent=1 // pred_fallthru
      _
    // Predicated region
    $region6: #{dynamics_forward.1} parent=1 // pred_check
      _
    $region7: #{dynamics_forward.1} parent=1 // pred_check_branch
      %26 = sbr.rel (0) target = $region9
    $region8: #{dynamics_forward.1} parent=1 // pred_region
      _
    $region9: #{dynamics_forward.1} parent=1 // pred_fallthru
      _
    // Predicated region
    $region10: #{dynamics_forward.1} parent=1 // pred_check
      _
    $region11: #{dynamics_forward.1} parent=1 // pred_check_branch
      %28 = sbr.rel (0) target = $region13
    $region12: #{dynamics_forward.1} parent=1 // pred_region
      _
    $region13: #{dynamics_forward.1} parent=1 // pred_fallthru
      _
    // Predicated region
    $region14: #{dynamics_forward.1} parent=1 // pred_check
      _
    $region15: #{dynamics_forward.1} parent=1 // pred_check_branch
      %30 = sbr.rel (0) target = $region17
    $region16: #{dynamics_forward.1} parent=1 // pred_region
      _
    $region17: #{dynamics_forward.1} parent=1 // pred_fallthru
      _
    // Predicated region
    $region18: #{dynamics_forward.1} parent=1 // pred_check
      _
    $region19: #{dynamics_forward.1} parent=1 // pred_check_branch
      %32 = sbr.rel (0) target = $region21
    $region20: #{dynamics_forward.1} parent=1 // pred_region
      _
    $region21: #{dynamics_forward.1} parent=1 // pred_fallthru
      _
    // Predicated region
    $region22: #{dynamics_forward.1} parent=1 // pred_check
      _
    $region23: #{dynamics_forward.1} parent=1 // pred_check_branch
      %34 = sbr.rel (0) target = $region25
    $region24: #{dynamics_forward.1} parent=1 // pred_region
      _
    $region25: #{dynamics_forward.1} parent=1 // pred_fallthru
      _
    // Predicated region
    $region26: #{dynamics_forward.1} parent=1 // pred_check
      _
    $region27: #{dynamics_forward.1} parent=1 // pred_check_branch
      %36 = sbr.rel (0) target = $region29
    $region28: #{dynamics_forward.1} parent=1 // pred_region
      _
    $region29: #{dynamics_forward.1} parent=1 // pred_fallthru
      _
    // Predicated region
    $region30: #{dynamics_forward.1} parent=1 // pred_check
      _
    $region31: #{dynamics_forward.1} parent=1 // pred_check_branch
      %38 = sbr.rel (0) target = $region33
    $region32: #{dynamics_forward.1} parent=1 // pred_region
      _
    $region33: #{dynamics_forward.1} parent=1 // pred_fallthru
      _
    // Predicated region
    $region34: #{dynamics_forward.1} parent=1 // pred_check
      _
    $region35: #{dynamics_forward.1} parent=1 // pred_check_branch
      %40 = sbr.rel (0) target = $region37
    $region36: #{dynamics_forward.1} parent=1 // pred_region
      _
    $region37: #{dynamics_forward.1} parent=1 // pred_fallthru
      _
    // Predicated region
    $region38: #{dynamics_forward.1} parent=1 // pred_check
      _
    $region39: #{dynamics_forward.1} parent=1 // pred_check_branch
      %42 = sbr.rel (0) target = $region41
    $region40: #{dynamics_forward.1} parent=1 // pred_region
      _
    $region41: #{dynamics_forward.1} parent=1 // pred_fallthru
      _
    // Predicated region
    $region42: #{dynamics_forward.1} parent=1 // pred_check
      _
    $region43: #{dynamics_forward.1} parent=1 // pred_check_branch
      %44 = sbr.rel (0) target = $region45
    $region44: #{dynamics_forward.1} parent=1 // pred_region
      _
    $region45: #{dynamics_forward.1} parent=1 // pred_fallthru
      _
    // Predicated region
    $region46: #{dynamics_forward.1} parent=1 // pred_check
      _
    $region47: #{dynamics_forward.1} parent=1 // pred_check_branch
      %46 = sbr.rel (0) target = $region49
    $region48: #{dynamics_forward.1} parent=1 // pred_region
      _
    $region49: #{dynamics_forward.1} parent=1 // pred_fallthru
      _
    // Predicated region
    $region50: #{dynamics_forward.1} parent=1 // pred_check
      _
    $region51: #{dynamics_forward.1} parent=1 // pred_check_branch
      %48 = sbr.rel (0) target = $region53
    $region52: #{dynamics_forward.1} parent=1 // pred_region
      _
    $region53: #{dynamics_forward.1} parent=1 // pred_fallthru
      _
    // Predicated region
    $region54: #{dynamics_forward.1} parent=1 // pred_check
      _
    $region55: #{dynamics_forward.1} parent=1 // pred_check_branch
      %50 = sbr.rel (0) target = $region57
    $region56: #{dynamics_forward.1} parent=1 // pred_region
      _
    $region57: #{dynamics_forward.1} parent=1 // pred_fallthru
      _
    // Predicated region
    $region58: #{dynamics_forward.1} parent=1 // pred_check
      _
    $region59: #{dynamics_forward.1} parent=1 // pred_check_branch
      %52 = sbr.rel (0) target = $region61
    $region60: #{dynamics_forward.1} parent=1 // pred_region
      _
    $region61: #{dynamics_forward.1} parent=1 // pred_fallthru
      _
    // Predicated region
    $region62: #{dynamics_forward.1} parent=1 // pred_check
      _
    $region63: #{dynamics_forward.1} parent=1 // pred_check_branch
      %54 = sbr.rel (0) target = $region65
    $region64: #{dynamics_forward.1} parent=1 // pred_region
      _
    $region65: #{dynamics_forward.1} parent=1 // pred_fallthru
      _
    // Predicated region
    $region66: #{dynamics_forward.1} parent=1 // pred_check
      _
    $region67: #{dynamics_forward.1} parent=1 // pred_check_branch
      %56 = sbr.rel (0) target = $region69
    $region68: #{dynamics_forward.1} parent=1 // pred_region
      _
    $region69: #{dynamics_forward.1} parent=1 // pred_fallthru
      _
    %v57 = vld [vmem:[%s0] sm:$0xff]
    %v58 = vld [vmem:[%s0 + $0x8] sm:$0xff]
    %v59 = vld [vmem:[%s0 + $0x10] sm:$0xff]
    %v60 = vld [vmem:[%s0 + $0x18] sm:$0xff]
    %v61 = vld [vmem:[%s0 + $0x20] sm:$0xff]
    %v62 = vld [vmem:[%s0 + $0x28] sm:$0xff]
    %v63 = vld [vmem:[%s0 + $0x30] sm:$0xff]
    %v64 = vld [vmem:[%s0 + $0x38] sm:$0xff]
    %v65 = vld [vmem:[%s0 + $0x40] sm:$0xff]
    %v66 = vld [vmem:[%s0 + $0x48] sm:$0xff]
    %v67 = vld [vmem:[%s0 + $0x50] sm:$0xff]
    %v68 = vld [vmem:[%s0 + $0x58] sm:$0xff]
    %v69 = vld [vmem:[%s0 + $0x60] sm:$0x3]
    %v70 = vld [vmem:[%s2] sm:$0xff]
    %v71 = vld [vmem:[%s2 + $0x8] sm:$0xff]
    %v72 = vld [vmem:[%s2 + $0x10] sm:$0xff]
    %v73 = vld [vmem:[%s2 + $0x18] sm:$0xff]
    %v74 = vld [vmem:[%s2 + $0x20] sm:$0xff]
    %v75 = vld [vmem:[%s3] sm:$0x1]
    %v77 = vlaneseq
    %v78 = vshrl.u32 %v77, 7
    %v79 = vsub.s32 0, %v78
    %v80 = vrot.slane %v75, %v79
    %vm82 = vcmask 326656
    %v84 = vsel %vm82, %v57, 0
    %v87 = vsel %vm82, %v58, 0
    %v90 = vsel %vm82, %v59, 0
    %v93 = vsel %vm82, %v60, 0
    %v96 = vsel %vm82, %v61, 0
    %v99 = vsel %vm82, %v62, 0
    %v102 = vsel %vm82, %v63, 0
    %v105 = vsel %vm82, %v64, 0
    %v108 = vsel %vm82, %v65, 0
    %v111 = vsel %vm82, %v66, 0
    %v114 = vsel %vm82, %v67, 0
    %v117 = vsel %vm82, %v68, 0
    %v120 = vsel %vm82, %v69, 0
    %122 = vmatprep.subr.mxu0 0.0
    %123 = vmatpush1.msra.mxu0 %v70
    %124 = vmatprep.subr.mxu0 0.0
    %125 = vmatpush1.msra.mxu0 %v71
    %126 = vmatprep.subr.mxu0 0.0
    %127 = vmatpush1.msra.mxu0 %v72
    %128 = vmatprep.subr.mxu0 0.0
    %129 = vmatpush1.msra.mxu0 %v73
    %130 = vmatprep.subr.mxu0 0.0
    %131 = vmatpush1.msra.mxu0 %v74
    %132 = vmatprep.subr.mxu0 0.0
    %133 = vmatpush1.msra.mxu0 0.0
    %134 = vmatprep.subr.mxu0 0.0
    %135 = vmatpush1.msra.mxu0 0.0
    %136 = vmatprep.subr.mxu0 0.0
    %137 = vmatpush1.msra.mxu0 0.0
    %138 = vmatprep.subr.mxu0 0.0
    %139 = vmatpush1.msra.mxu0 0.0
    %140 = vmatprep.subr.mxu0 0.0
    %141 = vmatpush1.msra.mxu0 0.0
    %142 = vmatprep.subr.mxu0 0.0
    %143 = vmatpush1.msra.mxu0 0.0
    %144 = vmatprep.subr.mxu0 0.0
    %145 = vmatpush1.msra.mxu0 0.0
    %146 = vmatprep.subr.mxu0 0.0
    %147 = vmatpush1.msra.mxu0 0.0
    %148 = vmatprep.subr.mxu0 0.0
    %149 = vmatpush1.msra.mxu0 0.0
    %150 = vmatprep.subr.mxu0 0.0
    %151 = vmatpush1.msra.mxu0 0.0
    %152 = vmatprep.subr.mxu0 0.0
    %153 = vmatpush1.msra.mxu0 0.0
    %154 = vmatprep.subr.mxu0 0.0
    %155 = vmatpush1.msra.mxu0 0.0
    %156 = vmatprep.subr.mxu0 0.0
    %157 = vmatpush1.msra.mxu0 0.0
    %158 = vmatprep.subr.mxu0 0.0
    %159 = vmatpush1.msra.mxu0 0.0
    %160 = vmatprep.subr.mxu0 0.0
    %161 = vmatpush1.msra.mxu0 0.0
    %162 = vmatprep.subr.mxu0 0.0
    %163 = vmatpush1.msra.mxu0 0.0
    %164 = vmatprep.subr.mxu0 0.0
    %165 = vmatpush1.msra.mxu0 0.0
    %166 = vmatprep.subr.mxu0 0.0
    %167 = vmatpush1.msra.mxu0 0.0
    %168 = vmatprep.subr.mxu0 0.0
    %169 = vmatpush1.msra.mxu0 0.0
    %170 = vmatprep.subr.mxu0 0.0
    %171 = vmatpush1.msra.mxu0 0.0
    %172 = vmatprep.subr.mxu0 0.0
    %173 = vmatpush1.msra.mxu0 0.0
    %174 = vmatprep.subr.mxu0 0.0
    %175 = vmatpush1.msra.mxu0 0.0
    %176 = vmatprep.subr.mxu0 0.0
    %177 = vmatpush1.msra.mxu0 0.0
    %178 = vmatprep.subr.mxu0 0.0
    %179 = vmatpush1.msra.mxu0 0.0
    %180 = vmatprep.subr.mxu0 0.0
    %181 = vmatpush1.msra.mxu0 0.0
    %182 = vmatprep.subr.mxu0 0.0
    %183 = vmatpush1.msra.mxu0 0.0
    %184 = vmatprep.subr.mxu0 0.0
    %185 = vmatpush1.msra.mxu0 0.0
    %186 = vmatprep.mubr.f32.mxu0 0.0
    %187 = vmatmul.mubr.f32.gmra.mrb[0].mxu0 %v84
    %v188 = vpop.f32.mrb[0].mxu0
    %v189 = vadd.f32 %v80, %v188
    %v190 = vpop.f32.mrb[0].mxu0
    %191 = vmatprep.mubr.f32.mxu0 0.0
    %192 = vmatmul.mubr.f32.gmra.mrb[0].mxu0 %v87
    %v193 = vpop.f32.mrb[0].mxu0
    %v194 = vadd.f32 %v80, %v193
    %v195 = vpop.f32.mrb[0].mxu0
    %196 = vmatprep.mubr.f32.mxu0 0.0
    %197 = vmatmul.mubr.f32.gmra.mrb[0].mxu0 %v90
    %v198 = vpop.f32.mrb[0].mxu0
    %v199 = vadd.f32 %v80, %v198
    %v200 = vpop.f32.mrb[0].mxu0
    %201 = vmatprep.mubr.f32.mxu0 0.0
    %202 = vmatmul.mubr.f32.gmra.mrb[0].mxu0 %v93
    %v203 = vpop.f32.mrb[0].mxu0
    %v204 = vadd.f32 %v80, %v203
    %v205 = vpop.f32.mrb[0].mxu0
    %206 = vmatprep.mubr.f32.mxu0 0.0
    %207 = vmatmul.mubr.f32.gmra.mrb[0].mxu0 %v96
    %v208 = vpop.f32.mrb[0].mxu0
    %v209 = vadd.f32 %v80, %v208
    %v210 = vpop.f32.mrb[0].mxu0
    %211 = vmatprep.mubr.f32.mxu0 0.0
    %212 = vmatmul.mubr.f32.gmra.mrb[0].mxu0 %v99
    %v213 = vpop.f32.mrb[0].mxu0
    %v214 = vadd.f32 %v80, %v213
    %v215 = vpop.f32.mrb[0].mxu0
    %216 = vmatprep.mubr.f32.mxu0 0.0
    %217 = vmatmul.mubr.f32.gmra.mrb[0].mxu0 %v102
    %v218 = vpop.f32.mrb[0].mxu0
    %v219 = vadd.f32 %v80, %v218
    %v220 = vpop.f32.mrb[0].mxu0
    %221 = vmatprep.mubr.f32.mxu0 0.0
    %222 = vmatmul.mubr.f32.gmra.mrb[0].mxu0 %v105
    %v223 = vpop.f32.mrb[0].mxu0
    %v224 = vadd.f32 %v80, %v223
    %v225 = vpop.f32.mrb[0].mxu0
    %226 = vmatprep.mubr.f32.mxu0 0.0
    %227 = vmatmul.mubr.f32.gmra.mrb[0].mxu0 %v108
    %v228 = vpop.f32.mrb[0].mxu0
    %v229 = vadd.f32 %v80, %v228
    %v230 = vpop.f32.mrb[0].mxu0
    %231 = vmatprep.mubr.f32.mxu0 0.0
    %232 = vmatmul.mubr.f32.gmra.mrb[0].mxu0 %v111
    %v233 = vpop.f32.mrb[0].mxu0
    %v234 = vadd.f32 %v80, %v233
    %v235 = vpop.f32.mrb[0].mxu0
    %236 = vmatprep.mubr.f32.mxu0 0.0
    %237 = vmatmul.mubr.f32.gmra.mrb[0].mxu0 %v114
    %v238 = vpop.f32.mrb[0].mxu0
    %v239 = vadd.f32 %v80, %v238
    %v240 = vpop.f32.mrb[0].mxu0
    %241 = vmatprep.mubr.f32.mxu0 0.0
    %242 = vmatmul.mubr.f32.gmra.mrb[0].mxu0 %v117
    %v243 = vpop.f32.mrb[0].mxu0
    %v244 = vadd.f32 %v80, %v243
    %v245 = vpop.f32.mrb[0].mxu0
    %246 = vmatprep.mubr.f32.mxu0 0.0
    %247 = vmatmul.mubr.f32.gmra.mrb[0].mxu0 %v120
    %v248 = vpop.f32.mrb[0].mxu0
    %v249 = vadd.f32 %v80, %v248
    %v250 = vpop.f32.mrb[0].mxu0
    %251 = vdwg.mxu0
    %v252 = vmax.f32 %v189, 0.0
    %v253 = vmax.f32 %v194, 0.0
    %v254 = vmax.f32 %v199, 0.0
    %v255 = vmax.f32 %v204, 0.0
    %v256 = vmax.f32 %v209, 0.0
    %v257 = vmax.f32 %v214, 0.0
    %v258 = vmax.f32 %v219, 0.0
    %v259 = vmax.f32 %v224, 0.0
    %v260 = vmax.f32 %v229, 0.0
    %v261 = vmax.f32 %v234, 0.0
    %v262 = vmax.f32 %v239, 0.0
    %v263 = vmax.f32 %v244, 0.0
    %v264 = vmax.f32 %v249, 0.0
    %vm265 = vcmask 261120
    %266 = vst.msk [vmem:[#allocation2] sm:$0xff] %vm265, %v252
    %267 = vst.msk [vmem:[#allocation2 + $0x8] sm:$0xff] %vm265, %v253
    %268 = vst.msk [vmem:[#allocation2 + $0x10] sm:$0xff] %vm265, %v254
    %269 = vst.msk [vmem:[#allocation2 + $0x18] sm:$0xff] %vm265, %v255
    %270 = vst.msk [vmem:[#allocation2 + $0x20] sm:$0xff] %vm265, %v256
    %271 = vst.msk [vmem:[#allocation2 + $0x28] sm:$0xff] %vm265, %v257
    %272 = vst.msk [vmem:[#allocation2 + $0x30] sm:$0xff] %vm265, %v258
    %273 = vst.msk [vmem:[#allocation2 + $0x38] sm:$0xff] %vm265, %v259
    %274 = vst.msk [vmem:[#allocation2 + $0x40] sm:$0xff] %vm265, %v260
    %275 = vst.msk [vmem:[#allocation2 + $0x48] sm:$0xff] %vm265, %v261
    %276 = vst.msk [vmem:[#allocation2 + $0x50] sm:$0xff] %vm265, %v262
    %277 = vst.msk [vmem:[#allocation2 + $0x58] sm:$0xff] %vm265, %v263
    %vm278 = vcmask 254976
    %279 = vst.msk [vmem:[#allocation2 + $0x60] sm:$0x3] %vm278, %v264
    %v280 = vld [vmem:[%s5] sm:$0x1]
    %v282 = vlaneseq
    %v283 = vshrl.u32 %v282, 7
    %v284 = vsub.s32 0, %v283
    %v285 = vrot.slane %v280, %v284
    %v287 = vadd.f32 %v285, 0.0
    %v288 = vld [vmem:[#allocation2] sm:$0xff]
    %v289 = vld [vmem:[#allocation2 + $0x8] sm:$0xff]
    %v290 = vld [vmem:[#allocation2 + $0x10] sm:$0xff]
    %v291 = vld [vmem:[#allocation2 + $0x18] sm:$0xff]
    %v292 = vld [vmem:[#allocation2 + $0x20] sm:$0xff]
    %v293 = vld [vmem:[#allocation2 + $0x28] sm:$0xff]
    %v294 = vld [vmem:[#allocation2 + $0x30] sm:$0xff]
    %v295 = vld [vmem:[#allocation2 + $0x38] sm:$0xff]
    %v296 = vld [vmem:[#allocation2 + $0x40] sm:$0x3]
    %v297 = vld [vmem:[%s4] sm:$0xff]
    %v298 = vld [vmem:[%s4 + $0x8] sm:$0xff]
    %v299 = vld [vmem:[%s4 + $0x10] sm:$0xff]
    %v300 = vld [vmem:[%s4 + $0x18] sm:$0xff]
    %v302 = vsel %vm265, %v288, 0
    %v305 = vsel %vm265, %v289, 0
    %v308 = vsel %vm265, %v290, 0
    %v311 = vsel %vm265, %v291, 0
    %v314 = vsel %vm265, %v292, 0
    %v317 = vsel %vm265, %v293, 0
    %v320 = vsel %vm265, %v294, 0
    %v323 = vsel %vm265, %v295, 0
    %v326 = vsel %vm265, %v296, 0
    %328 = vmatprep.subr.mxu0 0.0
    %329 = vmatpush1.msra.mxu0 %v297
    %330 = vmatprep.subr.mxu0 0.0
    %331 = vmatpush1.msra.mxu0 %v298
    %332 = vmatprep.subr.mxu0 0.0
    %333 = vmatpush1.msra.mxu0 %v299
    %334 = vmatprep.subr.mxu0 0.0
    %335 = vmatpush1.msra.mxu0 %v300
    %336 = vmatprep.subr.mxu0 0.0
    %337 = vmatpush1.msra.mxu0 0.0
    %338 = vmatprep.subr.mxu0 0.0
    %339 = vmatpush1.msra.mxu0 0.0
    %340 = vmatprep.subr.mxu0 0.0
    %341 = vmatpush1.msra.mxu0 0.0
    %342 = vmatprep.subr.mxu0 0.0
    %343 = vmatpush1.msra.mxu0 0.0
    %344 = vmatprep.subr.mxu0 0.0
    %345 = vmatpush1.msra.mxu0 0.0
    %346 = vmatprep.subr.mxu0 0.0
    %347 = vmatpush1.msra.mxu0 0.0
    %348 = vmatprep.subr.mxu0 0.0
    %349 = vmatpush1.msra.mxu0 0.0
    %350 = vmatprep.subr.mxu0 0.0
    %351 = vmatpush1.msra.mxu0 0.0
    %352 = vmatprep.subr.mxu0 0.0
    %353 = vmatpush1.msra.mxu0 0.0
    %354 = vmatprep.subr.mxu0 0.0
    %355 = vmatpush1.msra.mxu0 0.0
    %356 = vmatprep.subr.mxu0 0.0
    %357 = vmatpush1.msra.mxu0 0.0
    %358 = vmatprep.subr.mxu0 0.0
    %359 = vmatpush1.msra.mxu0 0.0
    %360 = vmatprep.subr.mxu0 0.0
    %361 = vmatpush1.msra.mxu0 0.0
    %362 = vmatprep.subr.mxu0 0.0
    %363 = vmatpush1.msra.mxu0 0.0
    %364 = vmatprep.subr.mxu0 0.0
    %365 = vmatpush1.msra.mxu0 0.0
    %366 = vmatprep.subr.mxu0 0.0
    %367 = vmatpush1.msra.mxu0 0.0
    %368 = vmatprep.subr.mxu0 0.0
    %369 = vmatpush1.msra.mxu0 0.0
    %370 = vmatprep.subr.mxu0 0.0
    %371 = vmatpush1.msra.mxu0 0.0
    %372 = vmatprep.subr.mxu0 0.0
    %373 = vmatpush1.msra.mxu0 0.0
    %374 = vmatprep.subr.mxu0 0.0
    %375 = vmatpush1.msra.mxu0 0.0
    %376 = vmatprep.subr.mxu0 0.0
    %377 = vmatpush1.msra.mxu0 0.0
    %378 = vmatprep.subr.mxu0 0.0
    %379 = vmatpush1.msra.mxu0 0.0
    %380 = vmatprep.subr.mxu0 0.0
    %381 = vmatpush1.msra.mxu0 0.0
    %382 = vmatprep.subr.mxu0 0.0
    %383 = vmatpush1.msra.mxu0 0.0
    %384 = vmatprep.subr.mxu0 0.0
    %385 = vmatpush1.msra.mxu0 0.0
    %386 = vmatprep.subr.mxu0 0.0
    %387 = vmatpush1.msra.mxu0 0.0
    %388 = vmatprep.subr.mxu0 0.0
    %389 = vmatpush1.msra.mxu0 0.0
    %390 = vmatprep.subr.mxu0 0.0
    %391 = vmatpush1.msra.mxu0 0.0
    %392 = vmatprep.mubr.f32.mxu0 0.0
    %393 = vmatmul.mubr.f32.gmra.mrb[0].mxu0 %v302
    %v394 = vpop.f32.mrb[0].mxu0
    %v395 = vadd.f32 0.0, %v394
    %v396 = vpop.f32.mrb[0].mxu0
    %397 = vmatprep.mubr.f32.mxu0 0.0
    %398 = vmatmul.mubr.f32.gmra.mrb[0].mxu0 %v305
    %v399 = vpop.f32.mrb[0].mxu0
    %v400 = vadd.f32 0.0, %v399
    %v401 = vpop.f32.mrb[0].mxu0
    %402 = vmatprep.mubr.f32.mxu0 0.0
    %403 = vmatmul.mubr.f32.gmra.mrb[0].mxu0 %v308
    %v404 = vpop.f32.mrb[0].mxu0
    %v405 = vadd.f32 0.0, %v404
    %v406 = vpop.f32.mrb[0].mxu0
    %407 = vmatprep.mubr.f32.mxu0 0.0
    %408 = vmatmul.mubr.f32.gmra.mrb[0].mxu0 %v311
    %v409 = vpop.f32.mrb[0].mxu0
    %v410 = vadd.f32 0.0, %v409
    %v411 = vpop.f32.mrb[0].mxu0
    %412 = vmatprep.mubr.f32.mxu0 0.0
    %413 = vmatmul.mubr.f32.gmra.mrb[0].mxu0 %v314
    %v414 = vpop.f32.mrb[0].mxu0
    %v415 = vadd.f32 0.0, %v414
    %v416 = vpop.f32.mrb[0].mxu0
    %417 = vmatprep.mubr.f32.mxu0 0.0
    %418 = vmatmul.mubr.f32.gmra.mrb[0].mxu0 %v317
    %v419 = vpop.f32.mrb[0].mxu0
    %v420 = vadd.f32 0.0, %v419
    %v421 = vpop.f32.mrb[0].mxu0
    %422 = vmatprep.mubr.f32.mxu0 0.0
    %423 = vmatmul.mubr.f32.gmra.mrb[0].mxu0 %v320
    %v424 = vpop.f32.mrb[0].mxu0
    %v425 = vadd.f32 0.0, %v424
    %v426 = vpop.f32.mrb[0].mxu0
    %427 = vmatprep.mubr.f32.mxu0 0.0
    %428 = vmatmul.mubr.f32.gmra.mrb[0].mxu0 %v323
    %v429 = vpop.f32.mrb[0].mxu0
    %v430 = vadd.f32 0.0, %v429
    %v431 = vpop.f32.mrb[0].mxu0
    %432 = vmatprep.mubr.f32.mxu0 0.0
    %433 = vmatmul.mubr.f32.gmra.mrb[0].mxu0 %v326
    %v434 = vpop.f32.mrb[0].mxu0
    %v435 = vadd.f32 0.0, %v434
    %v436 = vpop.f32.mrb[0].mxu0
    %437 = vdwg.mxu0
    %v438 = vadd.f32 %v287, %v395
    %v439 = vadd.f32 %v287, %v400
    %v440 = vadd.f32 %v287, %v405
    %v441 = vadd.f32 %v287, %v410
    %v442 = vadd.f32 %v287, %v415
    %v443 = vadd.f32 %v287, %v420
    %v444 = vadd.f32 %v287, %v425
    %v445 = vadd.f32 %v287, %v430
    %v446 = vadd.f32 %v287, %v435
    %v447 = vld [vmem:[#allocation2 + $0x2] sm:$0xff]
    %v448 = vld [vmem:[#allocation2 + $0xa] sm:$0xff]
    %v449 = vld [vmem:[#allocation2 + $0x12] sm:$0xff]
    %v450 = vld [vmem:[#allocation2 + $0x1a] sm:$0xff]
    %v451 = vld [vmem:[#allocation2 + $0x22] sm:$0xff]
    %v452 = vld [vmem:[#allocation2 + $0x2a] sm:$0xff]
    %v453 = vld [vmem:[#allocation2 + $0x32] sm:$0xff]
    %v454 = vld [vmem:[#allocation2 + $0x3a] sm:$0xff]
    %v455 = vld [vmem:[#allocation2 + $0x42] sm:$0x3]
    %s456 = scalar_lea.vmem %s4, 32
    %v457 = vld [vmem:[%s456] sm:$0xff]
    %v458 = vld [vmem:[%s456 + $0x8] sm:$0xff]
    %v459 = vld [vmem:[%s456 + $0x10] sm:$0xff]
    %v460 = vld [vmem:[%s456 + $0x18] sm:$0xff]
    %v462 = vsel %vm265, %v447, 0
    %v465 = vsel %vm265, %v448, 0
    %v468 = vsel %vm265, %v449, 0
    %v471 = vsel %vm265, %v450, 0
    %v474 = vsel %vm265, %v451, 0
    %v477 = vsel %vm265, %v452, 0
    %v480 = vsel %vm265, %v453, 0
    %v483 = vsel %vm265, %v454, 0
    %v486 = vsel %vm265, %v455, 0
    %488 = vmatprep.subr.mxu0 0.0
    %489 = vmatpush1.msra.mxu0 %v457
    %490 = vmatprep.subr.mxu0 0.0
    %491 = vmatpush1.msra.mxu0 %v458
    %492 = vmatprep.subr.mxu0 0.0
    %493 = vmatpush1.msra.mxu0 %v459
    %494 = vmatprep.subr.mxu0 0.0
    %495 = vmatpush1.msra.mxu0 %v460
    %496 = vmatprep.subr.mxu0 0.0
    %497 = vmatpush1.msra.mxu0 0.0
    %498 = vmatprep.subr.mxu0 0.0
    %499 = vmatpush1.msra.mxu0 0.0
    %500 = vmatprep.subr.mxu0 0.0
    %501 = vmatpush1.msra.mxu0 0.0
    %502 = vmatprep.subr.mxu0 0.0
    %503 = vmatpush1.msra.mxu0 0.0
    %504 = vmatprep.subr.mxu0 0.0
    %505 = vmatpush1.msra.mxu0 0.0
    %506 = vmatprep.subr.mxu0 0.0
    %507 = vmatpush1.msra.mxu0 0.0
    %508 = vmatprep.subr.mxu0 0.0
    %509 = vmatpush1.msra.mxu0 0.0
    %510 = vmatprep.subr.mxu0 0.0
    %511 = vmatpush1.msra.mxu0 0.0
    %512 = vmatprep.subr.mxu0 0.0
    %513 = vmatpush1.msra.mxu0 0.0
    %514 = vmatprep.subr.mxu0 0.0
    %515 = vmatpush1.msra.mxu0 0.0
    %516 = vmatprep.subr.mxu0 0.0
    %517 = vmatpush1.msra.mxu0 0.0
    %518 = vmatprep.subr.mxu0 0.0
    %519 = vmatpush1.msra.mxu0 0.0
    %520 = vmatprep.subr.mxu0 0.0
    %521 = vmatpush1.msra.mxu0 0.0
    %522 = vmatprep.subr.mxu0 0.0
    %523 = vmatpush1.msra.mxu0 0.0
    %524 = vmatprep.subr.mxu0 0.0
    %525 = vmatpush1.msra.mxu0 0.0
    %526 = vmatprep.subr.mxu0 0.0
    %527 = vmatpush1.msra.mxu0 0.0
    %528 = vmatprep.subr.mxu0 0.0
    %529 = vmatpush1.msra.mxu0 0.0
    %530 = vmatprep.subr.mxu0 0.0
    %531 = vmatpush1.msra.mxu0 0.0
    %532 = vmatprep.subr.mxu0 0.0
    %533 = vmatpush1.msra.mxu0 0.0
    %534 = vmatprep.subr.mxu0 0.0
    %535 = vmatpush1.msra.mxu0 0.0
    %536 = vmatprep.subr.mxu0 0.0
    %537 = vmatpush1.msra.mxu0 0.0
    %538 = vmatprep.subr.mxu0 0.0
    %539 = vmatpush1.msra.mxu0 0.0
    %540 = vmatprep.subr.mxu0 0.0
    %541 = vmatpush1.msra.mxu0 0.0
    %542 = vmatprep.subr.mxu0 0.0
    %543 = vmatpush1.msra.mxu0 0.0
    %544 = vmatprep.subr.mxu0 0.0
    %545 = vmatpush1.msra.mxu0 0.0
    %546 = vmatprep.subr.mxu0 0.0
    %547 = vmatpush1.msra.mxu0 0.0
    %548 = vmatprep.subr.mxu0 0.0
    %549 = vmatpush1.msra.mxu0 0.0
    %550 = vmatprep.subr.mxu0 0.0
    %551 = vmatpush1.msra.mxu0 0.0
    %552 = vmatprep.mubr.f32.mxu0 0.0
    %553 = vmatmul.mubr.f32.gmra.mrb[0].mxu0 %v462
    %v554 = vpop.f32.mrb[0].mxu0
    %v555 = vadd.f32 0.0, %v554
    %v556 = vpop.f32.mrb[0].mxu0
    %557 = vmatprep.mubr.f32.mxu0 0.0
    %558 = vmatmul.mubr.f32.gmra.mrb[0].mxu0 %v465
    %v559 = vpop.f32.mrb[0].mxu0
    %v560 = vadd.f32 0.0, %v559
    %v561 = vpop.f32.mrb[0].mxu0
    %562 = vmatprep.mubr.f32.mxu0 0.0
    %563 = vmatmul.mubr.f32.gmra.mrb[0].mxu0 %v468
    %v564 = vpop.f32.mrb[0].mxu0
    %v565 = vadd.f32 0.0, %v564
    %v566 = vpop.f32.mrb[0].mxu0
    %567 = vmatprep.mubr.f32.mxu0 0.0
    %568 = vmatmul.mubr.f32.gmra.mrb[0].mxu0 %v471
    %v569 = vpop.f32.mrb[0].mxu0
    %v570 = vadd.f32 0.0, %v569
    %v571 = vpop.f32.mrb[0].mxu0
    %572 = vmatprep.mubr.f32.mxu0 0.0
    %573 = vmatmul.mubr.f32.gmra.mrb[0].mxu0 %v474
    %v574 = vpop.f32.mrb[0].mxu0
    %v575 = vadd.f32 0.0, %v574
    %v576 = vpop.f32.mrb[0].mxu0
    %577 = vmatprep.mubr.f32.mxu0 0.0
    %578 = vmatmul.mubr.f32.gmra.mrb[0].mxu0 %v477
    %v579 = vpop.f32.mrb[0].mxu0
    %v580 = vadd.f32 0.0, %v579
    %v581 = vpop.f32.mrb[0].mxu0
    %582 = vmatprep.mubr.f32.mxu0 0.0
    %583 = vmatmul.mubr.f32.gmra.mrb[0].mxu0 %v480
    %v584 = vpop.f32.mrb[0].mxu0
    %v585 = vadd.f32 0.0, %v584
    %v586 = vpop.f32.mrb[0].mxu0
    %587 = vmatprep.mubr.f32.mxu0 0.0
    %588 = vmatmul.mubr.f32.gmra.mrb[0].mxu0 %v483
    %v589 = vpop.f32.mrb[0].mxu0
    %v590 = vadd.f32 0.0, %v589
    %v591 = vpop.f32.mrb[0].mxu0
    %592 = vmatprep.mubr.f32.mxu0 0.0
    %593 = vmatmul.mubr.f32.gmra.mrb[0].mxu0 %v486
    %v594 = vpop.f32.mrb[0].mxu0
    %v595 = vadd.f32 0.0, %v594
    %v596 = vpop.f32.mrb[0].mxu0
    %597 = vdwg.mxu0
    %v598 = vadd.f32 %v438, %v555
    %v599 = vadd.f32 %v439, %v560
    %v600 = vadd.f32 %v440, %v565
    %v601 = vadd.f32 %v441, %v570
    %v602 = vadd.f32 %v442, %v575
    %v603 = vadd.f32 %v443, %v580
    %v604 = vadd.f32 %v444, %v585
    %v605 = vadd.f32 %v445, %v590
    %v606 = vadd.f32 %v446, %v595
    %v607 = vld [vmem:[#allocation2 + $0x4] sm:$0xff]
    %v608 = vld [vmem:[#allocation2 + $0xc] sm:$0xff]
    %v609 = vld [vmem:[#allocation2 + $0x14] sm:$0xff]
    %v610 = vld [vmem:[#allocation2 + $0x1c] sm:$0xff]
    %v611 = vld [vmem:[#allocation2 + $0x24] sm:$0xff]
    %v612 = vld [vmem:[#allocation2 + $0x2c] sm:$0xff]
    %v613 = vld [vmem:[#allocation2 + $0x34] sm:$0xff]
    %v614 = vld [vmem:[#allocation2 + $0x3c] sm:$0xff]
    %v615 = vld [vmem:[#allocation2 + $0x44] sm:$0x3]
    %s616 = scalar_lea.vmem %s4, 64
    %v617 = vld [vmem:[%s616] sm:$0xff]
    %v618 = vld [vmem:[%s616 + $0x8] sm:$0xff]
    %v619 = vld [vmem:[%s616 + $0x10] sm:$0xff]
    %v620 = vld [vmem:[%s616 + $0x18] sm:$0xff]
    %v622 = vsel %vm265, %v607, 0
    %v625 = vsel %vm265, %v608, 0
    %v628 = vsel %vm265, %v609, 0
    %v631 = vsel %vm265, %v610, 0
    %v634 = vsel %vm265, %v611, 0
    %v637 = vsel %vm265, %v612, 0
    %v640 = vsel %vm265, %v613, 0
    %v643 = vsel %vm265, %v614, 0
    %v646 = vsel %vm265, %v615, 0
    %648 = vmatprep.subr.mxu0 0.0
    %649 = vmatpush1.msra.mxu0 %v617
    %650 = vmatprep.subr.mxu0 0.0
    %651 = vmatpush1.msra.mxu0 %v618
    %652 = vmatprep.subr.mxu0 0.0
    %653 = vmatpush1.msra.mxu0 %v619
    %654 = vmatprep.subr.mxu0 0.0
    %655 = vmatpush1.msra.mxu0 %v620
    %656 = vmatprep.subr.mxu0 0.0
    %657 = vmatpush1.msra.mxu0 0.0
    %658 = vmatprep.subr.mxu0 0.0
    %659 = vmatpush1.msra.mxu0 0.0
    %660 = vmatprep.subr.mxu0 0.0
    %661 = vmatpush1.msra.mxu0 0.0
    %662 = vmatprep.subr.mxu0 0.0
    %663 = vmatpush1.msra.mxu0 0.0
    %664 = vmatprep.subr.mxu0 0.0
    %665 = vmatpush1.msra.mxu0 0.0
    %666 = vmatprep.subr.mxu0 0.0
    %667 = vmatpush1.msra.mxu0 0.0
    %668 = vmatprep.subr.mxu0 0.0
    %669 = vmatpush1.msra.mxu0 0.0
    %670 = vmatprep.subr.mxu0 0.0
    %671 = vmatpush1.msra.mxu0 0.0
    %672 = vmatprep.subr.mxu0 0.0
    %673 = vmatpush1.msra.mxu0 0.0
    %674 = vmatprep.subr.mxu0 0.0
    %675 = vmatpush1.msra.mxu0 0.0
    %676 = vmatprep.subr.mxu0 0.0
    %677 = vmatpush1.msra.mxu0 0.0
    %678 = vmatprep.subr.mxu0 0.0
    %679 = vmatpush1.msra.mxu0 0.0
    %680 = vmatprep.subr.mxu0 0.0
    %681 = vmatpush1.msra.mxu0 0.0
    %682 = vmatprep.subr.mxu0 0.0
    %683 = vmatpush1.msra.mxu0 0.0
    %684 = vmatprep.subr.mxu0 0.0
    %685 = vmatpush1.msra.mxu0 0.0
    %686 = vmatprep.subr.mxu0 0.0
    %687 = vmatpush1.msra.mxu0 0.0
    %688 = vmatprep.subr.mxu0 0.0
    %689 = vmatpush1.msra.mxu0 0.0
    %690 = vmatprep.subr.mxu0 0.0
    %691 = vmatpush1.msra.mxu0 0.0
    %692 = vmatprep.subr.mxu0 0.0
    %693 = vmatpush1.msra.mxu0 0.0
    %694 = vmatprep.subr.mxu0 0.0
    %695 = vmatpush1.msra.mxu0 0.0
    %696 = vmatprep.subr.mxu0 0.0
    %697 = vmatpush1.msra.mxu0 0.0
    %698 = vmatprep.subr.mxu0 0.0
    %699 = vmatpush1.msra.mxu0 0.0
    %700 = vmatprep.subr.mxu0 0.0
    %701 = vmatpush1.msra.mxu0 0.0
    %702 = vmatprep.subr.mxu0 0.0
    %703 = vmatpush1.msra.mxu0 0.0
    %704 = vmatprep.subr.mxu0 0.0
    %705 = vmatpush1.msra.mxu0 0.0
    %706 = vmatprep.subr.mxu0 0.0
    %707 = vmatpush1.msra.mxu0 0.0
    %708 = vmatprep.subr.mxu0 0.0
    %709 = vmatpush1.msra.mxu0 0.0
    %710 = vmatprep.subr.mxu0 0.0
    %711 = vmatpush1.msra.mxu0 0.0
    %712 = vmatprep.mubr.f32.mxu0 0.0
    %713 = vmatmul.mubr.f32.gmra.mrb[0].mxu0 %v622
    %v714 = vpop.f32.mrb[0].mxu0
    %v715 = vadd.f32 0.0, %v714
    %v716 = vpop.f32.mrb[0].mxu0
    %717 = vmatprep.mubr.f32.mxu0 0.0
    %718 = vmatmul.mubr.f32.gmra.mrb[0].mxu0 %v625
    %v719 = vpop.f32.mrb[0].mxu0
    %v720 = vadd.f32 0.0, %v719
    %v721 = vpop.f32.mrb[0].mxu0
    %722 = vmatprep.mubr.f32.mxu0 0.0
    %723 = vmatmul.mubr.f32.gmra.mrb[0].mxu0 %v628
    %v724 = vpop.f32.mrb[0].mxu0
    %v725 = vadd.f32 0.0, %v724
    %v726 = vpop.f32.mrb[0].mxu0
    %727 = vmatprep.mubr.f32.mxu0 0.0
    %728 = vmatmul.mubr.f32.gmra.mrb[0].mxu0 %v631
    %v729 = vpop.f32.mrb[0].mxu0
    %v730 = vadd.f32 0.0, %v729
    %v731 = vpop.f32.mrb[0].mxu0
    %732 = vmatprep.mubr.f32.mxu0 0.0
    %733 = vmatmul.mubr.f32.gmra.mrb[0].mxu0 %v634
    %v734 = vpop.f32.mrb[0].mxu0
    %v735 = vadd.f32 0.0, %v734
    %v736 = vpop.f32.mrb[0].mxu0
    %737 = vmatprep.mubr.f32.mxu0 0.0
    %738 = vmatmul.mubr.f32.gmra.mrb[0].mxu0 %v637
    %v739 = vpop.f32.mrb[0].mxu0
    %v740 = vadd.f32 0.0, %v739
    %v741 = vpop.f32.mrb[0].mxu0
    %742 = vmatprep.mubr.f32.mxu0 0.0
    %743 = vmatmul.mubr.f32.gmra.mrb[0].mxu0 %v640
    %v744 = vpop.f32.mrb[0].mxu0
    %v745 = vadd.f32 0.0, %v744
    %v746 = vpop.f32.mrb[0].mxu0
    %747 = vmatprep.mubr.f32.mxu0 0.0
    %748 = vmatmul.mubr.f32.gmra.mrb[0].mxu0 %v643
    %v749 = vpop.f32.mrb[0].mxu0
    %v750 = vadd.f32 0.0, %v749
    %v751 = vpop.f32.mrb[0].mxu0
    %752 = vmatprep.mubr.f32.mxu0 0.0
    %753 = vmatmul.mubr.f32.gmra.mrb[0].mxu0 %v646
    %v754 = vpop.f32.mrb[0].mxu0
    %v755 = vadd.f32 0.0, %v754
    %v756 = vpop.f32.mrb[0].mxu0
    %757 = vdwg.mxu0
    %v758 = vadd.f32 %v598, %v715
    %v759 = vadd.f32 %v599, %v720
    %v760 = vadd.f32 %v600, %v725
    %v761 = vadd.f32 %v601, %v730
    %v762 = vadd.f32 %v602, %v735
    %v763 = vadd.f32 %v603, %v740
    %v764 = vadd.f32 %v604, %v745
    %v765 = vadd.f32 %v605, %v750
    %v766 = vadd.f32 %v606, %v755
    %v767 = vld [vmem:[#allocation2 + $0xe] sm:$0xff]
    %v768 = vld [vmem:[#allocation2 + $0x16] sm:$0xff]
    %v769 = vld [vmem:[#allocation2 + $0x1e] sm:$0xff]
    %v770 = vld [vmem:[#allocation2 + $0x26] sm:$0xff]
    %v771 = vld [vmem:[#allocation2 + $0x2e] sm:$0xff]
    %v772 = vld [vmem:[#allocation2 + $0x36] sm:$0xff]
    %v773 = vld [vmem:[#allocation2 + $0x3e] sm:$0xff]
    %v774 = vld [vmem:[#allocation2 + $0x46] sm:$0xff]
    %v775 = vld [vmem:[#allocation2 + $0x4e] sm:$0x3]
    %s776 = scalar_lea.vmem %s4, 96
    %v777 = vld [vmem:[%s776] sm:$0xff]
    %v778 = vld [vmem:[%s776 + $0x8] sm:$0xff]
    %v779 = vld [vmem:[%s776 + $0x10] sm:$0xff]
    %v780 = vld [vmem:[%s776 + $0x18] sm:$0xff]
    %v782 = vsel %vm265, %v767, 0
    %v785 = vsel %vm265, %v768, 0
    %v788 = vsel %vm265, %v769, 0
    %v791 = vsel %vm265, %v770, 0
    %v794 = vsel %vm265, %v771, 0
    %v797 = vsel %vm265, %v772, 0
    %v800 = vsel %vm265, %v773, 0
    %v803 = vsel %vm265, %v774, 0
    %v806 = vsel %vm265, %v775, 0
    %808 = vmatprep.subr.mxu0 0.0
    %809 = vmatpush1.msra.mxu0 %v777
    %810 = vmatprep.subr.mxu0 0.0
    %811 = vmatpush1.msra.mxu0 %v778
    %812 = vmatprep.subr.mxu0 0.0
    %813 = vmatpush1.msra.mxu0 %v779
    %814 = vmatprep.subr.mxu0 0.0
    %815 = vmatpush1.msra.mxu0 %v780
    %816 = vmatprep.subr.mxu0 0.0
    %817 = vmatpush1.msra.mxu0 0.0
    %818 = vmatprep.subr.mxu0 0.0
    %819 = vmatpush1.msra.mxu0 0.0
    %820 = vmatprep.subr.mxu0 0.0
    %821 = vmatpush1.msra.mxu0 0.0
    %822 = vmatprep.subr.mxu0 0.0
    %823 = vmatpush1.msra.mxu0 0.0
    %824 = vmatprep.subr.mxu0 0.0
    %825 = vmatpush1.msra.mxu0 0.0
    %826 = vmatprep.subr.mxu0 0.0
    %827 = vmatpush1.msra.mxu0 0.0
    %828 = vmatprep.subr.mxu0 0.0
    %829 = vmatpush1.msra.mxu0 0.0
    %830 = vmatprep.subr.mxu0 0.0
    %831 = vmatpush1.msra.mxu0 0.0
    %832 = vmatprep.subr.mxu0 0.0
    %833 = vmatpush1.msra.mxu0 0.0
    %834 = vmatprep.subr.mxu0 0.0
    %835 = vmatpush1.msra.mxu0 0.0
    %836 = vmatprep.subr.mxu0 0.0
    %837 = vmatpush1.msra.mxu0 0.0
    %838 = vmatprep.subr.mxu0 0.0
    %839 = vmatpush1.msra.mxu0 0.0
    %840 = vmatprep.subr.mxu0 0.0
    %841 = vmatpush1.msra.mxu0 0.0
    %842 = vmatprep.subr.mxu0 0.0
    %843 = vmatpush1.msra.mxu0 0.0
    %844 = vmatprep.subr.mxu0 0.0
    %845 = vmatpush1.msra.mxu0 0.0
    %846 = vmatprep.subr.mxu0 0.0
    %847 = vmatpush1.msra.mxu0 0.0
    %848 = vmatprep.subr.mxu0 0.0
    %849 = vmatpush1.msra.mxu0 0.0
    %850 = vmatprep.subr.mxu0 0.0
    %851 = vmatpush1.msra.mxu0 0.0
    %852 = vmatprep.subr.mxu0 0.0
    %853 = vmatpush1.msra.mxu0 0.0
    %854 = vmatprep.subr.mxu0 0.0
    %855 = vmatpush1.msra.mxu0 0.0
    %856 = vmatprep.subr.mxu0 0.0
    %857 = vmatpush1.msra.mxu0 0.0
    %858 = vmatprep.subr.mxu0 0.0
    %859 = vmatpush1.msra.mxu0 0.0
    %860 = vmatprep.subr.mxu0 0.0
    %861 = vmatpush1.msra.mxu0 0.0
    %862 = vmatprep.subr.mxu0 0.0
    %863 = vmatpush1.msra.mxu0 0.0
    %864 = vmatprep.subr.mxu0 0.0
    %865 = vmatpush1.msra.mxu0 0.0
    %866 = vmatprep.subr.mxu0 0.0
    %867 = vmatpush1.msra.mxu0 0.0
    %868 = vmatprep.subr.mxu0 0.0
    %869 = vmatpush1.msra.mxu0 0.0
    %870 = vmatprep.subr.mxu0 0.0
    %871 = vmatpush1.msra.mxu0 0.0
    %872 = vmatprep.mubr.f32.mxu0 0.0
    %873 = vmatmul.mubr.f32.gmra.mrb[0].mxu0 %v782
    %v874 = vpop.f32.mrb[0].mxu0
    %v875 = vadd.f32 0.0, %v874
    %v876 = vpop.f32.mrb[0].mxu0
    %877 = vmatprep.mubr.f32.mxu0 0.0
    %878 = vmatmul.mubr.f32.gmra.mrb[0].mxu0 %v785
    %v879 = vpop.f32.mrb[0].mxu0
    %v880 = vadd.f32 0.0, %v879
    %v881 = vpop.f32.mrb[0].mxu0
    %882 = vmatprep.mubr.f32.mxu0 0.0
    %883 = vmatmul.mubr.f32.gmra.mrb[0].mxu0 %v788
    %v884 = vpop.f32.mrb[0].mxu0
    %v885 = vadd.f32 0.0, %v884
    %v886 = vpop.f32.mrb[0].mxu0
    %887 = vmatprep.mubr.f32.mxu0 0.0
    %888 = vmatmul.mubr.f32.gmra.mrb[0].mxu0 %v791
    %v889 = vpop.f32.mrb[0].mxu0
    %v890 = vadd.f32 0.0, %v889
    %v891 = vpop.f32.mrb[0].mxu0
    %892 = vmatprep.mubr.f32.mxu0 0.0
    %893 = vmatmul.mubr.f32.gmra.mrb[0].mxu0 %v794
    %v894 = vpop.f32.mrb[0].mxu0
    %v895 = vadd.f32 0.0, %v894
    %v896 = vpop.f32.mrb[0].mxu0
    %897 = vmatprep.mubr.f32.mxu0 0.0
    %898 = vmatmul.mubr.f32.gmra.mrb[0].mxu0 %v797
    %v899 = vpop.f32.mrb[0].mxu0
    %v900 = vadd.f32 0.0, %v899
    %v901 = vpop.f32.mrb[0].mxu0
    %902 = vmatprep.mubr.f32.mxu0 0.0
    %903 = vmatmul.mubr.f32.gmra.mrb[0].mxu0 %v800
    %v904 = vpop.f32.mrb[0].mxu0
    %v905 = vadd.f32 0.0, %v904
    %v906 = vpop.f32.mrb[0].mxu0
    %907 = vmatprep.mubr.f32.mxu0 0.0
    %908 = vmatmul.mubr.f32.gmra.mrb[0].mxu0 %v803
    %v909 = vpop.f32.mrb[0].mxu0
    %v910 = vadd.f32 0.0, %v909
    %v911 = vpop.f32.mrb[0].mxu0
    %912 = vmatprep.mubr.f32.mxu0 0.0
    %913 = vmatmul.mubr.f32.gmra.mrb[0].mxu0 %v806
    %v914 = vpop.f32.mrb[0].mxu0
    %v915 = vadd.f32 0.0, %v914
    %v916 = vpop.f32.mrb[0].mxu0
    %917 = vdwg.mxu0
    %v918 = vadd.f32 %v758, %v875
    %v919 = vadd.f32 %v759, %v880
    %v920 = vadd.f32 %v760, %v885
    %v921 = vadd.f32 %v761, %v890
    %v922 = vadd.f32 %v762, %v895
    %v923 = vadd.f32 %v763, %v900
    %v924 = vadd.f32 %v764, %v905
    %v925 = vadd.f32 %v765, %v910
    %v926 = vadd.f32 %v766, %v915
    %v927 = vld [vmem:[#allocation2 + $0x10] sm:$0xff]
    %v928 = vld [vmem:[#allocation2 + $0x18] sm:$0xff]
    %v929 = vld [vmem:[#allocation2 + $0x20] sm:$0xff]
    %v930 = vld [vmem:[#allocation2 + $0x28] sm:$0xff]
    %v931 = vld [vmem:[#allocation2 + $0x30] sm:$0xff]
    %v932 = vld [vmem:[#allocation2 + $0x38] sm:$0xff]
    %v933 = vld [vmem:[#allocation2 + $0x40] sm:$0xff]
    %v934 = vld [vmem:[#allocation2 + $0x48] sm:$0xff]
    %v935 = vld [vmem:[#allocation2 + $0x50] sm:$0x3]
    %s936 = scalar_lea.vmem %s4, 128
    %v937 = vld [vmem:[%s936] sm:$0xff]
    %v938 = vld [vmem:[%s936 + $0x8] sm:$0xff]
    %v939 = vld [vmem:[%s936 + $0x10] sm:$0xff]
    %v940 = vld [vmem:[%s936 + $0x18] sm:$0xff]
    %v942 = vsel %vm265, %v927, 0
    %v945 = vsel %vm265, %v928, 0
    %v948 = vsel %vm265, %v929, 0
    %v951 = vsel %vm265, %v930, 0
    %v954 = vsel %vm265, %v931, 0
    %v957 = vsel %vm265, %v932, 0
    %v960 = vsel %vm265, %v933, 0
    %v963 = vsel %vm265, %v934, 0
    %v966 = vsel %vm265, %v935, 0
    %968 = vmatprep.subr.mxu0 0.0
    %969 = vmatpush1.msra.mxu0 %v937
    %970 = vmatprep.subr.mxu0 0.0
    %971 = vmatpush1.msra.mxu0 %v938
    %972 = vmatprep.subr.mxu0 0.0
    %973 = vmatpush1.msra.mxu0 %v939
    %974 = vmatprep.subr.mxu0 0.0
    %975 = vmatpush1.msra.mxu0 %v940
    %976 = vmatprep.subr.mxu0 0.0
    %977 = vmatpush1.msra.mxu0 0.0
    %978 = vmatprep.subr.mxu0 0.0
    %979 = vmatpush1.msra.mxu0 0.0
    %980 = vmatprep.subr.mxu0 0.0
    %981 = vmatpush1.msra.mxu0 0.0
    %982 = vmatprep.subr.mxu0 0.0
    %983 = vmatpush1.msra.mxu0 0.0
    %984 = vmatprep.subr.mxu0 0.0
    %985 = vmatpush1.msra.mxu0 0.0
    %986 = vmatprep.subr.mxu0 0.0
    %987 = vmatpush1.msra.mxu0 0.0
    %988 = vmatprep.subr.mxu0 0.0
    %989 = vmatpush1.msra.mxu0 0.0
    %990 = vmatprep.subr.mxu0 0.0
    %991 = vmatpush1.msra.mxu0 0.0
    %992 = vmatprep.subr.mxu0 0.0
    %993 = vmatpush1.msra.mxu0 0.0
    %994 = vmatprep.subr.mxu0 0.0
    %995 = vmatpush1.msra.mxu0 0.0
    %996 = vmatprep.subr.mxu0 0.0
    %997 = vmatpush1.msra.mxu0 0.0
    %998 = vmatprep.subr.mxu0 0.0
    %999 = vmatpush1.msra.mxu0 0.0
    %1000 = vmatprep.subr.mxu0 0.0
    %1001 = vmatpush1.msra.mxu0 0.0
    %1002 = vmatprep.subr.mxu0 0.0
    %1003 = vmatpush1.msra.mxu0 0.0
    %1004 = vmatprep.subr.mxu0 0.0
    %1005 = vmatpush1.msra.mxu0 0.0
    %1006 = vmatprep.subr.mxu0 0.0
    %1007 = vmatpush1.msra.mxu0 0.0
    %1008 = vmatprep.subr.mxu0 0.0
    %1009 = vmatpush1.msra.mxu0 0.0
    %1010 = vmatprep.subr.mxu0 0.0
    %1011 = vmatpush1.msra.mxu0 0.0
    %1012 = vmatprep.subr.mxu0 0.0
    %1013 = vmatpush1.msra.mxu0 0.0
    %1014 = vmatprep.subr.mxu0 0.0
    %1015 = vmatpush1.msra.mxu0 0.0
    %1016 = vmatprep.subr.mxu0 0.0
    %1017 = vmatpush1.msra.mxu0 0.0
    %1018 = vmatprep.subr.mxu0 0.0
    %1019 = vmatpush1.msra.mxu0 0.0
    %1020 = vmatprep.subr.mxu0 0.0
    %1021 = vmatpush1.msra.mxu0 0.0
    %1022 = vmatprep.subr.mxu0 0.0
    %1023 = vmatpush1.msra.mxu0 0.0
    %1024 = vmatprep.subr.mxu0 0.0
    %1025 = vmatpush1.msra.mxu0 0.0
    %1026 = vmatprep.subr.mxu0 0.0
    %1027 = vmatpush1.msra.mxu0 0.0
    %1028 = vmatprep.subr.mxu0 0.0
    %1029 = vmatpush1.msra.mxu0 0.0
    %1030 = vmatprep.subr.mxu0 0.0
    %1031 = vmatpush1.msra.mxu0 0.0
    %1032 = vmatprep.mubr.f32.mxu0 0.0
    %1033 = vmatmul.mubr.f32.gmra.mrb[0].mxu0 %v942
    %v1034 = vpop.f32.mrb[0].mxu0
    %v1035 = vadd.f32 0.0, %v1034
    %v1036 = vpop.f32.mrb[0].mxu0
    %1037 = vmatprep.mubr.f32.mxu0 0.0
    %1038 = vmatmul.mubr.f32.gmra.mrb[0].mxu0 %v945
    %v1039 = vpop.f32.mrb[0].mxu0
    %v1040 = vadd.f32 0.0, %v1039
    %v1041 = vpop.f32.mrb[0].mxu0
    %1042 = vmatprep.mubr.f32.mxu0 0.0
    %1043 = vmatmul.mubr.f32.gmra.mrb[0].mxu0 %v948
    %v1044 = vpop.f32.mrb[0].mxu0
    %v1045 = vadd.f32 0.0, %v1044
    %v1046 = vpop.f32.mrb[0].mxu0
    %1047 = vmatprep.mubr.f32.mxu0 0.0
    %1048 = vmatmul.mubr.f32.gmra.mrb[0].mxu0 %v951
    %v1049 = vpop.f32.mrb[0].mxu0
    %v1050 = vadd.f32 0.0, %v1049
    %v1051 = vpop.f32.mrb[0].mxu0
    %1052 = vmatprep.mubr.f32.mxu0 0.0
    %1053 = vmatmul.mubr.f32.gmra.mrb[0].mxu0 %v954
    %v1054 = vpop.f32.mrb[0].mxu0
    %v1055 = vadd.f32 0.0, %v1054
    %v1056 = vpop.f32.mrb[0].mxu0
    %1057 = vmatprep.mubr.f32.mxu0 0.0
    %1058 = vmatmul.mubr.f32.gmra.mrb[0].mxu0 %v957
    %v1059 = vpop.f32.mrb[0].mxu0
    %v1060 = vadd.f32 0.0, %v1059
    %v1061 = vpop.f32.mrb[0].mxu0
    %1062 = vmatprep.mubr.f32.mxu0 0.0
    %1063 = vmatmul.mubr.f32.gmra.mrb[0].mxu0 %v960
    %v1064 = vpop.f32.mrb[0].mxu0
    %v1065 = vadd.f32 0.0, %v1064
    %v1066 = vpop.f32.mrb[0].mxu0
    %1067 = vmatprep.mubr.f32.mxu0 0.0
    %1068 = vmatmul.mubr.f32.gmra.mrb[0].mxu0 %v963
    %v1069 = vpop.f32.mrb[0].mxu0
    %v1070 = vadd.f32 0.0, %v1069
    %v1071 = vpop.f32.mrb[0].mxu0
    %1072 = vmatprep.mubr.f32.mxu0 0.0
    %1073 = vmatmul.mubr.f32.gmra.mrb[0].mxu0 %v966
    %v1074 = vpop.f32.mrb[0].mxu0
    %v1075 = vadd.f32 0.0, %v1074
    %v1076 = vpop.f32.mrb[0].mxu0
    %1077 = vdwg.mxu0
    %v1078 = vadd.f32 %v918, %v1035
    %v1079 = vadd.f32 %v919, %v1040
    %v1080 = vadd.f32 %v920, %v1045
    %v1081 = vadd.f32 %v921, %v1050
    %v1082 = vadd.f32 %v922, %v1055
    %v1083 = vadd.f32 %v923, %v1060
    %v1084 = vadd.f32 %v924, %v1065
    %v1085 = vadd.f32 %v925, %v1070
    %v1086 = vadd.f32 %v926, %v1075
    %v1087 = vld [vmem:[#allocation2 + $0x12] sm:$0xff]
    %v1088 = vld [vmem:[#allocation2 + $0x1a] sm:$0xff]
    %v1089 = vld [vmem:[#allocation2 + $0x22] sm:$0xff]
    %v1090 = vld [vmem:[#allocation2 + $0x2a] sm:$0xff]
    %v1091 = vld [vmem:[#allocation2 + $0x32] sm:$0xff]
    %v1092 = vld [vmem:[#allocation2 + $0x3a] sm:$0xff]
    %v1093 = vld [vmem:[#allocation2 + $0x42] sm:$0xff]
    %v1094 = vld [vmem:[#allocation2 + $0x4a] sm:$0xff]
    %v1095 = vld [vmem:[#allocation2 + $0x52] sm:$0x3]
    %s1096 = scalar_lea.vmem %s4, 160
    %v1097 = vld [vmem:[%s1096] sm:$0xff]
    %v1098 = vld [vmem:[%s1096 + $0x8] sm:$0xff]
    %v1099 = vld [vmem:[%s1096 + $0x10] sm:$0xff]
    %v1100 = vld [vmem:[%s1096 + $0x18] sm:$0xff]
    %v1102 = vsel %vm265, %v1087, 0
    %v1105 = vsel %vm265, %v1088, 0
    %v1108 = vsel %vm265, %v1089, 0
    %v1111 = vsel %vm265, %v1090, 0
    %v1114 = vsel %vm265, %v1091, 0
    %v1117 = vsel %vm265, %v1092, 0
    %v1120 = vsel %vm265, %v1093, 0
    %v1123 = vsel %vm265, %v1094, 0
    %v1126 = vsel %vm265, %v1095, 0
    %1128 = vmatprep.subr.mxu0 0.0
    %1129 = vmatpush1.msra.mxu0 %v1097
    %1130 = vmatprep.subr.mxu0 0.0
    %1131 = vmatpush1.msra.mxu0 %v1098
    %1132 = vmatprep.subr.mxu0 0.0
    %1133 = vmatpush1.msra.mxu0 %v1099
    %1134 = vmatprep.subr.mxu0 0.0
    %1135 = vmatpush1.msra.mxu0 %v1100
    %1136 = vmatprep.subr.mxu0 0.0
    %1137 = vmatpush1.msra.mxu0 0.0
    %1138 = vmatprep.subr.mxu0 0.0
    %1139 = vmatpush1.msra.mxu0 0.0
    %1140 = vmatprep.subr.mxu0 0.0
    %1141 = vmatpush1.msra.mxu0 0.0
    %1142 = vmatprep.subr.mxu0 0.0
    %1143 = vmatpush1.msra.mxu0 0.0
    %1144 = vmatprep.subr.mxu0 0.0
    %1145 = vmatpush1.msra.mxu0 0.0
    %1146 = vmatprep.subr.mxu0 0.0
    %1147 = vmatpush1.msra.mxu0 0.0
    %1148 = vmatprep.subr.mxu0 0.0
    %1149 = vmatpush1.msra.mxu0 0.0
    %1150 = vmatprep.subr.mxu0 0.0
    %1151 = vmatpush1.msra.mxu0 0.0
    %1152 = vmatprep.subr.mxu0 0.0
    %1153 = vmatpush1.msra.mxu0 0.0
    %1154 = vmatprep.subr.mxu0 0.0
    %1155 = vmatpush1.msra.mxu0 0.0
    %1156 = vmatprep.subr.mxu0 0.0
    %1157 = vmatpush1.msra.mxu0 0.0
    %1158 = vmatprep.subr.mxu0 0.0
    %1159 = vmatpush1.msra.mxu0 0.0
    %1160 = vmatprep.subr.mxu0 0.0
    %1161 = vmatpush1.msra.mxu0 0.0
    %1162 = vmatprep.subr.mxu0 0.0
    %1163 = vmatpush1.msra.mxu0 0.0
    %1164 = vmatprep.subr.mxu0 0.0
    %1165 = vmatpush1.msra.mxu0 0.0
    %1166 = vmatprep.subr.mxu0 0.0
    %1167 = vmatpush1.msra.mxu0 0.0
    %1168 = vmatprep.subr.mxu0 0.0
    %1169 = vmatpush1.msra.mxu0 0.0
    %1170 = vmatprep.subr.mxu0 0.0
    %1171 = vmatpush1.msra.mxu0 0.0
    %1172 = vmatprep.subr.mxu0 0.0
    %1173 = vmatpush1.msra.mxu0 0.0
    %1174 = vmatprep.subr.mxu0 0.0
    %1175 = vmatpush1.msra.mxu0 0.0
    %1176 = vmatprep.subr.mxu0 0.0
    %1177 = vmatpush1.msra.mxu0 0.0
    %1178 = vmatprep.subr.mxu0 0.0
    %1179 = vmatpush1.msra.mxu0 0.0
    %1180 = vmatprep.subr.mxu0 0.0
    %1181 = vmatpush1.msra.mxu0 0.0
    %1182 = vmatprep.subr.mxu0 0.0
    %1183 = vmatpush1.msra.mxu0 0.0
    %1184 = vmatprep.subr.mxu0 0.0
    %1185 = vmatpush1.msra.mxu0 0.0
    %1186 = vmatprep.subr.mxu0 0.0
    %1187 = vmatpush1.msra.mxu0 0.0
    %1188 = vmatprep.subr.mxu0 0.0
    %1189 = vmatpush1.msra.mxu0 0.0
    %1190 = vmatprep.subr.mxu0 0.0
    %1191 = vmatpush1.msra.mxu0 0.0
    %1192 = vmatprep.mubr.f32.mxu0 0.0
    %1193 = vmatmul.mubr.f32.gmra.mrb[0].mxu0 %v1102
    %v1194 = vpop.f32.mrb[0].mxu0
    %v1195 = vadd.f32 0.0, %v1194
    %v1196 = vpop.f32.mrb[0].mxu0
    %1197 = vmatprep.mubr.f32.mxu0 0.0
    %1198 = vmatmul.mubr.f32.gmra.mrb[0].mxu0 %v1105
    %v1199 = vpop.f32.mrb[0].mxu0
    %v1200 = vadd.f32 0.0, %v1199
    %v1201 = vpop.f32.mrb[0].mxu0
    %1202 = vmatprep.mubr.f32.mxu0 0.0
    %1203 = vmatmul.mubr.f32.gmra.mrb[0].mxu0 %v1108
    %v1204 = vpop.f32.mrb[0].mxu0
    %v1205 = vadd.f32 0.0, %v1204
    %v1206 = vpop.f32.mrb[0].mxu0
    %1207 = vmatprep.mubr.f32.mxu0 0.0
    %1208 = vmatmul.mubr.f32.gmra.mrb[0].mxu0 %v1111
    %v1209 = vpop.f32.mrb[0].mxu0
    %v1210 = vadd.f32 0.0, %v1209
    %v1211 = vpop.f32.mrb[0].mxu0
    %1212 = vmatprep.mubr.f32.mxu0 0.0
    %1213 = vmatmul.mubr.f32.gmra.mrb[0].mxu0 %v1114
    %v1214 = vpop.f32.mrb[0].mxu0
    %v1215 = vadd.f32 0.0, %v1214
    %v1216 = vpop.f32.mrb[0].mxu0
    %1217 = vmatprep.mubr.f32.mxu0 0.0
    %1218 = vmatmul.mubr.f32.gmra.mrb[0].mxu0 %v1117
    %v1219 = vpop.f32.mrb[0].mxu0
    %v1220 = vadd.f32 0.0, %v1219
    %v1221 = vpop.f32.mrb[0].mxu0
    %1222 = vmatprep.mubr.f32.mxu0 0.0
    %1223 = vmatmul.mubr.f32.gmra.mrb[0].mxu0 %v1120
    %v1224 = vpop.f32.mrb[0].mxu0
    %v1225 = vadd.f32 0.0, %v1224
    %v1226 = vpop.f32.mrb[0].mxu0
    %1227 = vmatprep.mubr.f32.mxu0 0.0
    %1228 = vmatmul.mubr.f32.gmra.mrb[0].mxu0 %v1123
    %v1229 = vpop.f32.mrb[0].mxu0
    %v1230 = vadd.f32 0.0, %v1229
    %v1231 = vpop.f32.mrb[0].mxu0
    %1232 = vmatprep.mubr.f32.mxu0 0.0
    %1233 = vmatmul.mubr.f32.gmra.mrb[0].mxu0 %v1126
    %v1234 = vpop.f32.mrb[0].mxu0
    %v1235 = vadd.f32 0.0, %v1234
    %v1236 = vpop.f32.mrb[0].mxu0
    %1237 = vdwg.mxu0
    %v1238 = vadd.f32 %v1078, %v1195
    %v1239 = vadd.f32 %v1079, %v1200
    %v1240 = vadd.f32 %v1080, %v1205
    %v1241 = vadd.f32 %v1081, %v1210
    %v1242 = vadd.f32 %v1082, %v1215
    %v1243 = vadd.f32 %v1083, %v1220
    %v1244 = vadd.f32 %v1084, %v1225
    %v1245 = vadd.f32 %v1085, %v1230
    %v1246 = vadd.f32 %v1086, %v1235
    %v1247 = vld [vmem:[#allocation2 + $0x1c] sm:$0xff]
    %v1248 = vld [vmem:[#allocation2 + $0x24] sm:$0xff]
    %v1249 = vld [vmem:[#allocation2 + $0x2c] sm:$0xff]
    %v1250 = vld [vmem:[#allocation2 + $0x34] sm:$0xff]
    %v1251 = vld [vmem:[#allocation2 + $0x3c] sm:$0xff]
    %v1252 = vld [vmem:[#allocation2 + $0x44] sm:$0xff]
    %v1253 = vld [vmem:[#allocation2 + $0x4c] sm:$0xff]
    %v1254 = vld [vmem:[#allocation2 + $0x54] sm:$0xff]
    %v1255 = vld [vmem:[#allocation2 + $0x5c] sm:$0x3]
    %s1256 = scalar_lea.vmem %s4, 192
    %v1257 = vld [vmem:[%s1256] sm:$0xff]
    %v1258 = vld [vmem:[%s1256 + $0x8] sm:$0xff]
    %v1259 = vld [vmem:[%s1256 + $0x10] sm:$0xff]
    %v1260 = vld [vmem:[%s1256 + $0x18] sm:$0xff]
    %v1262 = vsel %vm265, %v1247, 0
    %v1265 = vsel %vm265, %v1248, 0
    %v1268 = vsel %vm265, %v1249, 0
    %v1271 = vsel %vm265, %v1250, 0
    %v1274 = vsel %vm265, %v1251, 0
    %v1277 = vsel %vm265, %v1252, 0
    %v1280 = vsel %vm265, %v1253, 0
    %v1283 = vsel %vm265, %v1254, 0
    %v1286 = vsel %vm265, %v1255, 0
    %1288 = vmatprep.subr.mxu0 0.0
    %1289 = vmatpush1.msra.mxu0 %v1257
    %1290 = vmatprep.subr.mxu0 0.0
    %1291 = vmatpush1.msra.mxu0 %v1258
    %1292 = vmatprep.subr.mxu0 0.0
    %1293 = vmatpush1.msra.mxu0 %v1259
    %1294 = vmatprep.subr.mxu0 0.0
    %1295 = vmatpush1.msra.mxu0 %v1260
    %1296 = vmatprep.subr.mxu0 0.0
    %1297 = vmatpush1.msra.mxu0 0.0
    %1298 = vmatprep.subr.mxu0 0.0
    %1299 = vmatpush1.msra.mxu0 0.0
    %1300 = vmatprep.subr.mxu0 0.0
    %1301 = vmatpush1.msra.mxu0 0.0
    %1302 = vmatprep.subr.mxu0 0.0
    %1303 = vmatpush1.msra.mxu0 0.0
    %1304 = vmatprep.subr.mxu0 0.0
    %1305 = vmatpush1.msra.mxu0 0.0
    %1306 = vmatprep.subr.mxu0 0.0
    %1307 = vmatpush1.msra.mxu0 0.0
    %1308 = vmatprep.subr.mxu0 0.0
    %1309 = vmatpush1.msra.mxu0 0.0
    %1310 = vmatprep.subr.mxu0 0.0
    %1311 = vmatpush1.msra.mxu0 0.0
    %1312 = vmatprep.subr.mxu0 0.0
    %1313 = vmatpush1.msra.mxu0 0.0
    %1314 = vmatprep.subr.mxu0 0.0
    %1315 = vmatpush1.msra.mxu0 0.0
    %1316 = vmatprep.subr.mxu0 0.0
    %1317 = vmatpush1.msra.mxu0 0.0
    %1318 = vmatprep.subr.mxu0 0.0
    %1319 = vmatpush1.msra.mxu0 0.0
    %1320 = vmatprep.subr.mxu0 0.0
    %1321 = vmatpush1.msra.mxu0 0.0
    %1322 = vmatprep.subr.mxu0 0.0
    %1323 = vmatpush1.msra.mxu0 0.0
    %1324 = vmatprep.subr.mxu0 0.0
    %1325 = vmatpush1.msra.mxu0 0.0
    %1326 = vmatprep.subr.mxu0 0.0
    %1327 = vmatpush1.msra.mxu0 0.0
    %1328 = vmatprep.subr.mxu0 0.0
    %1329 = vmatpush1.msra.mxu0 0.0
    %1330 = vmatprep.subr.mxu0 0.0
    %1331 = vmatpush1.msra.mxu0 0.0
    %1332 = vmatprep.subr.mxu0 0.0
    %1333 = vmatpush1.msra.mxu0 0.0
    %1334 = vmatprep.subr.mxu0 0.0
    %1335 = vmatpush1.msra.mxu0 0.0
    %1336 = vmatprep.subr.mxu0 0.0
    %1337 = vmatpush1.msra.mxu0 0.0
    %1338 = vmatprep.subr.mxu0 0.0
    %1339 = vmatpush1.msra.mxu0 0.0
    %1340 = vmatprep.subr.mxu0 0.0
    %1341 = vmatpush1.msra.mxu0 0.0
    %1342 = vmatprep.subr.mxu0 0.0
    %1343 = vmatpush1.msra.mxu0 0.0
    %1344 = vmatprep.subr.mxu0 0.0
    %1345 = vmatpush1.msra.mxu0 0.0
    %1346 = vmatprep.subr.mxu0 0.0
    %1347 = vmatpush1.msra.mxu0 0.0
    %1348 = vmatprep.subr.mxu0 0.0
    %1349 = vmatpush1.msra.mxu0 0.0
    %1350 = vmatprep.subr.mxu0 0.0
    %1351 = vmatpush1.msra.mxu0 0.0
    %1352 = vmatprep.mubr.f32.mxu0 0.0
    %1353 = vmatmul.mubr.f32.gmra.mrb[0].mxu0 %v1262
    %v1354 = vpop.f32.mrb[0].mxu0
    %v1355 = vadd.f32 0.0, %v1354
    %v1356 = vpop.f32.mrb[0].mxu0
    %1357 = vmatprep.mubr.f32.mxu0 0.0
    %1358 = vmatmul.mubr.f32.gmra.mrb[0].mxu0 %v1265
    %v1359 = vpop.f32.mrb[0].mxu0
    %v1360 = vadd.f32 0.0, %v1359
    %v1361 = vpop.f32.mrb[0].mxu0
    %1362 = vmatprep.mubr.f32.mxu0 0.0
    %1363 = vmatmul.mubr.f32.gmra.mrb[0].mxu0 %v1268
    %v1364 = vpop.f32.mrb[0].mxu0
    %v1365 = vadd.f32 0.0, %v1364
    %v1366 = vpop.f32.mrb[0].mxu0
    %1367 = vmatprep.mubr.f32.mxu0 0.0
    %1368 = vmatmul.mubr.f32.gmra.mrb[0].mxu0 %v1271
    %v1369 = vpop.f32.mrb[0].mxu0
    %v1370 = vadd.f32 0.0, %v1369
    %v1371 = vpop.f32.mrb[0].mxu0
    %1372 = vmatprep.mubr.f32.mxu0 0.0
    %1373 = vmatmul.mubr.f32.gmra.mrb[0].mxu0 %v1274
    %v1374 = vpop.f32.mrb[0].mxu0
    %v1375 = vadd.f32 0.0, %v1374
    %v1376 = vpop.f32.mrb[0].mxu0
    %1377 = vmatprep.mubr.f32.mxu0 0.0
    %1378 = vmatmul.mubr.f32.gmra.mrb[0].mxu0 %v1277
    %v1379 = vpop.f32.mrb[0].mxu0
    %v1380 = vadd.f32 0.0, %v1379
    %v1381 = vpop.f32.mrb[0].mxu0
    %1382 = vmatprep.mubr.f32.mxu0 0.0
    %1383 = vmatmul.mubr.f32.gmra.mrb[0].mxu0 %v1280
    %v1384 = vpop.f32.mrb[0].mxu0
    %v1385 = vadd.f32 0.0, %v1384
    %v1386 = vpop.f32.mrb[0].mxu0
    %1387 = vmatprep.mubr.f32.mxu0 0.0
    %1388 = vmatmul.mubr.f32.gmra.mrb[0].mxu0 %v1283
    %v1389 = vpop.f32.mrb[0].mxu0
    %v1390 = vadd.f32 0.0, %v1389
    %v1391 = vpop.f32.mrb[0].mxu0
    %1392 = vmatprep.mubr.f32.mxu0 0.0
    %1393 = vmatmul.mubr.f32.gmra.mrb[0].mxu0 %v1286
    %v1394 = vpop.f32.mrb[0].mxu0
    %v1395 = vadd.f32 0.0, %v1394
    %v1396 = vpop.f32.mrb[0].mxu0
    %1397 = vdwg.mxu0
    %v1398 = vadd.f32 %v1238, %v1355
    %v1399 = vadd.f32 %v1239, %v1360
    %v1400 = vadd.f32 %v1240, %v1365
    %v1401 = vadd.f32 %v1241, %v1370
    %v1402 = vadd.f32 %v1242, %v1375
    %v1403 = vadd.f32 %v1243, %v1380
    %v1404 = vadd.f32 %v1244, %v1385
    %v1405 = vadd.f32 %v1245, %v1390
    %v1406 = vadd.f32 %v1246, %v1395
    %v1407 = vld [vmem:[#allocation2 + $0x1e] sm:$0xff]
    %v1408 = vld [vmem:[#allocation2 + $0x26] sm:$0xff]
    %v1409 = vld [vmem:[#allocation2 + $0x2e] sm:$0xff]
    %v1410 = vld [vmem:[#allocation2 + $0x36] sm:$0xff]
    %v1411 = vld [vmem:[#allocation2 + $0x3e] sm:$0xff]
    %v1412 = vld [vmem:[#allocation2 + $0x46] sm:$0xff]
    %v1413 = vld [vmem:[#allocation2 + $0x4e] sm:$0xff]
    %v1414 = vld [vmem:[#allocation2 + $0x56] sm:$0xff]
    %v1415 = vld [vmem:[#allocation2 + $0x5e] sm:$0x3]
    %s1416 = scalar_lea.vmem %s4, 224
    %v1417 = vld [vmem:[%s1416] sm:$0xff]
    %v1418 = vld [vmem:[%s1416 + $0x8] sm:$0xff]
    %v1419 = vld [vmem:[%s1416 + $0x10] sm:$0xff]
    %v1420 = vld [vmem:[%s1416 + $0x18] sm:$0xff]
    %v1422 = vsel %vm265, %v1407, 0
    %v1425 = vsel %vm265, %v1408, 0
    %v1428 = vsel %vm265, %v1409, 0
    %v1431 = vsel %vm265, %v1410, 0
    %v1434 = vsel %vm265, %v1411, 0
    %v1437 = vsel %vm265, %v1412, 0
    %v1440 = vsel %vm265, %v1413, 0
    %v1443 = vsel %vm265, %v1414, 0
    %v1446 = vsel %vm265, %v1415, 0
    %1448 = vmatprep.subr.mxu0 0.0
    %1449 = vmatpush1.msra.mxu0 %v1417
    %1450 = vmatprep.subr.mxu0 0.0
    %1451 = vmatpush1.msra.mxu0 %v1418
    %1452 = vmatprep.subr.mxu0 0.0
    %1453 = vmatpush1.msra.mxu0 %v1419
    %1454 = vmatprep.subr.mxu0 0.0
    %1455 = vmatpush1.msra.mxu0 %v1420
    %1456 = vmatprep.subr.mxu0 0.0
    %1457 = vmatpush1.msra.mxu0 0.0
    %1458 = vmatprep.subr.mxu0 0.0
    %1459 = vmatpush1.msra.mxu0 0.0
    %1460 = vmatprep.subr.mxu0 0.0
    %1461 = vmatpush1.msra.mxu0 0.0
    %1462 = vmatprep.subr.mxu0 0.0
    %1463 = vmatpush1.msra.mxu0 0.0
    %1464 = vmatprep.subr.mxu0 0.0
    %1465 = vmatpush1.msra.mxu0 0.0
    %1466 = vmatprep.subr.mxu0 0.0
    %1467 = vmatpush1.msra.mxu0 0.0
    %1468 = vmatprep.subr.mxu0 0.0
    %1469 = vmatpush1.msra.mxu0 0.0
    %1470 = vmatprep.subr.mxu0 0.0
    %1471 = vmatpush1.msra.mxu0 0.0
    %1472 = vmatprep.subr.mxu0 0.0
    %1473 = vmatpush1.msra.mxu0 0.0
    %1474 = vmatprep.subr.mxu0 0.0
    %1475 = vmatpush1.msra.mxu0 0.0
    %1476 = vmatprep.subr.mxu0 0.0
    %1477 = vmatpush1.msra.mxu0 0.0
    %1478 = vmatprep.subr.mxu0 0.0
    %1479 = vmatpush1.msra.mxu0 0.0
    %1480 = vmatprep.subr.mxu0 0.0
    %1481 = vmatpush1.msra.mxu0 0.0
    %1482 = vmatprep.subr.mxu0 0.0
    %1483 = vmatpush1.msra.mxu0 0.0
    %1484 = vmatprep.subr.mxu0 0.0
    %1485 = vmatpush1.msra.mxu0 0.0
    %1486 = vmatprep.subr.mxu0 0.0
    %1487 = vmatpush1.msra.mxu0 0.0
    %1488 = vmatprep.subr.mxu0 0.0
    %1489 = vmatpush1.msra.mxu0 0.0
    %1490 = vmatprep.subr.mxu0 0.0
    %1491 = vmatpush1.msra.mxu0 0.0
    %1492 = vmatprep.subr.mxu0 0.0
    %1493 = vmatpush1.msra.mxu0 0.0
    %1494 = vmatprep.subr.mxu0 0.0
    %1495 = vmatpush1.msra.mxu0 0.0
    %1496 = vmatprep.subr.mxu0 0.0
    %1497 = vmatpush1.msra.mxu0 0.0
    %1498 = vmatprep.subr.mxu0 0.0
    %1499 = vmatpush1.msra.mxu0 0.0
    %1500 = vmatprep.subr.mxu0 0.0
    %1501 = vmatpush1.msra.mxu0 0.0
    %1502 = vmatprep.subr.mxu0 0.0
    %1503 = vmatpush1.msra.mxu0 0.0
    %1504 = vmatprep.subr.mxu0 0.0
    %1505 = vmatpush1.msra.mxu0 0.0
    %1506 = vmatprep.subr.mxu0 0.0
    %1507 = vmatpush1.msra.mxu0 0.0
    %1508 = vmatprep.subr.mxu0 0.0
    %1509 = vmatpush1.msra.mxu0 0.0
    %1510 = vmatprep.subr.mxu0 0.0
    %1511 = vmatpush1.msra.mxu0 0.0
    %1512 = vmatprep.mubr.f32.mxu0 0.0
    %1513 = vmatmul.mubr.f32.gmra.mrb[0].mxu0 %v1422
    %v1514 = vpop.f32.mrb[0].mxu0
    %v1515 = vadd.f32 0.0, %v1514
    %v1516 = vpop.f32.mrb[0].mxu0
    %1517 = vmatprep.mubr.f32.mxu0 0.0
    %1518 = vmatmul.mubr.f32.gmra.mrb[0].mxu0 %v1425
    %v1519 = vpop.f32.mrb[0].mxu0
    %v1520 = vadd.f32 0.0, %v1519
    %v1521 = vpop.f32.mrb[0].mxu0
    %1522 = vmatprep.mubr.f32.mxu0 0.0
    %1523 = vmatmul.mubr.f32.gmra.mrb[0].mxu0 %v1428
    %v1524 = vpop.f32.mrb[0].mxu0
    %v1525 = vadd.f32 0.0, %v1524
    %v1526 = vpop.f32.mrb[0].mxu0
    %1527 = vmatprep.mubr.f32.mxu0 0.0
    %1528 = vmatmul.mubr.f32.gmra.mrb[0].mxu0 %v1431
    %v1529 = vpop.f32.mrb[0].mxu0
    %v1530 = vadd.f32 0.0, %v1529
    %v1531 = vpop.f32.mrb[0].mxu0
    %1532 = vmatprep.mubr.f32.mxu0 0.0
    %1533 = vmatmul.mubr.f32.gmra.mrb[0].mxu0 %v1434
    %v1534 = vpop.f32.mrb[0].mxu0
    %v1535 = vadd.f32 0.0, %v1534
    %v1536 = vpop.f32.mrb[0].mxu0
    %1537 = vmatprep.mubr.f32.mxu0 0.0
    %1538 = vmatmul.mubr.f32.gmra.mrb[0].mxu0 %v1437
    %v1539 = vpop.f32.mrb[0].mxu0
    %v1540 = vadd.f32 0.0, %v1539
    %v1541 = vpop.f32.mrb[0].mxu0
    %1542 = vmatprep.mubr.f32.mxu0 0.0
    %1543 = vmatmul.mubr.f32.gmra.mrb[0].mxu0 %v1440
    %v1544 = vpop.f32.mrb[0].mxu0
    %v1545 = vadd.f32 0.0, %v1544
    %v1546 = vpop.f32.mrb[0].mxu0
    %1547 = vmatprep.mubr.f32.mxu0 0.0
    %1548 = vmatmul.mubr.f32.gmra.mrb[0].mxu0 %v1443
    %v1549 = vpop.f32.mrb[0].mxu0
    %v1550 = vadd.f32 0.0, %v1549
    %v1551 = vpop.f32.mrb[0].mxu0
    %1552 = vmatprep.mubr.f32.mxu0 0.0
    %1553 = vmatmul.mubr.f32.gmra.mrb[0].mxu0 %v1446
    %v1554 = vpop.f32.mrb[0].mxu0
    %v1555 = vadd.f32 0.0, %v1554
    %v1556 = vpop.f32.mrb[0].mxu0
    %1557 = vdwg.mxu0
    %v1558 = vadd.f32 %v1398, %v1515
    %v1559 = vadd.f32 %v1399, %v1520
    %v1560 = vadd.f32 %v1400, %v1525
    %v1561 = vadd.f32 %v1401, %v1530
    %v1562 = vadd.f32 %v1402, %v1535
    %v1563 = vadd.f32 %v1403, %v1540
    %v1564 = vadd.f32 %v1404, %v1545
    %v1565 = vadd.f32 %v1405, %v1550
    %v1566 = vadd.f32 %v1406, %v1555
    %v1567 = vld [vmem:[#allocation2 + $0x20] sm:$0xff]
    %v1568 = vld [vmem:[#allocation2 + $0x28] sm:$0xff]
    %v1569 = vld [vmem:[#allocation2 + $0x30] sm:$0xff]
    %v1570 = vld [vmem:[#allocation2 + $0x38] sm:$0xff]
    %v1571 = vld [vmem:[#allocation2 + $0x40] sm:$0xff]
    %v1572 = vld [vmem:[#allocation2 + $0x48] sm:$0xff]
    %v1573 = vld [vmem:[#allocation2 + $0x50] sm:$0xff]
    %v1574 = vld [vmem:[#allocation2 + $0x58] sm:$0xff]
    %v1575 = vld [vmem:[#allocation2 + $0x60] sm:$0x3]
    %s1576 = scalar_lea.vmem %s4, 256
    %v1577 = vld [vmem:[%s1576] sm:$0xff]
    %v1578 = vld [vmem:[%s1576 + $0x8] sm:$0xff]
    %v1579 = vld [vmem:[%s1576 + $0x10] sm:$0xff]
    %v1580 = vld [vmem:[%s1576 + $0x18] sm:$0xff]
    %v1582 = vsel %vm265, %v1567, 0
    %v1585 = vsel %vm265, %v1568, 0
    %v1588 = vsel %vm265, %v1569, 0
    %v1591 = vsel %vm265, %v1570, 0
    %v1594 = vsel %vm265, %v1571, 0
    %v1597 = vsel %vm265, %v1572, 0
    %v1600 = vsel %vm265, %v1573, 0
    %v1603 = vsel %vm265, %v1574, 0
    %v1606 = vsel %vm265, %v1575, 0
    %1608 = vmatprep.subr.mxu0 0.0
    %1609 = vmatpush1.msra.mxu0 %v1577
    %1610 = vmatprep.subr.mxu0 0.0
    %1611 = vmatpush1.msra.mxu0 %v1578
    %1612 = vmatprep.subr.mxu0 0.0
    %1613 = vmatpush1.msra.mxu0 %v1579
    %1614 = vmatprep.subr.mxu0 0.0
    %1615 = vmatpush1.msra.mxu0 %v1580
    %1616 = vmatprep.subr.mxu0 0.0
    %1617 = vmatpush1.msra.mxu0 0.0
    %1618 = vmatprep.subr.mxu0 0.0
    %1619 = vmatpush1.msra.mxu0 0.0
    %1620 = vmatprep.subr.mxu0 0.0
    %1621 = vmatpush1.msra.mxu0 0.0
    %1622 = vmatprep.subr.mxu0 0.0
    %1623 = vmatpush1.msra.mxu0 0.0
    %1624 = vmatprep.subr.mxu0 0.0
    %1625 = vmatpush1.msra.mxu0 0.0
    %1626 = vmatprep.subr.mxu0 0.0
    %1627 = vmatpush1.msra.mxu0 0.0
    %1628 = vmatprep.subr.mxu0 0.0
    %1629 = vmatpush1.msra.mxu0 0.0
    %1630 = vmatprep.subr.mxu0 0.0
    %1631 = vmatpush1.msra.mxu0 0.0
    %1632 = vmatprep.subr.mxu0 0.0
    %1633 = vmatpush1.msra.mxu0 0.0
    %1634 = vmatprep.subr.mxu0 0.0
    %1635 = vmatpush1.msra.mxu0 0.0
    %1636 = vmatprep.subr.mxu0 0.0
    %1637 = vmatpush1.msra.mxu0 0.0
    %1638 = vmatprep.subr.mxu0 0.0
    %1639 = vmatpush1.msra.mxu0 0.0
    %1640 = vmatprep.subr.mxu0 0.0
    %1641 = vmatpush1.msra.mxu0 0.0
    %1642 = vmatprep.subr.mxu0 0.0
    %1643 = vmatpush1.msra.mxu0 0.0
    %1644 = vmatprep.subr.mxu0 0.0
    %1645 = vmatpush1.msra.mxu0 0.0
    %1646 = vmatprep.subr.mxu0 0.0
    %1647 = vmatpush1.msra.mxu0 0.0
    %1648 = vmatprep.subr.mxu0 0.0
    %1649 = vmatpush1.msra.mxu0 0.0
    %1650 = vmatprep.subr.mxu0 0.0
    %1651 = vmatpush1.msra.mxu0 0.0
    %1652 = vmatprep.subr.mxu0 0.0
    %1653 = vmatpush1.msra.mxu0 0.0
    %1654 = vmatprep.subr.mxu0 0.0
    %1655 = vmatpush1.msra.mxu0 0.0
    %1656 = vmatprep.subr.mxu0 0.0
    %1657 = vmatpush1.msra.mxu0 0.0
    %1658 = vmatprep.subr.mxu0 0.0
    %1659 = vmatpush1.msra.mxu0 0.0
    %1660 = vmatprep.subr.mxu0 0.0
    %1661 = vmatpush1.msra.mxu0 0.0
    %1662 = vmatprep.subr.mxu0 0.0
    %1663 = vmatpush1.msra.mxu0 0.0
    %1664 = vmatprep.subr.mxu0 0.0
    %1665 = vmatpush1.msra.mxu0 0.0
    %1666 = vmatprep.subr.mxu0 0.0
    %1667 = vmatpush1.msra.mxu0 0.0
    %1668 = vmatprep.subr.mxu0 0.0
    %1669 = vmatpush1.msra.mxu0 0.0
    %1670 = vmatprep.subr.mxu0 0.0
    %1671 = vmatpush1.msra.mxu0 0.0
    %1672 = vmatprep.mubr.f32.mxu0 0.0
    %1673 = vmatmul.mubr.f32.gmra.mrb[0].mxu0 %v1582
    %v1674 = vpop.f32.mrb[0].mxu0
    %v1675 = vadd.f32 0.0, %v1674
    %v1676 = vpop.f32.mrb[0].mxu0
    %1677 = vmatprep.mubr.f32.mxu0 0.0
    %1678 = vmatmul.mubr.f32.gmra.mrb[0].mxu0 %v1585
    %v1679 = vpop.f32.mrb[0].mxu0
    %v1680 = vadd.f32 0.0, %v1679
    %v1681 = vpop.f32.mrb[0].mxu0
    %1682 = vmatprep.mubr.f32.mxu0 0.0
    %1683 = vmatmul.mubr.f32.gmra.mrb[0].mxu0 %v1588
    %v1684 = vpop.f32.mrb[0].mxu0
    %v1685 = vadd.f32 0.0, %v1684
    %v1686 = vpop.f32.mrb[0].mxu0
    %1687 = vmatprep.mubr.f32.mxu0 0.0
    %1688 = vmatmul.mubr.f32.gmra.mrb[0].mxu0 %v1591
    %v1689 = vpop.f32.mrb[0].mxu0
    %v1690 = vadd.f32 0.0, %v1689
    %v1691 = vpop.f32.mrb[0].mxu0
    %1692 = vmatprep.mubr.f32.mxu0 0.0
    %1693 = vmatmul.mubr.f32.gmra.mrb[0].mxu0 %v1594
    %v1694 = vpop.f32.mrb[0].mxu0
    %v1695 = vadd.f32 0.0, %v1694
    %v1696 = vpop.f32.mrb[0].mxu0
    %1697 = vmatprep.mubr.f32.mxu0 0.0
    %1698 = vmatmul.mubr.f32.gmra.mrb[0].mxu0 %v1597
    %v1699 = vpop.f32.mrb[0].mxu0
    %v1700 = vadd.f32 0.0, %v1699
    %v1701 = vpop.f32.mrb[0].mxu0
    %1702 = vmatprep.mubr.f32.mxu0 0.0
    %1703 = vmatmul.mubr.f32.gmra.mrb[0].mxu0 %v1600
    %v1704 = vpop.f32.mrb[0].mxu0
    %v1705 = vadd.f32 0.0, %v1704
    %v1706 = vpop.f32.mrb[0].mxu0
    %1707 = vmatprep.mubr.f32.mxu0 0.0
    %1708 = vmatmul.mubr.f32.gmra.mrb[0].mxu0 %v1603
    %v1709 = vpop.f32.mrb[0].mxu0
    %v1710 = vadd.f32 0.0, %v1709
    %v1711 = vpop.f32.mrb[0].mxu0
    %1712 = vmatprep.mubr.f32.mxu0 0.0
    %1713 = vmatmul.mubr.f32.gmra.mrb[0].mxu0 %v1606
    %v1714 = vpop.f32.mrb[0].mxu0
    %v1715 = vadd.f32 0.0, %v1714
    %v1716 = vpop.f32.mrb[0].mxu0
    %1717 = vdwg.mxu0
    %v1718 = vadd.f32 %v1558, %v1675
    %v1719 = vadd.f32 %v1559, %v1680
    %v1720 = vadd.f32 %v1560, %v1685
    %v1721 = vadd.f32 %v1561, %v1690
    %v1722 = vadd.f32 %v1562, %v1695
    %v1723 = vadd.f32 %v1563, %v1700
    %v1724 = vadd.f32 %v1564, %v1705
    %v1725 = vadd.f32 %v1565, %v1710
    %v1726 = vadd.f32 %v1566, %v1715
    %v1727 = vmax.f32 %v1718, 0.0
    %v1728 = vmax.f32 %v1719, 0.0
    %v1729 = vmax.f32 %v1720, 0.0
    %v1730 = vmax.f32 %v1721, 0.0
    %v1731 = vmax.f32 %v1722, 0.0
    %v1732 = vmax.f32 %v1723, 0.0
    %v1733 = vmax.f32 %v1724, 0.0
    %v1734 = vmax.f32 %v1725, 0.0
    %v1735 = vmax.f32 %v1726, 0.0
    %1736 = vst.msk [vmem:[#allocation3] sm:$0xff] %vm265, %v1727
    %1737 = vst.msk [vmem:[#allocation3 + $0x8] sm:$0xff] %vm265, %v1728
    %1738 = vst.msk [vmem:[#allocation3 + $0x10] sm:$0xff] %vm265, %v1729
    %1739 = vst.msk [vmem:[#allocation3 + $0x18] sm:$0xff] %vm265, %v1730
    %1740 = vst.msk [vmem:[#allocation3 + $0x20] sm:$0xff] %vm265, %v1731
    %1741 = vst.msk [vmem:[#allocation3 + $0x28] sm:$0xff] %vm265, %v1732
    %1742 = vst.msk [vmem:[#allocation3 + $0x30] sm:$0xff] %vm265, %v1733
    %1743 = vst.msk [vmem:[#allocation3 + $0x38] sm:$0xff] %vm265, %v1734
    %1744 = vst.msk [vmem:[#allocation3 + $0x40] sm:$0x3] %vm278, %v1735
    %v1745 = vld [vmem:[%s7] sm:$0x1]
    %v1747 = vlaneseq
    %v1748 = vshrl.u32 %v1747, 7
    %v1749 = vsub.s32 0, %v1748
    %v1750 = vrot.slane %v1745, %v1749
    %v1752 = vadd.f32 %v1750, 0.0
    %v1753 = vld [vmem:[#allocation3] sm:$0x3]
    %v1754 = vld [vmem:[%s6] sm:$0xff]
    %v1755 = vld [vmem:[%s6 + $0x8] sm:$0xff]
    %v1756 = vld [vmem:[%s6 + $0x10] sm:$0xff]
    %v1757 = vld [vmem:[%s6 + $0x18] sm:$0xff]
    %v1759 = vsel %vm265, %v1753, 0
    %1761 = vmatprep.subr.mxu0 0.0
    %1762 = vmatpush1.msra.mxu0 %v1754
    %1763 = vmatprep.subr.mxu0 0.0
    %1764 = vmatpush1.msra.mxu0 %v1755
    %1765 = vmatprep.subr.mxu0 0.0
    %1766 = vmatpush1.msra.mxu0 %v1756
    %1767 = vmatprep.subr.mxu0 0.0
    %1768 = vmatpush1.msra.mxu0 %v1757
    %1769 = vmatprep.subr.mxu0 0.0
    %1770 = vmatpush1.msra.mxu0 0.0
    %1771 = vmatprep.subr.mxu0 0.0
    %1772 = vmatpush1.msra.mxu0 0.0
    %1773 = vmatprep.subr.mxu0 0.0
    %1774 = vmatpush1.msra.mxu0 0.0
    %1775 = vmatprep.subr.mxu0 0.0
    %1776 = vmatpush1.msra.mxu0 0.0
    %1777 = vmatprep.subr.mxu0 0.0
    %1778 = vmatpush1.msra.mxu0 0.0
    %1779 = vmatprep.subr.mxu0 0.0
    %1780 = vmatpush1.msra.mxu0 0.0
    %1781 = vmatprep.subr.mxu0 0.0
    %1782 = vmatpush1.msra.mxu0 0.0
    %1783 = vmatprep.subr.mxu0 0.0
    %1784 = vmatpush1.msra.mxu0 0.0
    %1785 = vmatprep.subr.mxu0 0.0
    %1786 = vmatpush1.msra.mxu0 0.0
    %1787 = vmatprep.subr.mxu0 0.0
    %1788 = vmatpush1.msra.mxu0 0.0
    %1789 = vmatprep.subr.mxu0 0.0
    %1790 = vmatpush1.msra.mxu0 0.0
    %1791 = vmatprep.subr.mxu0 0.0
    %1792 = vmatpush1.msra.mxu0 0.0
    %1793 = vmatprep.subr.mxu0 0.0
    %1794 = vmatpush1.msra.mxu0 0.0
    %1795 = vmatprep.subr.mxu0 0.0
    %1796 = vmatpush1.msra.mxu0 0.0
    %1797 = vmatprep.subr.mxu0 0.0
    %1798 = vmatpush1.msra.mxu0 0.0
    %1799 = vmatprep.subr.mxu0 0.0
    %1800 = vmatpush1.msra.mxu0 0.0
    %1801 = vmatprep.subr.mxu0 0.0
    %1802 = vmatpush1.msra.mxu0 0.0
    %1803 = vmatprep.subr.mxu0 0.0
    %1804 = vmatpush1.msra.mxu0 0.0
    %1805 = vmatprep.subr.mxu0 0.0
    %1806 = vmatpush1.msra.mxu0 0.0
    %1807 = vmatprep.subr.mxu0 0.0
    %1808 = vmatpush1.msra.mxu0 0.0
    %1809 = vmatprep.subr.mxu0 0.0
    %1810 = vmatpush1.msra.mxu0 0.0
    %1811 = vmatprep.subr.mxu0 0.0
    %1812 = vmatpush1.msra.mxu0 0.0
    %1813 = vmatprep.subr.mxu0 0.0
    %1814 = vmatpush1.msra.mxu0 0.0
    %1815 = vmatprep.subr.mxu0 0.0
    %1816 = vmatpush1.msra.mxu0 0.0
    %1817 = vmatprep.subr.mxu0 0.0
    %1818 = vmatpush1.msra.mxu0 0.0
    %1819 = vmatprep.subr.mxu0 0.0
    %1820 = vmatpush1.msra.mxu0 0.0
    %1821 = vmatprep.subr.mxu0 0.0
    %1822 = vmatpush1.msra.mxu0 0.0
    %1823 = vmatprep.subr.mxu0 0.0
    %1824 = vmatpush1.msra.mxu0 0.0
    %1825 = vmatprep.mubr.f32.mxu0 0.0
    %1826 = vmatmul.mubr.f32.gmra.mrb[0].mxu0 %v1759
    %v1827 = vpop.f32.mrb[0].mxu0
    %v1828 = vadd.f32 0.0, %v1827
    %v1829 = vpop.f32.mrb[0].mxu0
    %1830 = vdwg.mxu0
    %v1831 = vadd.f32 %v1752, %v1828
    %v1832 = vld [vmem:[#allocation3 + $0x2] sm:$0x3]
    %s1833 = scalar_lea.vmem %s6, 32
    %v1834 = vld [vmem:[%s1833] sm:$0xff]
    %v1835 = vld [vmem:[%s1833 + $0x8] sm:$0xff]
    %v1836 = vld [vmem:[%s1833 + $0x10] sm:$0xff]
    %v1837 = vld [vmem:[%s1833 + $0x18] sm:$0xff]
    %v1839 = vsel %vm265, %v1832, 0
    %1841 = vmatprep.subr.mxu0 0.0
    %1842 = vmatpush1.msra.mxu0 %v1834
    %1843 = vmatprep.subr.mxu0 0.0
    %1844 = vmatpush1.msra.mxu0 %v1835
    %1845 = vmatprep.subr.mxu0 0.0
    %1846 = vmatpush1.msra.mxu0 %v1836
    %1847 = vmatprep.subr.mxu0 0.0
    %1848 = vmatpush1.msra.mxu0 %v1837
    %1849 = vmatprep.subr.mxu0 0.0
    %1850 = vmatpush1.msra.mxu0 0.0
    %1851 = vmatprep.subr.mxu0 0.0
    %1852 = vmatpush1.msra.mxu0 0.0
    %1853 = vmatprep.subr.mxu0 0.0
    %1854 = vmatpush1.msra.mxu0 0.0
    %1855 = vmatprep.subr.mxu0 0.0
    %1856 = vmatpush1.msra.mxu0 0.0
    %1857 = vmatprep.subr.mxu0 0.0
    %1858 = vmatpush1.msra.mxu0 0.0
    %1859 = vmatprep.subr.mxu0 0.0
    %1860 = vmatpush1.msra.mxu0 0.0
    %1861 = vmatprep.subr.mxu0 0.0
    %1862 = vmatpush1.msra.mxu0 0.0
    %1863 = vmatprep.subr.mxu0 0.0
    %1864 = vmatpush1.msra.mxu0 0.0
    %1865 = vmatprep.subr.mxu0 0.0
    %1866 = vmatpush1.msra.mxu0 0.0
    %1867 = vmatprep.subr.mxu0 0.0
    %1868 = vmatpush1.msra.mxu0 0.0
    %1869 = vmatprep.subr.mxu0 0.0
    %1870 = vmatpush1.msra.mxu0 0.0
    %1871 = vmatprep.subr.mxu0 0.0
    %1872 = vmatpush1.msra.mxu0 0.0
    %1873 = vmatprep.subr.mxu0 0.0
    %1874 = vmatpush1.msra.mxu0 0.0
    %1875 = vmatprep.subr.mxu0 0.0
    %1876 = vmatpush1.msra.mxu0 0.0
    %1877 = vmatprep.subr.mxu0 0.0
    %1878 = vmatpush1.msra.mxu0 0.0
    %1879 = vmatprep.subr.mxu0 0.0
    %1880 = vmatpush1.msra.mxu0 0.0
    %1881 = vmatprep.subr.mxu0 0.0
    %1882 = vmatpush1.msra.mxu0 0.0
    %1883 = vmatprep.subr.mxu0 0.0
    %1884 = vmatpush1.msra.mxu0 0.0
    %1885 = vmatprep.subr.mxu0 0.0
    %1886 = vmatpush1.msra.mxu0 0.0
    %1887 = vmatprep.subr.mxu0 0.0
    %1888 = vmatpush1.msra.mxu0 0.0
    %1889 = vmatprep.subr.mxu0 0.0
    %1890 = vmatpush1.msra.mxu0 0.0
    %1891 = vmatprep.subr.mxu0 0.0
    %1892 = vmatpush1.msra.mxu0 0.0
    %1893 = vmatprep.subr.mxu0 0.0
    %1894 = vmatpush1.msra.mxu0 0.0
    %1895 = vmatprep.subr.mxu0 0.0
    %1896 = vmatpush1.msra.mxu0 0.0
    %1897 = vmatprep.subr.mxu0 0.0
    %1898 = vmatpush1.msra.mxu0 0.0
    %1899 = vmatprep.subr.mxu0 0.0
    %1900 = vmatpush1.msra.mxu0 0.0
    %1901 = vmatprep.subr.mxu0 0.0
    %1902 = vmatpush1.msra.mxu0 0.0
    %1903 = vmatprep.subr.mxu0 0.0
    %1904 = vmatpush1.msra.mxu0 0.0
    %1905 = vmatprep.mubr.f32.mxu0 0.0
    %1906 = vmatmul.mubr.f32.gmra.mrb[0].mxu0 %v1839
    %v1907 = vpop.f32.mrb[0].mxu0
    %v1908 = vadd.f32 0.0, %v1907
    %v1909 = vpop.f32.mrb[0].mxu0
    %1910 = vdwg.mxu0
    %v1911 = vadd.f32 %v1831, %v1908
    %v1912 = vld [vmem:[#allocation3 + $0x4] sm:$0x3]
    %s1913 = scalar_lea.vmem %s6, 64
    %v1914 = vld [vmem:[%s1913] sm:$0xff]
    %v1915 = vld [vmem:[%s1913 + $0x8] sm:$0xff]
    %v1916 = vld [vmem:[%s1913 + $0x10] sm:$0xff]
    %v1917 = vld [vmem:[%s1913 + $0x18] sm:$0xff]
    %v1919 = vsel %vm265, %v1912, 0
    %1921 = vmatprep.subr.mxu0 0.0
    %1922 = vmatpush1.msra.mxu0 %v1914
    %1923 = vmatprep.subr.mxu0 0.0
    %1924 = vmatpush1.msra.mxu0 %v1915
    %1925 = vmatprep.subr.mxu0 0.0
    %1926 = vmatpush1.msra.mxu0 %v1916
    %1927 = vmatprep.subr.mxu0 0.0
    %1928 = vmatpush1.msra.mxu0 %v1917
    %1929 = vmatprep.subr.mxu0 0.0
    %1930 = vmatpush1.msra.mxu0 0.0
    %1931 = vmatprep.subr.mxu0 0.0
    %1932 = vmatpush1.msra.mxu0 0.0
    %1933 = vmatprep.subr.mxu0 0.0
    %1934 = vmatpush1.msra.mxu0 0.0
    %1935 = vmatprep.subr.mxu0 0.0
    %1936 = vmatpush1.msra.mxu0 0.0
    %1937 = vmatprep.subr.mxu0 0.0
    %1938 = vmatpush1.msra.mxu0 0.0
    %1939 = vmatprep.subr.mxu0 0.0
    %1940 = vmatpush1.msra.mxu0 0.0
    %1941 = vmatprep.subr.mxu0 0.0
    %1942 = vmatpush1.msra.mxu0 0.0
    %1943 = vmatprep.subr.mxu0 0.0
    %1944 = vmatpush1.msra.mxu0 0.0
    %1945 = vmatprep.subr.mxu0 0.0
    %1946 = vmatpush1.msra.mxu0 0.0
    %1947 = vmatprep.subr.mxu0 0.0
    %1948 = vmatpush1.msra.mxu0 0.0
    %1949 = vmatprep.subr.mxu0 0.0
    %1950 = vmatpush1.msra.mxu0 0.0
    %1951 = vmatprep.subr.mxu0 0.0
    %1952 = vmatpush1.msra.mxu0 0.0
    %1953 = vmatprep.subr.mxu0 0.0
    %1954 = vmatpush1.msra.mxu0 0.0
    %1955 = vmatprep.subr.mxu0 0.0
    %1956 = vmatpush1.msra.mxu0 0.0
    %1957 = vmatprep.subr.mxu0 0.0
    %1958 = vmatpush1.msra.mxu0 0.0
    %1959 = vmatprep.subr.mxu0 0.0
    %1960 = vmatpush1.msra.mxu0 0.0
    %1961 = vmatprep.subr.mxu0 0.0
    %1962 = vmatpush1.msra.mxu0 0.0
    %1963 = vmatprep.subr.mxu0 0.0
    %1964 = vmatpush1.msra.mxu0 0.0
    %1965 = vmatprep.subr.mxu0 0.0
    %1966 = vmatpush1.msra.mxu0 0.0
    %1967 = vmatprep.subr.mxu0 0.0
    %1968 = vmatpush1.msra.mxu0 0.0
    %1969 = vmatprep.subr.mxu0 0.0
    %1970 = vmatpush1.msra.mxu0 0.0
    %1971 = vmatprep.subr.mxu0 0.0
    %1972 = vmatpush1.msra.mxu0 0.0
    %1973 = vmatprep.subr.mxu0 0.0
    %1974 = vmatpush1.msra.mxu0 0.0
    %1975 = vmatprep.subr.mxu0 0.0
    %1976 = vmatpush1.msra.mxu0 0.0
    %1977 = vmatprep.subr.mxu0 0.0
    %1978 = vmatpush1.msra.mxu0 0.0
    %1979 = vmatprep.subr.mxu0 0.0
    %1980 = vmatpush1.msra.mxu0 0.0
    %1981 = vmatprep.subr.mxu0 0.0
    %1982 = vmatpush1.msra.mxu0 0.0
    %1983 = vmatprep.subr.mxu0 0.0
    %1984 = vmatpush1.msra.mxu0 0.0
    %1985 = vmatprep.mubr.f32.mxu0 0.0
    %1986 = vmatmul.mubr.f32.gmra.mrb[0].mxu0 %v1919
    %v1987 = vpop.f32.mrb[0].mxu0
    %v1988 = vadd.f32 0.0, %v1987
    %v1989 = vpop.f32.mrb[0].mxu0
    %1990 = vdwg.mxu0
    %v1991 = vadd.f32 %v1911, %v1988
    %v1992 = vld [vmem:[#allocation3 + $0x6] sm:$0x3]
    %s1993 = scalar_lea.vmem %s6, 96
    %v1994 = vld [vmem:[%s1993] sm:$0xff]
    %v1995 = vld [vmem:[%s1993 + $0x8] sm:$0xff]
    %v1996 = vld [vmem:[%s1993 + $0x10] sm:$0xff]
    %v1997 = vld [vmem:[%s1993 + $0x18] sm:$0xff]
    %v1999 = vsel %vm265, %v1992, 0
    %2001 = vmatprep.subr.mxu0 0.0
    %2002 = vmatpush1.msra.mxu0 %v1994
    %2003 = vmatprep.subr.mxu0 0.0
    %2004 = vmatpush1.msra.mxu0 %v1995
    %2005 = vmatprep.subr.mxu0 0.0
    %2006 = vmatpush1.msra.mxu0 %v1996
    %2007 = vmatprep.subr.mxu0 0.0
    %2008 = vmatpush1.msra.mxu0 %v1997
    %2009 = vmatprep.subr.mxu0 0.0
    %2010 = vmatpush1.msra.mxu0 0.0
    %2011 = vmatprep.subr.mxu0 0.0
    %2012 = vmatpush1.msra.mxu0 0.0
    %2013 = vmatprep.subr.mxu0 0.0
    %2014 = vmatpush1.msra.mxu0 0.0
    %2015 = vmatprep.subr.mxu0 0.0
    %2016 = vmatpush1.msra.mxu0 0.0
    %2017 = vmatprep.subr.mxu0 0.0
    %2018 = vmatpush1.msra.mxu0 0.0
    %2019 = vmatprep.subr.mxu0 0.0
    %2020 = vmatpush1.msra.mxu0 0.0
    %2021 = vmatprep.subr.mxu0 0.0
    %2022 = vmatpush1.msra.mxu0 0.0
    %2023 = vmatprep.subr.mxu0 0.0
    %2024 = vmatpush1.msra.mxu0 0.0
    %2025 = vmatprep.subr.mxu0 0.0
    %2026 = vmatpush1.msra.mxu0 0.0
    %2027 = vmatprep.subr.mxu0 0.0
    %2028 = vmatpush1.msra.mxu0 0.0
    %2029 = vmatprep.subr.mxu0 0.0
    %2030 = vmatpush1.msra.mxu0 0.0
    %2031 = vmatprep.subr.mxu0 0.0
    %2032 = vmatpush1.msra.mxu0 0.0
    %2033 = vmatprep.subr.mxu0 0.0
    %2034 = vmatpush1.msra.mxu0 0.0
    %2035 = vmatprep.subr.mxu0 0.0
    %2036 = vmatpush1.msra.mxu0 0.0
    %2037 = vmatprep.subr.mxu0 0.0
    %2038 = vmatpush1.msra.mxu0 0.0
    %2039 = vmatprep.subr.mxu0 0.0
    %2040 = vmatpush1.msra.mxu0 0.0
    %2041 = vmatprep.subr.mxu0 0.0
    %2042 = vmatpush1.msra.mxu0 0.0
    %2043 = vmatprep.subr.mxu0 0.0
    %2044 = vmatpush1.msra.mxu0 0.0
    %2045 = vmatprep.subr.mxu0 0.0
    %2046 = vmatpush1.msra.mxu0 0.0
    %2047 = vmatprep.subr.mxu0 0.0
    %2048 = vmatpush1.msra.mxu0 0.0
    %2049 = vmatprep.subr.mxu0 0.0
    %2050 = vmatpush1.msra.mxu0 0.0
    %2051 = vmatprep.subr.mxu0 0.0
    %2052 = vmatpush1.msra.mxu0 0.0
    %2053 = vmatprep.subr.mxu0 0.0
    %2054 = vmatpush1.msra.mxu0 0.0
    %2055 = vmatprep.subr.mxu0 0.0
    %2056 = vmatpush1.msra.mxu0 0.0
    %2057 = vmatprep.subr.mxu0 0.0
    %2058 = vmatpush1.msra.mxu0 0.0
    %2059 = vmatprep.subr.mxu0 0.0
    %2060 = vmatpush1.msra.mxu0 0.0
    %2061 = vmatprep.subr.mxu0 0.0
    %2062 = vmatpush1.msra.mxu0 0.0
    %2063 = vmatprep.subr.mxu0 0.0
    %2064 = vmatpush1.msra.mxu0 0.0
    %2065 = vmatprep.mubr.f32.mxu0 0.0
    %2066 = vmatmul.mubr.f32.gmra.mrb[0].mxu0 %v1999
    %v2067 = vpop.f32.mrb[0].mxu0
    %v2068 = vadd.f32 0.0, %v2067
    %v2069 = vpop.f32.mrb[0].mxu0
    %2070 = vdwg.mxu0
    %v2071 = vadd.f32 %v1991, %v2068
    %v2072 = vld [vmem:[#allocation3 + $0x8] sm:$0x3]
    %s2073 = scalar_lea.vmem %s6, 128
    %v2074 = vld [vmem:[%s2073] sm:$0xff]
    %v2075 = vld [vmem:[%s2073 + $0x8] sm:$0xff]
    %v2076 = vld [vmem:[%s2073 + $0x10] sm:$0xff]
    %v2077 = vld [vmem:[%s2073 + $0x18] sm:$0xff]
    %v2079 = vsel %vm265, %v2072, 0
    %2081 = vmatprep.subr.mxu0 0.0
    %2082 = vmatpush1.msra.mxu0 %v2074
    %2083 = vmatprep.subr.mxu0 0.0
    %2084 = vmatpush1.msra.mxu0 %v2075
    %2085 = vmatprep.subr.mxu0 0.0
    %2086 = vmatpush1.msra.mxu0 %v2076
    %2087 = vmatprep.subr.mxu0 0.0
    %2088 = vmatpush1.msra.mxu0 %v2077
    %2089 = vmatprep.subr.mxu0 0.0
    %2090 = vmatpush1.msra.mxu0 0.0
    %2091 = vmatprep.subr.mxu0 0.0
    %2092 = vmatpush1.msra.mxu0 0.0
    %2093 = vmatprep.subr.mxu0 0.0
    %2094 = vmatpush1.msra.mxu0 0.0
    %2095 = vmatprep.subr.mxu0 0.0
    %2096 = vmatpush1.msra.mxu0 0.0
    %2097 = vmatprep.subr.mxu0 0.0
    %2098 = vmatpush1.msra.mxu0 0.0
    %2099 = vmatprep.subr.mxu0 0.0
    %2100 = vmatpush1.msra.mxu0 0.0
    %2101 = vmatprep.subr.mxu0 0.0
    %2102 = vmatpush1.msra.mxu0 0.0
    %2103 = vmatprep.subr.mxu0 0.0
    %2104 = vmatpush1.msra.mxu0 0.0
    %2105 = vmatprep.subr.mxu0 0.0
    %2106 = vmatpush1.msra.mxu0 0.0
    %2107 = vmatprep.subr.mxu0 0.0
    %2108 = vmatpush1.msra.mxu0 0.0
    %2109 = vmatprep.subr.mxu0 0.0
    %2110 = vmatpush1.msra.mxu0 0.0
    %2111 = vmatprep.subr.mxu0 0.0
    %2112 = vmatpush1.msra.mxu0 0.0
    %2113 = vmatprep.subr.mxu0 0.0
    %2114 = vmatpush1.msra.mxu0 0.0
    %2115 = vmatprep.subr.mxu0 0.0
    %2116 = vmatpush1.msra.mxu0 0.0
    %2117 = vmatprep.subr.mxu0 0.0
    %2118 = vmatpush1.msra.mxu0 0.0
    %2119 = vmatprep.subr.mxu0 0.0
    %2120 = vmatpush1.msra.mxu0 0.0
    %2121 = vmatprep.subr.mxu0 0.0
    %2122 = vmatpush1.msra.mxu0 0.0
    %2123 = vmatprep.subr.mxu0 0.0
    %2124 = vmatpush1.msra.mxu0 0.0
    %2125 = vmatprep.subr.mxu0 0.0
    %2126 = vmatpush1.msra.mxu0 0.0
    %2127 = vmatprep.subr.mxu0 0.0
    %2128 = vmatpush1.msra.mxu0 0.0
    %2129 = vmatprep.subr.mxu0 0.0
    %2130 = vmatpush1.msra.mxu0 0.0
    %2131 = vmatprep.subr.mxu0 0.0
    %2132 = vmatpush1.msra.mxu0 0.0
    %2133 = vmatprep.subr.mxu0 0.0
    %2134 = vmatpush1.msra.mxu0 0.0
    %2135 = vmatprep.subr.mxu0 0.0
    %2136 = vmatpush1.msra.mxu0 0.0
    %2137 = vmatprep.subr.mxu0 0.0
    %2138 = vmatpush1.msra.mxu0 0.0
    %2139 = vmatprep.subr.mxu0 0.0
    %2140 = vmatpush1.msra.mxu0 0.0
    %2141 = vmatprep.subr.mxu0 0.0
    %2142 = vmatpush1.msra.mxu0 0.0
    %2143 = vmatprep.subr.mxu0 0.0
    %2144 = vmatpush1.msra.mxu0 0.0
    %2145 = vmatprep.mubr.f32.mxu0 0.0
    %2146 = vmatmul.mubr.f32.gmra.mrb[0].mxu0 %v2079
    %v2147 = vpop.f32.mrb[0].mxu0
    %v2148 = vadd.f32 0.0, %v2147
    %v2149 = vpop.f32.mrb[0].mxu0
    %2150 = vdwg.mxu0
    %v2151 = vadd.f32 %v2071, %v2148
    %v2152 = vld [vmem:[#allocation3 + $0xe] sm:$0x3]
    %s2153 = scalar_lea.vmem %s6, 160
    %v2154 = vld [vmem:[%s2153] sm:$0xff]
    %v2155 = vld [vmem:[%s2153 + $0x8] sm:$0xff]
    %v2156 = vld [vmem:[%s2153 + $0x10] sm:$0xff]
    %v2157 = vld [vmem:[%s2153 + $0x18] sm:$0xff]
    %v2159 = vsel %vm265, %v2152, 0
    %2161 = vmatprep.subr.mxu0 0.0
    %2162 = vmatpush1.msra.mxu0 %v2154
    %2163 = vmatprep.subr.mxu0 0.0
    %2164 = vmatpush1.msra.mxu0 %v2155
    %2165 = vmatprep.subr.mxu0 0.0
    %2166 = vmatpush1.msra.mxu0 %v2156
    %2167 = vmatprep.subr.mxu0 0.0
    %2168 = vmatpush1.msra.mxu0 %v2157
    %2169 = vmatprep.subr.mxu0 0.0
    %2170 = vmatpush1.msra.mxu0 0.0
    %2171 = vmatprep.subr.mxu0 0.0
    %2172 = vmatpush1.msra.mxu0 0.0
    %2173 = vmatprep.subr.mxu0 0.0
    %2174 = vmatpush1.msra.mxu0 0.0
    %2175 = vmatprep.subr.mxu0 0.0
    %2176 = vmatpush1.msra.mxu0 0.0
    %2177 = vmatprep.subr.mxu0 0.0
    %2178 = vmatpush1.msra.mxu0 0.0
    %2179 = vmatprep.subr.mxu0 0.0
    %2180 = vmatpush1.msra.mxu0 0.0
    %2181 = vmatprep.subr.mxu0 0.0
    %2182 = vmatpush1.msra.mxu0 0.0
    %2183 = vmatprep.subr.mxu0 0.0
    %2184 = vmatpush1.msra.mxu0 0.0
    %2185 = vmatprep.subr.mxu0 0.0
    %2186 = vmatpush1.msra.mxu0 0.0
    %2187 = vmatprep.subr.mxu0 0.0
    %2188 = vmatpush1.msra.mxu0 0.0
    %2189 = vmatprep.subr.mxu0 0.0
    %2190 = vmatpush1.msra.mxu0 0.0
    %2191 = vmatprep.subr.mxu0 0.0
    %2192 = vmatpush1.msra.mxu0 0.0
    %2193 = vmatprep.subr.mxu0 0.0
    %2194 = vmatpush1.msra.mxu0 0.0
    %2195 = vmatprep.subr.mxu0 0.0
    %2196 = vmatpush1.msra.mxu0 0.0
    %2197 = vmatprep.subr.mxu0 0.0
    %2198 = vmatpush1.msra.mxu0 0.0
    %2199 = vmatprep.subr.mxu0 0.0
    %2200 = vmatpush1.msra.mxu0 0.0
    %2201 = vmatprep.subr.mxu0 0.0
    %2202 = vmatpush1.msra.mxu0 0.0
    %2203 = vmatprep.subr.mxu0 0.0
    %2204 = vmatpush1.msra.mxu0 0.0
    %2205 = vmatprep.subr.mxu0 0.0
    %2206 = vmatpush1.msra.mxu0 0.0
    %2207 = vmatprep.subr.mxu0 0.0
    %2208 = vmatpush1.msra.mxu0 0.0
    %2209 = vmatprep.subr.mxu0 0.0
    %2210 = vmatpush1.msra.mxu0 0.0
    %2211 = vmatprep.subr.mxu0 0.0
    %2212 = vmatpush1.msra.mxu0 0.0
    %2213 = vmatprep.subr.mxu0 0.0
    %2214 = vmatpush1.msra.mxu0 0.0
    %2215 = vmatprep.subr.mxu0 0.0
    %2216 = vmatpush1.msra.mxu0 0.0
    %2217 = vmatprep.subr.mxu0 0.0
    %2218 = vmatpush1.msra.mxu0 0.0
    %2219 = vmatprep.subr.mxu0 0.0
    %2220 = vmatpush1.msra.mxu0 0.0
    %2221 = vmatprep.subr.mxu0 0.0
    %2222 = vmatpush1.msra.mxu0 0.0
    %2223 = vmatprep.subr.mxu0 0.0
    %2224 = vmatpush1.msra.mxu0 0.0
    %2225 = vmatprep.mubr.f32.mxu0 0.0
    %2226 = vmatmul.mubr.f32.gmra.mrb[0].mxu0 %v2159
    %v2227 = vpop.f32.mrb[0].mxu0
    %v2228 = vadd.f32 0.0, %v2227
    %v2229 = vpop.f32.mrb[0].mxu0
    %2230 = vdwg.mxu0
    %v2231 = vadd.f32 %v2151, %v2228
    %v2232 = vld [vmem:[#allocation3 + $0x10] sm:$0x3]
    %s2233 = scalar_lea.vmem %s6, 192
    %v2234 = vld [vmem:[%s2233] sm:$0xff]
    %v2235 = vld [vmem:[%s2233 + $0x8] sm:$0xff]
    %v2236 = vld [vmem:[%s2233 + $0x10] sm:$0xff]
    %v2237 = vld [vmem:[%s2233 + $0x18] sm:$0xff]
    %v2239 = vsel %vm265, %v2232, 0
    %2241 = vmatprep.subr.mxu0 0.0
    %2242 = vmatpush1.msra.mxu0 %v2234
    %2243 = vmatprep.subr.mxu0 0.0
    %2244 = vmatpush1.msra.mxu0 %v2235
    %2245 = vmatprep.subr.mxu0 0.0
    %2246 = vmatpush1.msra.mxu0 %v2236
    %2247 = vmatprep.subr.mxu0 0.0
    %2248 = vmatpush1.msra.mxu0 %v2237
    %2249 = vmatprep.subr.mxu0 0.0
    %2250 = vmatpush1.msra.mxu0 0.0
    %2251 = vmatprep.subr.mxu0 0.0
    %2252 = vmatpush1.msra.mxu0 0.0
    %2253 = vmatprep.subr.mxu0 0.0
    %2254 = vmatpush1.msra.mxu0 0.0
    %2255 = vmatprep.subr.mxu0 0.0
    %2256 = vmatpush1.msra.mxu0 0.0
    %2257 = vmatprep.subr.mxu0 0.0
    %2258 = vmatpush1.msra.mxu0 0.0
    %2259 = vmatprep.subr.mxu0 0.0
    %2260 = vmatpush1.msra.mxu0 0.0
    %2261 = vmatprep.subr.mxu0 0.0
    %2262 = vmatpush1.msra.mxu0 0.0
    %2263 = vmatprep.subr.mxu0 0.0
    %2264 = vmatpush1.msra.mxu0 0.0
    %2265 = vmatprep.subr.mxu0 0.0
    %2266 = vmatpush1.msra.mxu0 0.0
    %2267 = vmatprep.subr.mxu0 0.0
    %2268 = vmatpush1.msra.mxu0 0.0
    %2269 = vmatprep.subr.mxu0 0.0
    %2270 = vmatpush1.msra.mxu0 0.0
    %2271 = vmatprep.subr.mxu0 0.0
    %2272 = vmatpush1.msra.mxu0 0.0
    %2273 = vmatprep.subr.mxu0 0.0
    %2274 = vmatpush1.msra.mxu0 0.0
    %2275 = vmatprep.subr.mxu0 0.0
    %2276 = vmatpush1.msra.mxu0 0.0
    %2277 = vmatprep.subr.mxu0 0.0
    %2278 = vmatpush1.msra.mxu0 0.0
    %2279 = vmatprep.subr.mxu0 0.0
    %2280 = vmatpush1.msra.mxu0 0.0
    %2281 = vmatprep.subr.mxu0 0.0
    %2282 = vmatpush1.msra.mxu0 0.0
    %2283 = vmatprep.subr.mxu0 0.0
    %2284 = vmatpush1.msra.mxu0 0.0
    %2285 = vmatprep.subr.mxu0 0.0
    %2286 = vmatpush1.msra.mxu0 0.0
    %2287 = vmatprep.subr.mxu0 0.0
    %2288 = vmatpush1.msra.mxu0 0.0
    %2289 = vmatprep.subr.mxu0 0.0
    %2290 = vmatpush1.msra.mxu0 0.0
    %2291 = vmatprep.subr.mxu0 0.0
    %2292 = vmatpush1.msra.mxu0 0.0
    %2293 = vmatprep.subr.mxu0 0.0
    %2294 = vmatpush1.msra.mxu0 0.0
    %2295 = vmatprep.subr.mxu0 0.0
    %2296 = vmatpush1.msra.mxu0 0.0
    %2297 = vmatprep.subr.mxu0 0.0
    %2298 = vmatpush1.msra.mxu0 0.0
    %2299 = vmatprep.subr.mxu0 0.0
    %2300 = vmatpush1.msra.mxu0 0.0
    %2301 = vmatprep.subr.mxu0 0.0
    %2302 = vmatpush1.msra.mxu0 0.0
    %2303 = vmatprep.subr.mxu0 0.0
    %2304 = vmatpush1.msra.mxu0 0.0
    %2305 = vmatprep.mubr.f32.mxu0 0.0
    %2306 = vmatmul.mubr.f32.gmra.mrb[0].mxu0 %v2239
    %v2307 = vpop.f32.mrb[0].mxu0
    %v2308 = vadd.f32 0.0, %v2307
    %v2309 = vpop.f32.mrb[0].mxu0
    %2310 = vdwg.mxu0
    %v2311 = vadd.f32 %v2231, %v2308
    %v2312 = vld [vmem:[#allocation3 + $0x12] sm:$0x3]
    %s2313 = scalar_lea.vmem %s6, 224
    %v2314 = vld [vmem:[%s2313] sm:$0xff]
    %v2315 = vld [vmem:[%s2313 + $0x8] sm:$0xff]
    %v2316 = vld [vmem:[%s2313 + $0x10] sm:$0xff]
    %v2317 = vld [vmem:[%s2313 + $0x18] sm:$0xff]
    %v2319 = vsel %vm265, %v2312, 0
    %2321 = vmatprep.subr.mxu0 0.0
    %2322 = vmatpush1.msra.mxu0 %v2314
    %2323 = vmatprep.subr.mxu0 0.0
    %2324 = vmatpush1.msra.mxu0 %v2315
    %2325 = vmatprep.subr.mxu0 0.0
    %2326 = vmatpush1.msra.mxu0 %v2316
    %2327 = vmatprep.subr.mxu0 0.0
    %2328 = vmatpush1.msra.mxu0 %v2317
    %2329 = vmatprep.subr.mxu0 0.0
    %2330 = vmatpush1.msra.mxu0 0.0
    %2331 = vmatprep.subr.mxu0 0.0
    %2332 = vmatpush1.msra.mxu0 0.0
    %2333 = vmatprep.subr.mxu0 0.0
    %2334 = vmatpush1.msra.mxu0 0.0
    %2335 = vmatprep.subr.mxu0 0.0
    %2336 = vmatpush1.msra.mxu0 0.0
    %2337 = vmatprep.subr.mxu0 0.0
    %2338 = vmatpush1.msra.mxu0 0.0
    %2339 = vmatprep.subr.mxu0 0.0
    %2340 = vmatpush1.msra.mxu0 0.0
    %2341 = vmatprep.subr.mxu0 0.0
    %2342 = vmatpush1.msra.mxu0 0.0
    %2343 = vmatprep.subr.mxu0 0.0
    %2344 = vmatpush1.msra.mxu0 0.0
    %2345 = vmatprep.subr.mxu0 0.0
    %2346 = vmatpush1.msra.mxu0 0.0
    %2347 = vmatprep.subr.mxu0 0.0
    %2348 = vmatpush1.msra.mxu0 0.0
    %2349 = vmatprep.subr.mxu0 0.0
    %2350 = vmatpush1.msra.mxu0 0.0
    %2351 = vmatprep.subr.mxu0 0.0
    %2352 = vmatpush1.msra.mxu0 0.0
    %2353 = vmatprep.subr.mxu0 0.0
    %2354 = vmatpush1.msra.mxu0 0.0
    %2355 = vmatprep.subr.mxu0 0.0
    %2356 = vmatpush1.msra.mxu0 0.0
    %2357 = vmatprep.subr.mxu0 0.0
    %2358 = vmatpush1.msra.mxu0 0.0
    %2359 = vmatprep.subr.mxu0 0.0
    %2360 = vmatpush1.msra.mxu0 0.0
    %2361 = vmatprep.subr.mxu0 0.0
    %2362 = vmatpush1.msra.mxu0 0.0
    %2363 = vmatprep.subr.mxu0 0.0
    %2364 = vmatpush1.msra.mxu0 0.0
    %2365 = vmatprep.subr.mxu0 0.0
    %2366 = vmatpush1.msra.mxu0 0.0
    %2367 = vmatprep.subr.mxu0 0.0
    %2368 = vmatpush1.msra.mxu0 0.0
    %2369 = vmatprep.subr.mxu0 0.0
    %2370 = vmatpush1.msra.mxu0 0.0
    %2371 = vmatprep.subr.mxu0 0.0
    %2372 = vmatpush1.msra.mxu0 0.0
    %2373 = vmatprep.subr.mxu0 0.0
    %2374 = vmatpush1.msra.mxu0 0.0
    %2375 = vmatprep.subr.mxu0 0.0
    %2376 = vmatpush1.msra.mxu0 0.0
    %2377 = vmatprep.subr.mxu0 0.0
    %2378 = vmatpush1.msra.mxu0 0.0
    %2379 = vmatprep.subr.mxu0 0.0
    %2380 = vmatpush1.msra.mxu0 0.0
    %2381 = vmatprep.subr.mxu0 0.0
    %2382 = vmatpush1.msra.mxu0 0.0
    %2383 = vmatprep.subr.mxu0 0.0
    %2384 = vmatpush1.msra.mxu0 0.0
    %2385 = vmatprep.mubr.f32.mxu0 0.0
    %2386 = vmatmul.mubr.f32.gmra.mrb[0].mxu0 %v2319
    %v2387 = vpop.f32.mrb[0].mxu0
    %v2388 = vadd.f32 0.0, %v2387
    %v2389 = vpop.f32.mrb[0].mxu0
    %2390 = vdwg.mxu0
    %v2391 = vadd.f32 %v2311, %v2388
    %v2392 = vld [vmem:[#allocation3 + $0x14] sm:$0x3]
    %s2393 = scalar_lea.vmem %s6, 256
    %v2394 = vld [vmem:[%s2393] sm:$0xff]
    %v2395 = vld [vmem:[%s2393 + $0x8] sm:$0xff]
    %v2396 = vld [vmem:[%s2393 + $0x10] sm:$0xff]
    %v2397 = vld [vmem:[%s2393 + $0x18] sm:$0xff]
    %v2399 = vsel %vm265, %v2392, 0
    %2401 = vmatprep.subr.mxu0 0.0
    %2402 = vmatpush1.msra.mxu0 %v2394
    %2403 = vmatprep.subr.mxu0 0.0
    %2404 = vmatpush1.msra.mxu0 %v2395
    %2405 = vmatprep.subr.mxu0 0.0
    %2406 = vmatpush1.msra.mxu0 %v2396
    %2407 = vmatprep.subr.mxu0 0.0
    %2408 = vmatpush1.msra.mxu0 %v2397
    %2409 = vmatprep.subr.mxu0 0.0
    %2410 = vmatpush1.msra.mxu0 0.0
    %2411 = vmatprep.subr.mxu0 0.0
    %2412 = vmatpush1.msra.mxu0 0.0
    %2413 = vmatprep.subr.mxu0 0.0
    %2414 = vmatpush1.msra.mxu0 0.0
    %2415 = vmatprep.subr.mxu0 0.0
    %2416 = vmatpush1.msra.mxu0 0.0
    %2417 = vmatprep.subr.mxu0 0.0
    %2418 = vmatpush1.msra.mxu0 0.0
    %2419 = vmatprep.subr.mxu0 0.0
    %2420 = vmatpush1.msra.mxu0 0.0
    %2421 = vmatprep.subr.mxu0 0.0
    %2422 = vmatpush1.msra.mxu0 0.0
    %2423 = vmatprep.subr.mxu0 0.0
    %2424 = vmatpush1.msra.mxu0 0.0
    %2425 = vmatprep.subr.mxu0 0.0
    %2426 = vmatpush1.msra.mxu0 0.0
    %2427 = vmatprep.subr.mxu0 0.0
    %2428 = vmatpush1.msra.mxu0 0.0
    %2429 = vmatprep.subr.mxu0 0.0
    %2430 = vmatpush1.msra.mxu0 0.0
    %2431 = vmatprep.subr.mxu0 0.0
    %2432 = vmatpush1.msra.mxu0 0.0
    %2433 = vmatprep.subr.mxu0 0.0
    %2434 = vmatpush1.msra.mxu0 0.0
    %2435 = vmatprep.subr.mxu0 0.0
    %2436 = vmatpush1.msra.mxu0 0.0
    %2437 = vmatprep.subr.mxu0 0.0
    %2438 = vmatpush1.msra.mxu0 0.0
    %2439 = vmatprep.subr.mxu0 0.0
    %2440 = vmatpush1.msra.mxu0 0.0
    %2441 = vmatprep.subr.mxu0 0.0
    %2442 = vmatpush1.msra.mxu0 0.0
    %2443 = vmatprep.subr.mxu0 0.0
    %2444 = vmatpush1.msra.mxu0 0.0
    %2445 = vmatprep.subr.mxu0 0.0
    %2446 = vmatpush1.msra.mxu0 0.0
    %2447 = vmatprep.subr.mxu0 0.0
    %2448 = vmatpush1.msra.mxu0 0.0
    %2449 = vmatprep.subr.mxu0 0.0
    %2450 = vmatpush1.msra.mxu0 0.0
    %2451 = vmatprep.subr.mxu0 0.0
    %2452 = vmatpush1.msra.mxu0 0.0
    %2453 = vmatprep.subr.mxu0 0.0
    %2454 = vmatpush1.msra.mxu0 0.0
    %2455 = vmatprep.subr.mxu0 0.0
    %2456 = vmatpush1.msra.mxu0 0.0
    %2457 = vmatprep.subr.mxu0 0.0
    %2458 = vmatpush1.msra.mxu0 0.0
    %2459 = vmatprep.subr.mxu0 0.0
    %2460 = vmatpush1.msra.mxu0 0.0
    %2461 = vmatprep.subr.mxu0 0.0
    %2462 = vmatpush1.msra.mxu0 0.0
    %2463 = vmatprep.subr.mxu0 0.0
    %2464 = vmatpush1.msra.mxu0 0.0
    %2465 = vmatprep.mubr.f32.mxu0 0.0
    %2466 = vmatmul.mubr.f32.gmra.mrb[0].mxu0 %v2399
    %v2467 = vpop.f32.mrb[0].mxu0
    %v2468 = vadd.f32 0.0, %v2467
    %v2469 = vpop.f32.mrb[0].mxu0
    %2470 = vdwg.mxu0
    %v2471 = vadd.f32 %v2391, %v2468
    %v2472 = vld [vmem:[#allocation3 + $0x16] sm:$0x3]
    %s2473 = scalar_lea.vmem %s6, 288
    %v2474 = vld [vmem:[%s2473] sm:$0xff]
    %v2475 = vld [vmem:[%s2473 + $0x8] sm:$0xff]
    %v2476 = vld [vmem:[%s2473 + $0x10] sm:$0xff]
    %v2477 = vld [vmem:[%s2473 + $0x18] sm:$0xff]
    %v2479 = vsel %vm265, %v2472, 0
    %2481 = vmatprep.subr.mxu0 0.0
    %2482 = vmatpush1.msra.mxu0 %v2474
    %2483 = vmatprep.subr.mxu0 0.0
    %2484 = vmatpush1.msra.mxu0 %v2475
    %2485 = vmatprep.subr.mxu0 0.0
    %2486 = vmatpush1.msra.mxu0 %v2476
    %2487 = vmatprep.subr.mxu0 0.0
    %2488 = vmatpush1.msra.mxu0 %v2477
    %2489 = vmatprep.subr.mxu0 0.0
    %2490 = vmatpush1.msra.mxu0 0.0
    %2491 = vmatprep.subr.mxu0 0.0
    %2492 = vmatpush1.msra.mxu0 0.0
    %2493 = vmatprep.subr.mxu0 0.0
    %2494 = vmatpush1.msra.mxu0 0.0
    %2495 = vmatprep.subr.mxu0 0.0
    %2496 = vmatpush1.msra.mxu0 0.0
    %2497 = vmatprep.subr.mxu0 0.0
    %2498 = vmatpush1.msra.mxu0 0.0
    %2499 = vmatprep.subr.mxu0 0.0
    %2500 = vmatpush1.msra.mxu0 0.0
    %2501 = vmatprep.subr.mxu0 0.0
    %2502 = vmatpush1.msra.mxu0 0.0
    %2503 = vmatprep.subr.mxu0 0.0
    %2504 = vmatpush1.msra.mxu0 0.0
    %2505 = vmatprep.subr.mxu0 0.0
    %2506 = vmatpush1.msra.mxu0 0.0
    %2507 = vmatprep.subr.mxu0 0.0
    %2508 = vmatpush1.msra.mxu0 0.0
    %2509 = vmatprep.subr.mxu0 0.0
    %2510 = vmatpush1.msra.mxu0 0.0
    %2511 = vmatprep.subr.mxu0 0.0
    %2512 = vmatpush1.msra.mxu0 0.0
    %2513 = vmatprep.subr.mxu0 0.0
    %2514 = vmatpush1.msra.mxu0 0.0
    %2515 = vmatprep.subr.mxu0 0.0
    %2516 = vmatpush1.msra.mxu0 0.0
    %2517 = vmatprep.subr.mxu0 0.0
    %2518 = vmatpush1.msra.mxu0 0.0
    %2519 = vmatprep.subr.mxu0 0.0
    %2520 = vmatpush1.msra.mxu0 0.0
    %2521 = vmatprep.subr.mxu0 0.0
    %2522 = vmatpush1.msra.mxu0 0.0
    %2523 = vmatprep.subr.mxu0 0.0
    %2524 = vmatpush1.msra.mxu0 0.0
    %2525 = vmatprep.subr.mxu0 0.0
    %2526 = vmatpush1.msra.mxu0 0.0
    %2527 = vmatprep.subr.mxu0 0.0
    %2528 = vmatpush1.msra.mxu0 0.0
    %2529 = vmatprep.subr.mxu0 0.0
    %2530 = vmatpush1.msra.mxu0 0.0
    %2531 = vmatprep.subr.mxu0 0.0
    %2532 = vmatpush1.msra.mxu0 0.0
    %2533 = vmatprep.subr.mxu0 0.0
    %2534 = vmatpush1.msra.mxu0 0.0
    %2535 = vmatprep.subr.mxu0 0.0
    %2536 = vmatpush1.msra.mxu0 0.0
    %2537 = vmatprep.subr.mxu0 0.0
    %2538 = vmatpush1.msra.mxu0 0.0
    %2539 = vmatprep.subr.mxu0 0.0
    %2540 = vmatpush1.msra.mxu0 0.0
    %2541 = vmatprep.subr.mxu0 0.0
    %2542 = vmatpush1.msra.mxu0 0.0
    %2543 = vmatprep.subr.mxu0 0.0
    %2544 = vmatpush1.msra.mxu0 0.0
    %2545 = vmatprep.mubr.f32.mxu0 0.0
    %2546 = vmatmul.mubr.f32.gmra.mrb[0].mxu0 %v2479
    %v2547 = vpop.f32.mrb[0].mxu0
    %v2548 = vadd.f32 0.0, %v2547
    %v2549 = vpop.f32.mrb[0].mxu0
    %2550 = vdwg.mxu0
    %v2551 = vadd.f32 %v2471, %v2548
    %v2552 = vld [vmem:[#allocation3 + $0x1c] sm:$0x3]
    %s2553 = scalar_lea.vmem %s6, 320
    %v2554 = vld [vmem:[%s2553] sm:$0xff]
    %v2555 = vld [vmem:[%s2553 + $0x8] sm:$0xff]
    %v2556 = vld [vmem:[%s2553 + $0x10] sm:$0xff]
    %v2557 = vld [vmem:[%s2553 + $0x18] sm:$0xff]
    %v2559 = vsel %vm265, %v2552, 0
    %2561 = vmatprep.subr.mxu0 0.0
    %2562 = vmatpush1.msra.mxu0 %v2554
    %2563 = vmatprep.subr.mxu0 0.0
    %2564 = vmatpush1.msra.mxu0 %v2555
    %2565 = vmatprep.subr.mxu0 0.0
    %2566 = vmatpush1.msra.mxu0 %v2556
    %2567 = vmatprep.subr.mxu0 0.0
    %2568 = vmatpush1.msra.mxu0 %v2557
    %2569 = vmatprep.subr.mxu0 0.0
    %2570 = vmatpush1.msra.mxu0 0.0
    %2571 = vmatprep.subr.mxu0 0.0
    %2572 = vmatpush1.msra.mxu0 0.0
    %2573 = vmatprep.subr.mxu0 0.0
    %2574 = vmatpush1.msra.mxu0 0.0
    %2575 = vmatprep.subr.mxu0 0.0
    %2576 = vmatpush1.msra.mxu0 0.0
    %2577 = vmatprep.subr.mxu0 0.0
    %2578 = vmatpush1.msra.mxu0 0.0
    %2579 = vmatprep.subr.mxu0 0.0
    %2580 = vmatpush1.msra.mxu0 0.0
    %2581 = vmatprep.subr.mxu0 0.0
    %2582 = vmatpush1.msra.mxu0 0.0
    %2583 = vmatprep.subr.mxu0 0.0
    %2584 = vmatpush1.msra.mxu0 0.0
    %2585 = vmatprep.subr.mxu0 0.0
    %2586 = vmatpush1.msra.mxu0 0.0
    %2587 = vmatprep.subr.mxu0 0.0
    %2588 = vmatpush1.msra.mxu0 0.0
    %2589 = vmatprep.subr.mxu0 0.0
    %2590 = vmatpush1.msra.mxu0 0.0
    %2591 = vmatprep.subr.mxu0 0.0
    %2592 = vmatpush1.msra.mxu0 0.0
    %2593 = vmatprep.subr.mxu0 0.0
    %2594 = vmatpush1.msra.mxu0 0.0
    %2595 = vmatprep.subr.mxu0 0.0
    %2596 = vmatpush1.msra.mxu0 0.0
    %2597 = vmatprep.subr.mxu0 0.0
    %2598 = vmatpush1.msra.mxu0 0.0
    %2599 = vmatprep.subr.mxu0 0.0
    %2600 = vmatpush1.msra.mxu0 0.0
    %2601 = vmatprep.subr.mxu0 0.0
    %2602 = vmatpush1.msra.mxu0 0.0
    %2603 = vmatprep.subr.mxu0 0.0
    %2604 = vmatpush1.msra.mxu0 0.0
    %2605 = vmatprep.subr.mxu0 0.0
    %2606 = vmatpush1.msra.mxu0 0.0
    %2607 = vmatprep.subr.mxu0 0.0
    %2608 = vmatpush1.msra.mxu0 0.0
    %2609 = vmatprep.subr.mxu0 0.0
    %2610 = vmatpush1.msra.mxu0 0.0
    %2611 = vmatprep.subr.mxu0 0.0
    %2612 = vmatpush1.msra.mxu0 0.0
    %2613 = vmatprep.subr.mxu0 0.0
    %2614 = vmatpush1.msra.mxu0 0.0
    %2615 = vmatprep.subr.mxu0 0.0
    %2616 = vmatpush1.msra.mxu0 0.0
    %2617 = vmatprep.subr.mxu0 0.0
    %2618 = vmatpush1.msra.mxu0 0.0
    %2619 = vmatprep.subr.mxu0 0.0
    %2620 = vmatpush1.msra.mxu0 0.0
    %2621 = vmatprep.subr.mxu0 0.0
    %2622 = vmatpush1.msra.mxu0 0.0
    %2623 = vmatprep.subr.mxu0 0.0
    %2624 = vmatpush1.msra.mxu0 0.0
    %2625 = vmatprep.mubr.f32.mxu0 0.0
    %2626 = vmatmul.mubr.f32.gmra.mrb[0].mxu0 %v2559
    %v2627 = vpop.f32.mrb[0].mxu0
    %v2628 = vadd.f32 0.0, %v2627
    %v2629 = vpop.f32.mrb[0].mxu0
    %2630 = vdwg.mxu0
    %v2631 = vadd.f32 %v2551, %v2628
    %v2632 = vld [vmem:[#allocation3 + $0x1e] sm:$0x3]
    %s2633 = scalar_lea.vmem %s6, 352
    %v2634 = vld [vmem:[%s2633] sm:$0xff]
    %v2635 = vld [vmem:[%s2633 + $0x8] sm:$0xff]
    %v2636 = vld [vmem:[%s2633 + $0x10] sm:$0xff]
    %v2637 = vld [vmem:[%s2633 + $0x18] sm:$0xff]
    %v2639 = vsel %vm265, %v2632, 0
    %2641 = vmatprep.subr.mxu0 0.0
    %2642 = vmatpush1.msra.mxu0 %v2634
    %2643 = vmatprep.subr.mxu0 0.0
    %2644 = vmatpush1.msra.mxu0 %v2635
    %2645 = vmatprep.subr.mxu0 0.0
    %2646 = vmatpush1.msra.mxu0 %v2636
    %2647 = vmatprep.subr.mxu0 0.0
    %2648 = vmatpush1.msra.mxu0 %v2637
    %2649 = vmatprep.subr.mxu0 0.0
    %2650 = vmatpush1.msra.mxu0 0.0
    %2651 = vmatprep.subr.mxu0 0.0
    %2652 = vmatpush1.msra.mxu0 0.0
    %2653 = vmatprep.subr.mxu0 0.0
    %2654 = vmatpush1.msra.mxu0 0.0
    %2655 = vmatprep.subr.mxu0 0.0
    %2656 = vmatpush1.msra.mxu0 0.0
    %2657 = vmatprep.subr.mxu0 0.0
    %2658 = vmatpush1.msra.mxu0 0.0
    %2659 = vmatprep.subr.mxu0 0.0
    %2660 = vmatpush1.msra.mxu0 0.0
    %2661 = vmatprep.subr.mxu0 0.0
    %2662 = vmatpush1.msra.mxu0 0.0
    %2663 = vmatprep.subr.mxu0 0.0
    %2664 = vmatpush1.msra.mxu0 0.0
    %2665 = vmatprep.subr.mxu0 0.0
    %2666 = vmatpush1.msra.mxu0 0.0
    %2667 = vmatprep.subr.mxu0 0.0
    %2668 = vmatpush1.msra.mxu0 0.0
    %2669 = vmatprep.subr.mxu0 0.0
    %2670 = vmatpush1.msra.mxu0 0.0
    %2671 = vmatprep.subr.mxu0 0.0
    %2672 = vmatpush1.msra.mxu0 0.0
    %2673 = vmatprep.subr.mxu0 0.0
    %2674 = vmatpush1.msra.mxu0 0.0
    %2675 = vmatprep.subr.mxu0 0.0
    %2676 = vmatpush1.msra.mxu0 0.0
    %2677 = vmatprep.subr.mxu0 0.0
    %2678 = vmatpush1.msra.mxu0 0.0
    %2679 = vmatprep.subr.mxu0 0.0
    %2680 = vmatpush1.msra.mxu0 0.0
    %2681 = vmatprep.subr.mxu0 0.0
    %2682 = vmatpush1.msra.mxu0 0.0
    %2683 = vmatprep.subr.mxu0 0.0
    %2684 = vmatpush1.msra.mxu0 0.0
    %2685 = vmatprep.subr.mxu0 0.0
    %2686 = vmatpush1.msra.mxu0 0.0
    %2687 = vmatprep.subr.mxu0 0.0
    %2688 = vmatpush1.msra.mxu0 0.0
    %2689 = vmatprep.subr.mxu0 0.0
    %2690 = vmatpush1.msra.mxu0 0.0
    %2691 = vmatprep.subr.mxu0 0.0
    %2692 = vmatpush1.msra.mxu0 0.0
    %2693 = vmatprep.subr.mxu0 0.0
    %2694 = vmatpush1.msra.mxu0 0.0
    %2695 = vmatprep.subr.mxu0 0.0
    %2696 = vmatpush1.msra.mxu0 0.0
    %2697 = vmatprep.subr.mxu0 0.0
    %2698 = vmatpush1.msra.mxu0 0.0
    %2699 = vmatprep.subr.mxu0 0.0
    %2700 = vmatpush1.msra.mxu0 0.0
    %2701 = vmatprep.subr.mxu0 0.0
    %2702 = vmatpush1.msra.mxu0 0.0
    %2703 = vmatprep.subr.mxu0 0.0
    %2704 = vmatpush1.msra.mxu0 0.0
    %2705 = vmatprep.mubr.f32.mxu0 0.0
    %2706 = vmatmul.mubr.f32.gmra.mrb[0].mxu0 %v2639
    %v2707 = vpop.f32.mrb[0].mxu0
    %v2708 = vadd.f32 0.0, %v2707
    %v2709 = vpop.f32.mrb[0].mxu0
    %2710 = vdwg.mxu0
    %v2711 = vadd.f32 %v2631, %v2708
    %v2712 = vld [vmem:[#allocation3 + $0x20] sm:$0x3]
    %s2713 = scalar_lea.vmem %s6, 384
    %v2714 = vld [vmem:[%s2713] sm:$0xff]
    %v2715 = vld [vmem:[%s2713 + $0x8] sm:$0xff]
    %v2716 = vld [vmem:[%s2713 + $0x10] sm:$0xff]
    %v2717 = vld [vmem:[%s2713 + $0x18] sm:$0xff]
    %v2719 = vsel %vm265, %v2712, 0
    %2721 = vmatprep.subr.mxu0 0.0
    %2722 = vmatpush1.msra.mxu0 %v2714
    %2723 = vmatprep.subr.mxu0 0.0
    %2724 = vmatpush1.msra.mxu0 %v2715
    %2725 = vmatprep.subr.mxu0 0.0
    %2726 = vmatpush1.msra.mxu0 %v2716
    %2727 = vmatprep.subr.mxu0 0.0
    %2728 = vmatpush1.msra.mxu0 %v2717
    %2729 = vmatprep.subr.mxu0 0.0
    %2730 = vmatpush1.msra.mxu0 0.0
    %2731 = vmatprep.subr.mxu0 0.0
    %2732 = vmatpush1.msra.mxu0 0.0
    %2733 = vmatprep.subr.mxu0 0.0
    %2734 = vmatpush1.msra.mxu0 0.0
    %2735 = vmatprep.subr.mxu0 0.0
    %2736 = vmatpush1.msra.mxu0 0.0
    %2737 = vmatprep.subr.mxu0 0.0
    %2738 = vmatpush1.msra.mxu0 0.0
    %2739 = vmatprep.subr.mxu0 0.0
    %2740 = vmatpush1.msra.mxu0 0.0
    %2741 = vmatprep.subr.mxu0 0.0
    %2742 = vmatpush1.msra.mxu0 0.0
    %2743 = vmatprep.subr.mxu0 0.0
    %2744 = vmatpush1.msra.mxu0 0.0
    %2745 = vmatprep.subr.mxu0 0.0
    %2746 = vmatpush1.msra.mxu0 0.0
    %2747 = vmatprep.subr.mxu0 0.0
    %2748 = vmatpush1.msra.mxu0 0.0
    %2749 = vmatprep.subr.mxu0 0.0
    %2750 = vmatpush1.msra.mxu0 0.0
    %2751 = vmatprep.subr.mxu0 0.0
    %2752 = vmatpush1.msra.mxu0 0.0
    %2753 = vmatprep.subr.mxu0 0.0
    %2754 = vmatpush1.msra.mxu0 0.0
    %2755 = vmatprep.subr.mxu0 0.0
    %2756 = vmatpush1.msra.mxu0 0.0
    %2757 = vmatprep.subr.mxu0 0.0
    %2758 = vmatpush1.msra.mxu0 0.0
    %2759 = vmatprep.subr.mxu0 0.0
    %2760 = vmatpush1.msra.mxu0 0.0
    %2761 = vmatprep.subr.mxu0 0.0
    %2762 = vmatpush1.msra.mxu0 0.0
    %2763 = vmatprep.subr.mxu0 0.0
    %2764 = vmatpush1.msra.mxu0 0.0
    %2765 = vmatprep.subr.mxu0 0.0
    %2766 = vmatpush1.msra.mxu0 0.0
    %2767 = vmatprep.subr.mxu0 0.0
    %2768 = vmatpush1.msra.mxu0 0.0
    %2769 = vmatprep.subr.mxu0 0.0
    %2770 = vmatpush1.msra.mxu0 0.0
    %2771 = vmatprep.subr.mxu0 0.0
    %2772 = vmatpush1.msra.mxu0 0.0
    %2773 = vmatprep.subr.mxu0 0.0
    %2774 = vmatpush1.msra.mxu0 0.0
    %2775 = vmatprep.subr.mxu0 0.0
    %2776 = vmatpush1.msra.mxu0 0.0
    %2777 = vmatprep.subr.mxu0 0.0
    %2778 = vmatpush1.msra.mxu0 0.0
    %2779 = vmatprep.subr.mxu0 0.0
    %2780 = vmatpush1.msra.mxu0 0.0
    %2781 = vmatprep.subr.mxu0 0.0
    %2782 = vmatpush1.msra.mxu0 0.0
    %2783 = vmatprep.subr.mxu0 0.0
    %2784 = vmatpush1.msra.mxu0 0.0
    %2785 = vmatprep.mubr.f32.mxu0 0.0
    %2786 = vmatmul.mubr.f32.gmra.mrb[0].mxu0 %v2719
    %v2787 = vpop.f32.mrb[0].mxu0
    %v2788 = vadd.f32 0.0, %v2787
    %v2789 = vpop.f32.mrb[0].mxu0
    %2790 = vdwg.mxu0
    %v2791 = vadd.f32 %v2711, %v2788
    %v2792 = vld [vmem:[#allocation3 + $0x22] sm:$0x3]
    %s2793 = scalar_lea.vmem %s6, 416
    %v2794 = vld [vmem:[%s2793] sm:$0xff]
    %v2795 = vld [vmem:[%s2793 + $0x8] sm:$0xff]
    %v2796 = vld [vmem:[%s2793 + $0x10] sm:$0xff]
    %v2797 = vld [vmem:[%s2793 + $0x18] sm:$0xff]
    %v2799 = vsel %vm265, %v2792, 0
    %2801 = vmatprep.subr.mxu0 0.0
    %2802 = vmatpush1.msra.mxu0 %v2794
    %2803 = vmatprep.subr.mxu0 0.0
    %2804 = vmatpush1.msra.mxu0 %v2795
    %2805 = vmatprep.subr.mxu0 0.0
    %2806 = vmatpush1.msra.mxu0 %v2796
    %2807 = vmatprep.subr.mxu0 0.0
    %2808 = vmatpush1.msra.mxu0 %v2797
    %2809 = vmatprep.subr.mxu0 0.0
    %2810 = vmatpush1.msra.mxu0 0.0
    %2811 = vmatprep.subr.mxu0 0.0
    %2812 = vmatpush1.msra.mxu0 0.0
    %2813 = vmatprep.subr.mxu0 0.0
    %2814 = vmatpush1.msra.mxu0 0.0
    %2815 = vmatprep.subr.mxu0 0.0
    %2816 = vmatpush1.msra.mxu0 0.0
    %2817 = vmatprep.subr.mxu0 0.0
    %2818 = vmatpush1.msra.mxu0 0.0
    %2819 = vmatprep.subr.mxu0 0.0
    %2820 = vmatpush1.msra.mxu0 0.0
    %2821 = vmatprep.subr.mxu0 0.0
    %2822 = vmatpush1.msra.mxu0 0.0
    %2823 = vmatprep.subr.mxu0 0.0
    %2824 = vmatpush1.msra.mxu0 0.0
    %2825 = vmatprep.subr.mxu0 0.0
    %2826 = vmatpush1.msra.mxu0 0.0
    %2827 = vmatprep.subr.mxu0 0.0
    %2828 = vmatpush1.msra.mxu0 0.0
    %2829 = vmatprep.subr.mxu0 0.0
    %2830 = vmatpush1.msra.mxu0 0.0
    %2831 = vmatprep.subr.mxu0 0.0
    %2832 = vmatpush1.msra.mxu0 0.0
    %2833 = vmatprep.subr.mxu0 0.0
    %2834 = vmatpush1.msra.mxu0 0.0
    %2835 = vmatprep.subr.mxu0 0.0
    %2836 = vmatpush1.msra.mxu0 0.0
    %2837 = vmatprep.subr.mxu0 0.0
    %2838 = vmatpush1.msra.mxu0 0.0
    %2839 = vmatprep.subr.mxu0 0.0
    %2840 = vmatpush1.msra.mxu0 0.0
    %2841 = vmatprep.subr.mxu0 0.0
    %2842 = vmatpush1.msra.mxu0 0.0
    %2843 = vmatprep.subr.mxu0 0.0
    %2844 = vmatpush1.msra.mxu0 0.0
    %2845 = vmatprep.subr.mxu0 0.0
    %2846 = vmatpush1.msra.mxu0 0.0
    %2847 = vmatprep.subr.mxu0 0.0
    %2848 = vmatpush1.msra.mxu0 0.0
    %2849 = vmatprep.subr.mxu0 0.0
    %2850 = vmatpush1.msra.mxu0 0.0
    %2851 = vmatprep.subr.mxu0 0.0
    %2852 = vmatpush1.msra.mxu0 0.0
    %2853 = vmatprep.subr.mxu0 0.0
    %2854 = vmatpush1.msra.mxu0 0.0
    %2855 = vmatprep.subr.mxu0 0.0
    %2856 = vmatpush1.msra.mxu0 0.0
    %2857 = vmatprep.subr.mxu0 0.0
    %2858 = vmatpush1.msra.mxu0 0.0
    %2859 = vmatprep.subr.mxu0 0.0
    %2860 = vmatpush1.msra.mxu0 0.0
    %2861 = vmatprep.subr.mxu0 0.0
    %2862 = vmatpush1.msra.mxu0 0.0
    %2863 = vmatprep.subr.mxu0 0.0
    %2864 = vmatpush1.msra.mxu0 0.0
    %2865 = vmatprep.mubr.f32.mxu0 0.0
    %2866 = vmatmul.mubr.f32.gmra.mrb[0].mxu0 %v2799
    %v2867 = vpop.f32.mrb[0].mxu0
    %v2868 = vadd.f32 0.0, %v2867
    %v2869 = vpop.f32.mrb[0].mxu0
    %2870 = vdwg.mxu0
    %v2871 = vadd.f32 %v2791, %v2868
    %v2872 = vld [vmem:[#allocation3 + $0x24] sm:$0x3]
    %s2873 = scalar_lea.vmem %s6, 448
    %v2874 = vld [vmem:[%s2873] sm:$0xff]
    %v2875 = vld [vmem:[%s2873 + $0x8] sm:$0xff]
    %v2876 = vld [vmem:[%s2873 + $0x10] sm:$0xff]
    %v2877 = vld [vmem:[%s2873 + $0x18] sm:$0xff]
    %v2879 = vsel %vm265, %v2872, 0
    %2881 = vmatprep.subr.mxu0 0.0
    %2882 = vmatpush1.msra.mxu0 %v2874
    %2883 = vmatprep.subr.mxu0 0.0
    %2884 = vmatpush1.msra.mxu0 %v2875
    %2885 = vmatprep.subr.mxu0 0.0
    %2886 = vmatpush1.msra.mxu0 %v2876
    %2887 = vmatprep.subr.mxu0 0.0
    %2888 = vmatpush1.msra.mxu0 %v2877
    %2889 = vmatprep.subr.mxu0 0.0
    %2890 = vmatpush1.msra.mxu0 0.0
    %2891 = vmatprep.subr.mxu0 0.0
    %2892 = vmatpush1.msra.mxu0 0.0
    %2893 = vmatprep.subr.mxu0 0.0
    %2894 = vmatpush1.msra.mxu0 0.0
    %2895 = vmatprep.subr.mxu0 0.0
    %2896 = vmatpush1.msra.mxu0 0.0
    %2897 = vmatprep.subr.mxu0 0.0
    %2898 = vmatpush1.msra.mxu0 0.0
    %2899 = vmatprep.subr.mxu0 0.0
    %2900 = vmatpush1.msra.mxu0 0.0
    %2901 = vmatprep.subr.mxu0 0.0
    %2902 = vmatpush1.msra.mxu0 0.0
    %2903 = vmatprep.subr.mxu0 0.0
    %2904 = vmatpush1.msra.mxu0 0.0
    %2905 = vmatprep.subr.mxu0 0.0
    %2906 = vmatpush1.msra.mxu0 0.0
    %2907 = vmatprep.subr.mxu0 0.0
    %2908 = vmatpush1.msra.mxu0 0.0
    %2909 = vmatprep.subr.mxu0 0.0
    %2910 = vmatpush1.msra.mxu0 0.0
    %2911 = vmatprep.subr.mxu0 0.0
    %2912 = vmatpush1.msra.mxu0 0.0
    %2913 = vmatprep.subr.mxu0 0.0
    %2914 = vmatpush1.msra.mxu0 0.0
    %2915 = vmatprep.subr.mxu0 0.0
    %2916 = vmatpush1.msra.mxu0 0.0
    %2917 = vmatprep.subr.mxu0 0.0
    %2918 = vmatpush1.msra.mxu0 0.0
    %2919 = vmatprep.subr.mxu0 0.0
    %2920 = vmatpush1.msra.mxu0 0.0
    %2921 = vmatprep.subr.mxu0 0.0
    %2922 = vmatpush1.msra.mxu0 0.0
    %2923 = vmatprep.subr.mxu0 0.0
    %2924 = vmatpush1.msra.mxu0 0.0
    %2925 = vmatprep.subr.mxu0 0.0
    %2926 = vmatpush1.msra.mxu0 0.0
    %2927 = vmatprep.subr.mxu0 0.0
    %2928 = vmatpush1.msra.mxu0 0.0
    %2929 = vmatprep.subr.mxu0 0.0
    %2930 = vmatpush1.msra.mxu0 0.0
    %2931 = vmatprep.subr.mxu0 0.0
    %2932 = vmatpush1.msra.mxu0 0.0
    %2933 = vmatprep.subr.mxu0 0.0
    %2934 = vmatpush1.msra.mxu0 0.0
    %2935 = vmatprep.subr.mxu0 0.0
    %2936 = vmatpush1.msra.mxu0 0.0
    %2937 = vmatprep.subr.mxu0 0.0
    %2938 = vmatpush1.msra.mxu0 0.0
    %2939 = vmatprep.subr.mxu0 0.0
    %2940 = vmatpush1.msra.mxu0 0.0
    %2941 = vmatprep.subr.mxu0 0.0
    %2942 = vmatpush1.msra.mxu0 0.0
    %2943 = vmatprep.subr.mxu0 0.0
    %2944 = vmatpush1.msra.mxu0 0.0
    %2945 = vmatprep.mubr.f32.mxu0 0.0
    %2946 = vmatmul.mubr.f32.gmra.mrb[0].mxu0 %v2879
    %v2947 = vpop.f32.mrb[0].mxu0
    %v2948 = vadd.f32 0.0, %v2947
    %v2949 = vpop.f32.mrb[0].mxu0
    %2950 = vdwg.mxu0
    %v2951 = vadd.f32 %v2871, %v2948
    %v2952 = vld [vmem:[#allocation3 + $0x2a] sm:$0x3]
    %s2953 = scalar_lea.vmem %s6, 480
    %v2954 = vld [vmem:[%s2953] sm:$0xff]
    %v2955 = vld [vmem:[%s2953 + $0x8] sm:$0xff]
    %v2956 = vld [vmem:[%s2953 + $0x10] sm:$0xff]
    %v2957 = vld [vmem:[%s2953 + $0x18] sm:$0xff]
    %v2959 = vsel %vm265, %v2952, 0
    %2961 = vmatprep.subr.mxu0 0.0
    %2962 = vmatpush1.msra.mxu0 %v2954
    %2963 = vmatprep.subr.mxu0 0.0
    %2964 = vmatpush1.msra.mxu0 %v2955
    %2965 = vmatprep.subr.mxu0 0.0
    %2966 = vmatpush1.msra.mxu0 %v2956
    %2967 = vmatprep.subr.mxu0 0.0
    %2968 = vmatpush1.msra.mxu0 %v2957
    %2969 = vmatprep.subr.mxu0 0.0
    %2970 = vmatpush1.msra.mxu0 0.0
    %2971 = vmatprep.subr.mxu0 0.0
    %2972 = vmatpush1.msra.mxu0 0.0
    %2973 = vmatprep.subr.mxu0 0.0
    %2974 = vmatpush1.msra.mxu0 0.0
    %2975 = vmatprep.subr.mxu0 0.0
    %2976 = vmatpush1.msra.mxu0 0.0
    %2977 = vmatprep.subr.mxu0 0.0
    %2978 = vmatpush1.msra.mxu0 0.0
    %2979 = vmatprep.subr.mxu0 0.0
    %2980 = vmatpush1.msra.mxu0 0.0
    %2981 = vmatprep.subr.mxu0 0.0
    %2982 = vmatpush1.msra.mxu0 0.0
    %2983 = vmatprep.subr.mxu0 0.0
    %2984 = vmatpush1.msra.mxu0 0.0
    %2985 = vmatprep.subr.mxu0 0.0
    %2986 = vmatpush1.msra.mxu0 0.0
    %2987 = vmatprep.subr.mxu0 0.0
    %2988 = vmatpush1.msra.mxu0 0.0
    %2989 = vmatprep.subr.mxu0 0.0
    %2990 = vmatpush1.msra.mxu0 0.0
    %2991 = vmatprep.subr.mxu0 0.0
    %2992 = vmatpush1.msra.mxu0 0.0
    %2993 = vmatprep.subr.mxu0 0.0
    %2994 = vmatpush1.msra.mxu0 0.0
    %2995 = vmatprep.subr.mxu0 0.0
    %2996 = vmatpush1.msra.mxu0 0.0
    %2997 = vmatprep.subr.mxu0 0.0
    %2998 = vmatpush1.msra.mxu0 0.0
    %2999 = vmatprep.subr.mxu0 0.0
    %3000 = vmatpush1.msra.mxu0 0.0
    %3001 = vmatprep.subr.mxu0 0.0
    %3002 = vmatpush1.msra.mxu0 0.0
    %3003 = vmatprep.subr.mxu0 0.0
    %3004 = vmatpush1.msra.mxu0 0.0
    %3005 = vmatprep.subr.mxu0 0.0
    %3006 = vmatpush1.msra.mxu0 0.0
    %3007 = vmatprep.subr.mxu0 0.0
    %3008 = vmatpush1.msra.mxu0 0.0
    %3009 = vmatprep.subr.mxu0 0.0
    %3010 = vmatpush1.msra.mxu0 0.0
    %3011 = vmatprep.subr.mxu0 0.0
    %3012 = vmatpush1.msra.mxu0 0.0
    %3013 = vmatprep.subr.mxu0 0.0
    %3014 = vmatpush1.msra.mxu0 0.0
    %3015 = vmatprep.subr.mxu0 0.0
    %3016 = vmatpush1.msra.mxu0 0.0
    %3017 = vmatprep.subr.mxu0 0.0
    %3018 = vmatpush1.msra.mxu0 0.0
    %3019 = vmatprep.subr.mxu0 0.0
    %3020 = vmatpush1.msra.mxu0 0.0
    %3021 = vmatprep.subr.mxu0 0.0
    %3022 = vmatpush1.msra.mxu0 0.0
    %3023 = vmatprep.subr.mxu0 0.0
    %3024 = vmatpush1.msra.mxu0 0.0
    %3025 = vmatprep.mubr.f32.mxu0 0.0
    %3026 = vmatmul.mubr.f32.gmra.mrb[0].mxu0 %v2959
    %v3027 = vpop.f32.mrb[0].mxu0
    %v3028 = vadd.f32 0.0, %v3027
    %v3029 = vpop.f32.mrb[0].mxu0
    %3030 = vdwg.mxu0
    %v3031 = vadd.f32 %v2951, %v3028
    %v3032 = vld [vmem:[#allocation3 + $0x2c] sm:$0x3]
    %s3033 = scalar_lea.vmem %s6, 512
    %v3034 = vld [vmem:[%s3033] sm:$0xff]
    %v3035 = vld [vmem:[%s3033 + $0x8] sm:$0xff]
    %v3036 = vld [vmem:[%s3033 + $0x10] sm:$0xff]
    %v3037 = vld [vmem:[%s3033 + $0x18] sm:$0xff]
    %v3039 = vsel %vm265, %v3032, 0
    %3041 = vmatprep.subr.mxu0 0.0
    %3042 = vmatpush1.msra.mxu0 %v3034
    %3043 = vmatprep.subr.mxu0 0.0
    %3044 = vmatpush1.msra.mxu0 %v3035
    %3045 = vmatprep.subr.mxu0 0.0
    %3046 = vmatpush1.msra.mxu0 %v3036
    %3047 = vmatprep.subr.mxu0 0.0
    %3048 = vmatpush1.msra.mxu0 %v3037
    %3049 = vmatprep.subr.mxu0 0.0
    %3050 = vmatpush1.msra.mxu0 0.0
    %3051 = vmatprep.subr.mxu0 0.0
    %3052 = vmatpush1.msra.mxu0 0.0
    %3053 = vmatprep.subr.mxu0 0.0
    %3054 = vmatpush1.msra.mxu0 0.0
    %3055 = vmatprep.subr.mxu0 0.0
    %3056 = vmatpush1.msra.mxu0 0.0
    %3057 = vmatprep.subr.mxu0 0.0
    %3058 = vmatpush1.msra.mxu0 0.0
    %3059 = vmatprep.subr.mxu0 0.0
    %3060 = vmatpush1.msra.mxu0 0.0
    %3061 = vmatprep.subr.mxu0 0.0
    %3062 = vmatpush1.msra.mxu0 0.0
    %3063 = vmatprep.subr.mxu0 0.0
    %3064 = vmatpush1.msra.mxu0 0.0
    %3065 = vmatprep.subr.mxu0 0.0
    %3066 = vmatpush1.msra.mxu0 0.0
    %3067 = vmatprep.subr.mxu0 0.0
    %3068 = vmatpush1.msra.mxu0 0.0
    %3069 = vmatprep.subr.mxu0 0.0
    %3070 = vmatpush1.msra.mxu0 0.0
    %3071 = vmatprep.subr.mxu0 0.0
    %3072 = vmatpush1.msra.mxu0 0.0
    %3073 = vmatprep.subr.mxu0 0.0
    %3074 = vmatpush1.msra.mxu0 0.0
    %3075 = vmatprep.subr.mxu0 0.0
    %3076 = vmatpush1.msra.mxu0 0.0
    %3077 = vmatprep.subr.mxu0 0.0
    %3078 = vmatpush1.msra.mxu0 0.0
    %3079 = vmatprep.subr.mxu0 0.0
    %3080 = vmatpush1.msra.mxu0 0.0
    %3081 = vmatprep.subr.mxu0 0.0
    %3082 = vmatpush1.msra.mxu0 0.0
    %3083 = vmatprep.subr.mxu0 0.0
    %3084 = vmatpush1.msra.mxu0 0.0
    %3085 = vmatprep.subr.mxu0 0.0
    %3086 = vmatpush1.msra.mxu0 0.0
    %3087 = vmatprep.subr.mxu0 0.0
    %3088 = vmatpush1.msra.mxu0 0.0
    %3089 = vmatprep.subr.mxu0 0.0
    %3090 = vmatpush1.msra.mxu0 0.0
    %3091 = vmatprep.subr.mxu0 0.0
    %3092 = vmatpush1.msra.mxu0 0.0
    %3093 = vmatprep.subr.mxu0 0.0
    %3094 = vmatpush1.msra.mxu0 0.0
    %3095 = vmatprep.subr.mxu0 0.0
    %3096 = vmatpush1.msra.mxu0 0.0
    %3097 = vmatprep.subr.mxu0 0.0
    %3098 = vmatpush1.msra.mxu0 0.0
    %3099 = vmatprep.subr.mxu0 0.0
    %3100 = vmatpush1.msra.mxu0 0.0
    %3101 = vmatprep.subr.mxu0 0.0
    %3102 = vmatpush1.msra.mxu0 0.0
    %3103 = vmatprep.subr.mxu0 0.0
    %3104 = vmatpush1.msra.mxu0 0.0
    %3105 = vmatprep.mubr.f32.mxu0 0.0
    %3106 = vmatmul.mubr.f32.gmra.mrb[0].mxu0 %v3039
    %v3107 = vpop.f32.mrb[0].mxu0
    %v3108 = vadd.f32 0.0, %v3107
    %v3109 = vpop.f32.mrb[0].mxu0
    %3110 = vdwg.mxu0
    %v3111 = vadd.f32 %v3031, %v3108
    %v3112 = vld [vmem:[#allocation3 + $0x2e] sm:$0x3]
    %s3113 = scalar_lea.vmem %s6, 544
    %v3114 = vld [vmem:[%s3113] sm:$0xff]
    %v3115 = vld [vmem:[%s3113 + $0x8] sm:$0xff]
    %v3116 = vld [vmem:[%s3113 + $0x10] sm:$0xff]
    %v3117 = vld [vmem:[%s3113 + $0x18] sm:$0xff]
    %v3119 = vsel %vm265, %v3112, 0
    %3121 = vmatprep.subr.mxu0 0.0
    %3122 = vmatpush1.msra.mxu0 %v3114
    %3123 = vmatprep.subr.mxu0 0.0
    %3124 = vmatpush1.msra.mxu0 %v3115
    %3125 = vmatprep.subr.mxu0 0.0
    %3126 = vmatpush1.msra.mxu0 %v3116
    %3127 = vmatprep.subr.mxu0 0.0
    %3128 = vmatpush1.msra.mxu0 %v3117
    %3129 = vmatprep.subr.mxu0 0.0
    %3130 = vmatpush1.msra.mxu0 0.0
    %3131 = vmatprep.subr.mxu0 0.0
    %3132 = vmatpush1.msra.mxu0 0.0
    %3133 = vmatprep.subr.mxu0 0.0
    %3134 = vmatpush1.msra.mxu0 0.0
    %3135 = vmatprep.subr.mxu0 0.0
    %3136 = vmatpush1.msra.mxu0 0.0
    %3137 = vmatprep.subr.mxu0 0.0
    %3138 = vmatpush1.msra.mxu0 0.0
    %3139 = vmatprep.subr.mxu0 0.0
    %3140 = vmatpush1.msra.mxu0 0.0
    %3141 = vmatprep.subr.mxu0 0.0
    %3142 = vmatpush1.msra.mxu0 0.0
    %3143 = vmatprep.subr.mxu0 0.0
    %3144 = vmatpush1.msra.mxu0 0.0
    %3145 = vmatprep.subr.mxu0 0.0
    %3146 = vmatpush1.msra.mxu0 0.0
    %3147 = vmatprep.subr.mxu0 0.0
    %3148 = vmatpush1.msra.mxu0 0.0
    %3149 = vmatprep.subr.mxu0 0.0
    %3150 = vmatpush1.msra.mxu0 0.0
    %3151 = vmatprep.subr.mxu0 0.0
    %3152 = vmatpush1.msra.mxu0 0.0
    %3153 = vmatprep.subr.mxu0 0.0
    %3154 = vmatpush1.msra.mxu0 0.0
    %3155 = vmatprep.subr.mxu0 0.0
    %3156 = vmatpush1.msra.mxu0 0.0
    %3157 = vmatprep.subr.mxu0 0.0
    %3158 = vmatpush1.msra.mxu0 0.0
    %3159 = vmatprep.subr.mxu0 0.0
    %3160 = vmatpush1.msra.mxu0 0.0
    %3161 = vmatprep.subr.mxu0 0.0
    %3162 = vmatpush1.msra.mxu0 0.0
    %3163 = vmatprep.subr.mxu0 0.0
    %3164 = vmatpush1.msra.mxu0 0.0
    %3165 = vmatprep.subr.mxu0 0.0
    %3166 = vmatpush1.msra.mxu0 0.0
    %3167 = vmatprep.subr.mxu0 0.0
    %3168 = vmatpush1.msra.mxu0 0.0
    %3169 = vmatprep.subr.mxu0 0.0
    %3170 = vmatpush1.msra.mxu0 0.0
    %3171 = vmatprep.subr.mxu0 0.0
    %3172 = vmatpush1.msra.mxu0 0.0
    %3173 = vmatprep.subr.mxu0 0.0
    %3174 = vmatpush1.msra.mxu0 0.0
    %3175 = vmatprep.subr.mxu0 0.0
    %3176 = vmatpush1.msra.mxu0 0.0
    %3177 = vmatprep.subr.mxu0 0.0
    %3178 = vmatpush1.msra.mxu0 0.0
    %3179 = vmatprep.subr.mxu0 0.0
    %3180 = vmatpush1.msra.mxu0 0.0
    %3181 = vmatprep.subr.mxu0 0.0
    %3182 = vmatpush1.msra.mxu0 0.0
    %3183 = vmatprep.subr.mxu0 0.0
    %3184 = vmatpush1.msra.mxu0 0.0
    %3185 = vmatprep.mubr.f32.mxu0 0.0
    %3186 = vmatmul.mubr.f32.gmra.mrb[0].mxu0 %v3119
    %v3187 = vpop.f32.mrb[0].mxu0
    %v3188 = vadd.f32 0.0, %v3187
    %v3189 = vpop.f32.mrb[0].mxu0
    %3190 = vdwg.mxu0
    %v3191 = vadd.f32 %v3111, %v3188
    %v3192 = vld [vmem:[#allocation3 + $0x30] sm:$0x3]
    %s3193 = scalar_lea.vmem %s6, 576
    %v3194 = vld [vmem:[%s3193] sm:$0xff]
    %v3195 = vld [vmem:[%s3193 + $0x8] sm:$0xff]
    %v3196 = vld [vmem:[%s3193 + $0x10] sm:$0xff]
    %v3197 = vld [vmem:[%s3193 + $0x18] sm:$0xff]
    %v3199 = vsel %vm265, %v3192, 0
    %3201 = vmatprep.subr.mxu0 0.0
    %3202 = vmatpush1.msra.mxu0 %v3194
    %3203 = vmatprep.subr.mxu0 0.0
    %3204 = vmatpush1.msra.mxu0 %v3195
    %3205 = vmatprep.subr.mxu0 0.0
    %3206 = vmatpush1.msra.mxu0 %v3196
    %3207 = vmatprep.subr.mxu0 0.0
    %3208 = vmatpush1.msra.mxu0 %v3197
    %3209 = vmatprep.subr.mxu0 0.0
    %3210 = vmatpush1.msra.mxu0 0.0
    %3211 = vmatprep.subr.mxu0 0.0
    %3212 = vmatpush1.msra.mxu0 0.0
    %3213 = vmatprep.subr.mxu0 0.0
    %3214 = vmatpush1.msra.mxu0 0.0
    %3215 = vmatprep.subr.mxu0 0.0
    %3216 = vmatpush1.msra.mxu0 0.0
    %3217 = vmatprep.subr.mxu0 0.0
    %3218 = vmatpush1.msra.mxu0 0.0
    %3219 = vmatprep.subr.mxu0 0.0
    %3220 = vmatpush1.msra.mxu0 0.0
    %3221 = vmatprep.subr.mxu0 0.0
    %3222 = vmatpush1.msra.mxu0 0.0
    %3223 = vmatprep.subr.mxu0 0.0
    %3224 = vmatpush1.msra.mxu0 0.0
    %3225 = vmatprep.subr.mxu0 0.0
    %3226 = vmatpush1.msra.mxu0 0.0
    %3227 = vmatprep.subr.mxu0 0.0
    %3228 = vmatpush1.msra.mxu0 0.0
    %3229 = vmatprep.subr.mxu0 0.0
    %3230 = vmatpush1.msra.mxu0 0.0
    %3231 = vmatprep.subr.mxu0 0.0
    %3232 = vmatpush1.msra.mxu0 0.0
    %3233 = vmatprep.subr.mxu0 0.0
    %3234 = vmatpush1.msra.mxu0 0.0
    %3235 = vmatprep.subr.mxu0 0.0
    %3236 = vmatpush1.msra.mxu0 0.0
    %3237 = vmatprep.subr.mxu0 0.0
    %3238 = vmatpush1.msra.mxu0 0.0
    %3239 = vmatprep.subr.mxu0 0.0
    %3240 = vmatpush1.msra.mxu0 0.0
    %3241 = vmatprep.subr.mxu0 0.0
    %3242 = vmatpush1.msra.mxu0 0.0
    %3243 = vmatprep.subr.mxu0 0.0
    %3244 = vmatpush1.msra.mxu0 0.0
    %3245 = vmatprep.subr.mxu0 0.0
    %3246 = vmatpush1.msra.mxu0 0.0
    %3247 = vmatprep.subr.mxu0 0.0
    %3248 = vmatpush1.msra.mxu0 0.0
    %3249 = vmatprep.subr.mxu0 0.0
    %3250 = vmatpush1.msra.mxu0 0.0
    %3251 = vmatprep.subr.mxu0 0.0
    %3252 = vmatpush1.msra.mxu0 0.0
    %3253 = vmatprep.subr.mxu0 0.0
    %3254 = vmatpush1.msra.mxu0 0.0
    %3255 = vmatprep.subr.mxu0 0.0
    %3256 = vmatpush1.msra.mxu0 0.0
    %3257 = vmatprep.subr.mxu0 0.0
    %3258 = vmatpush1.msra.mxu0 0.0
    %3259 = vmatprep.subr.mxu0 0.0
    %3260 = vmatpush1.msra.mxu0 0.0
    %3261 = vmatprep.subr.mxu0 0.0
    %3262 = vmatpush1.msra.mxu0 0.0
    %3263 = vmatprep.subr.mxu0 0.0
    %3264 = vmatpush1.msra.mxu0 0.0
    %3265 = vmatprep.mubr.f32.mxu0 0.0
    %3266 = vmatmul.mubr.f32.gmra.mrb[0].mxu0 %v3199
    %v3267 = vpop.f32.mrb[0].mxu0
    %v3268 = vadd.f32 0.0, %v3267
    %v3269 = vpop.f32.mrb[0].mxu0
    %3270 = vdwg.mxu0
    %v3271 = vadd.f32 %v3191, %v3268
    %v3272 = vld [vmem:[#allocation3 + $0x32] sm:$0x3]
    %s3273 = scalar_lea.vmem %s6, 608
    %v3274 = vld [vmem:[%s3273] sm:$0xff]
    %v3275 = vld [vmem:[%s3273 + $0x8] sm:$0xff]
    %v3276 = vld [vmem:[%s3273 + $0x10] sm:$0xff]
    %v3277 = vld [vmem:[%s3273 + $0x18] sm:$0xff]
    %v3279 = vsel %vm265, %v3272, 0
    %3281 = vmatprep.subr.mxu0 0.0
    %3282 = vmatpush1.msra.mxu0 %v3274
    %3283 = vmatprep.subr.mxu0 0.0
    %3284 = vmatpush1.msra.mxu0 %v3275
    %3285 = vmatprep.subr.mxu0 0.0
    %3286 = vmatpush1.msra.mxu0 %v3276
    %3287 = vmatprep.subr.mxu0 0.0
    %3288 = vmatpush1.msra.mxu0 %v3277
    %3289 = vmatprep.subr.mxu0 0.0
    %3290 = vmatpush1.msra.mxu0 0.0
    %3291 = vmatprep.subr.mxu0 0.0
    %3292 = vmatpush1.msra.mxu0 0.0
    %3293 = vmatprep.subr.mxu0 0.0
    %3294 = vmatpush1.msra.mxu0 0.0
    %3295 = vmatprep.subr.mxu0 0.0
    %3296 = vmatpush1.msra.mxu0 0.0
    %3297 = vmatprep.subr.mxu0 0.0
    %3298 = vmatpush1.msra.mxu0 0.0
    %3299 = vmatprep.subr.mxu0 0.0
    %3300 = vmatpush1.msra.mxu0 0.0
    %3301 = vmatprep.subr.mxu0 0.0
    %3302 = vmatpush1.msra.mxu0 0.0
    %3303 = vmatprep.subr.mxu0 0.0
    %3304 = vmatpush1.msra.mxu0 0.0
    %3305 = vmatprep.subr.mxu0 0.0
    %3306 = vmatpush1.msra.mxu0 0.0
    %3307 = vmatprep.subr.mxu0 0.0
    %3308 = vmatpush1.msra.mxu0 0.0
    %3309 = vmatprep.subr.mxu0 0.0
    %3310 = vmatpush1.msra.mxu0 0.0
    %3311 = vmatprep.subr.mxu0 0.0
    %3312 = vmatpush1.msra.mxu0 0.0
    %3313 = vmatprep.subr.mxu0 0.0
    %3314 = vmatpush1.msra.mxu0 0.0
    %3315 = vmatprep.subr.mxu0 0.0
    %3316 = vmatpush1.msra.mxu0 0.0
    %3317 = vmatprep.subr.mxu0 0.0
    %3318 = vmatpush1.msra.mxu0 0.0
    %3319 = vmatprep.subr.mxu0 0.0
    %3320 = vmatpush1.msra.mxu0 0.0
    %3321 = vmatprep.subr.mxu0 0.0
    %3322 = vmatpush1.msra.mxu0 0.0
    %3323 = vmatprep.subr.mxu0 0.0
    %3324 = vmatpush1.msra.mxu0 0.0
    %3325 = vmatprep.subr.mxu0 0.0
    %3326 = vmatpush1.msra.mxu0 0.0
    %3327 = vmatprep.subr.mxu0 0.0
    %3328 = vmatpush1.msra.mxu0 0.0
    %3329 = vmatprep.subr.mxu0 0.0
    %3330 = vmatpush1.msra.mxu0 0.0
    %3331 = vmatprep.subr.mxu0 0.0
    %3332 = vmatpush1.msra.mxu0 0.0
    %3333 = vmatprep.subr.mxu0 0.0
    %3334 = vmatpush1.msra.mxu0 0.0
    %3335 = vmatprep.subr.mxu0 0.0
    %3336 = vmatpush1.msra.mxu0 0.0
    %3337 = vmatprep.subr.mxu0 0.0
    %3338 = vmatpush1.msra.mxu0 0.0
    %3339 = vmatprep.subr.mxu0 0.0
    %3340 = vmatpush1.msra.mxu0 0.0
    %3341 = vmatprep.subr.mxu0 0.0
    %3342 = vmatpush1.msra.mxu0 0.0
    %3343 = vmatprep.subr.mxu0 0.0
    %3344 = vmatpush1.msra.mxu0 0.0
    %3345 = vmatprep.mubr.f32.mxu0 0.0
    %3346 = vmatmul.mubr.f32.gmra.mrb[0].mxu0 %v3279
    %v3347 = vpop.f32.mrb[0].mxu0
    %v3348 = vadd.f32 0.0, %v3347
    %v3349 = vpop.f32.mrb[0].mxu0
    %3350 = vdwg.mxu0
    %v3351 = vadd.f32 %v3271, %v3348
    %v3352 = vld [vmem:[#allocation3 + $0x38] sm:$0x3]
    %s3353 = scalar_lea.vmem %s6, 640
    %v3354 = vld [vmem:[%s3353] sm:$0xff]
    %v3355 = vld [vmem:[%s3353 + $0x8] sm:$0xff]
    %v3356 = vld [vmem:[%s3353 + $0x10] sm:$0xff]
    %v3357 = vld [vmem:[%s3353 + $0x18] sm:$0xff]
    %v3359 = vsel %vm265, %v3352, 0
    %3361 = vmatprep.subr.mxu0 0.0
    %3362 = vmatpush1.msra.mxu0 %v3354
    %3363 = vmatprep.subr.mxu0 0.0
    %3364 = vmatpush1.msra.mxu0 %v3355
    %3365 = vmatprep.subr.mxu0 0.0
    %3366 = vmatpush1.msra.mxu0 %v3356
    %3367 = vmatprep.subr.mxu0 0.0
    %3368 = vmatpush1.msra.mxu0 %v3357
    %3369 = vmatprep.subr.mxu0 0.0
    %3370 = vmatpush1.msra.mxu0 0.0
    %3371 = vmatprep.subr.mxu0 0.0
    %3372 = vmatpush1.msra.mxu0 0.0
    %3373 = vmatprep.subr.mxu0 0.0
    %3374 = vmatpush1.msra.mxu0 0.0
    %3375 = vmatprep.subr.mxu0 0.0
    %3376 = vmatpush1.msra.mxu0 0.0
    %3377 = vmatprep.subr.mxu0 0.0
    %3378 = vmatpush1.msra.mxu0 0.0
    %3379 = vmatprep.subr.mxu0 0.0
    %3380 = vmatpush1.msra.mxu0 0.0
    %3381 = vmatprep.subr.mxu0 0.0
    %3382 = vmatpush1.msra.mxu0 0.0
    %3383 = vmatprep.subr.mxu0 0.0
    %3384 = vmatpush1.msra.mxu0 0.0
    %3385 = vmatprep.subr.mxu0 0.0
    %3386 = vmatpush1.msra.mxu0 0.0
    %3387 = vmatprep.subr.mxu0 0.0
    %3388 = vmatpush1.msra.mxu0 0.0
    %3389 = vmatprep.subr.mxu0 0.0
    %3390 = vmatpush1.msra.mxu0 0.0
    %3391 = vmatprep.subr.mxu0 0.0
    %3392 = vmatpush1.msra.mxu0 0.0
    %3393 = vmatprep.subr.mxu0 0.0
    %3394 = vmatpush1.msra.mxu0 0.0
    %3395 = vmatprep.subr.mxu0 0.0
    %3396 = vmatpush1.msra.mxu0 0.0
    %3397 = vmatprep.subr.mxu0 0.0
    %3398 = vmatpush1.msra.mxu0 0.0
    %3399 = vmatprep.subr.mxu0 0.0
    %3400 = vmatpush1.msra.mxu0 0.0
    %3401 = vmatprep.subr.mxu0 0.0
    %3402 = vmatpush1.msra.mxu0 0.0
    %3403 = vmatprep.subr.mxu0 0.0
    %3404 = vmatpush1.msra.mxu0 0.0
    %3405 = vmatprep.subr.mxu0 0.0
    %3406 = vmatpush1.msra.mxu0 0.0
    %3407 = vmatprep.subr.mxu0 0.0
    %3408 = vmatpush1.msra.mxu0 0.0
    %3409 = vmatprep.subr.mxu0 0.0
    %3410 = vmatpush1.msra.mxu0 0.0
    %3411 = vmatprep.subr.mxu0 0.0
    %3412 = vmatpush1.msra.mxu0 0.0
    %3413 = vmatprep.subr.mxu0 0.0
    %3414 = vmatpush1.msra.mxu0 0.0
    %3415 = vmatprep.subr.mxu0 0.0
    %3416 = vmatpush1.msra.mxu0 0.0
    %3417 = vmatprep.subr.mxu0 0.0
    %3418 = vmatpush1.msra.mxu0 0.0
    %3419 = vmatprep.subr.mxu0 0.0
    %3420 = vmatpush1.msra.mxu0 0.0
    %3421 = vmatprep.subr.mxu0 0.0
    %3422 = vmatpush1.msra.mxu0 0.0
    %3423 = vmatprep.subr.mxu0 0.0
    %3424 = vmatpush1.msra.mxu0 0.0
    %3425 = vmatprep.mubr.f32.mxu0 0.0
    %3426 = vmatmul.mubr.f32.gmra.mrb[0].mxu0 %v3359
    %v3427 = vpop.f32.mrb[0].mxu0
    %v3428 = vadd.f32 0.0, %v3427
    %v3429 = vpop.f32.mrb[0].mxu0
    %3430 = vdwg.mxu0
    %v3431 = vadd.f32 %v3351, %v3428
    %v3432 = vld [vmem:[#allocation3 + $0x3a] sm:$0x3]
    %s3433 = scalar_lea.vmem %s6, 672
    %v3434 = vld [vmem:[%s3433] sm:$0xff]
    %v3435 = vld [vmem:[%s3433 + $0x8] sm:$0xff]
    %v3436 = vld [vmem:[%s3433 + $0x10] sm:$0xff]
    %v3437 = vld [vmem:[%s3433 + $0x18] sm:$0xff]
    %v3439 = vsel %vm265, %v3432, 0
    %3441 = vmatprep.subr.mxu0 0.0
    %3442 = vmatpush1.msra.mxu0 %v3434
    %3443 = vmatprep.subr.mxu0 0.0
    %3444 = vmatpush1.msra.mxu0 %v3435
    %3445 = vmatprep.subr.mxu0 0.0
    %3446 = vmatpush1.msra.mxu0 %v3436
    %3447 = vmatprep.subr.mxu0 0.0
    %3448 = vmatpush1.msra.mxu0 %v3437
    %3449 = vmatprep.subr.mxu0 0.0
    %3450 = vmatpush1.msra.mxu0 0.0
    %3451 = vmatprep.subr.mxu0 0.0
    %3452 = vmatpush1.msra.mxu0 0.0
    %3453 = vmatprep.subr.mxu0 0.0
    %3454 = vmatpush1.msra.mxu0 0.0
    %3455 = vmatprep.subr.mxu0 0.0
    %3456 = vmatpush1.msra.mxu0 0.0
    %3457 = vmatprep.subr.mxu0 0.0
    %3458 = vmatpush1.msra.mxu0 0.0
    %3459 = vmatprep.subr.mxu0 0.0
    %3460 = vmatpush1.msra.mxu0 0.0
    %3461 = vmatprep.subr.mxu0 0.0
    %3462 = vmatpush1.msra.mxu0 0.0
    %3463 = vmatprep.subr.mxu0 0.0
    %3464 = vmatpush1.msra.mxu0 0.0
    %3465 = vmatprep.subr.mxu0 0.0
    %3466 = vmatpush1.msra.mxu0 0.0
    %3467 = vmatprep.subr.mxu0 0.0
    %3468 = vmatpush1.msra.mxu0 0.0
    %3469 = vmatprep.subr.mxu0 0.0
    %3470 = vmatpush1.msra.mxu0 0.0
    %3471 = vmatprep.subr.mxu0 0.0
    %3472 = vmatpush1.msra.mxu0 0.0
    %3473 = vmatprep.subr.mxu0 0.0
    %3474 = vmatpush1.msra.mxu0 0.0
    %3475 = vmatprep.subr.mxu0 0.0
    %3476 = vmatpush1.msra.mxu0 0.0
    %3477 = vmatprep.subr.mxu0 0.0
    %3478 = vmatpush1.msra.mxu0 0.0
    %3479 = vmatprep.subr.mxu0 0.0
    %3480 = vmatpush1.msra.mxu0 0.0
    %3481 = vmatprep.subr.mxu0 0.0
    %3482 = vmatpush1.msra.mxu0 0.0
    %3483 = vmatprep.subr.mxu0 0.0
    %3484 = vmatpush1.msra.mxu0 0.0
    %3485 = vmatprep.subr.mxu0 0.0
    %3486 = vmatpush1.msra.mxu0 0.0
    %3487 = vmatprep.subr.mxu0 0.0
    %3488 = vmatpush1.msra.mxu0 0.0
    %3489 = vmatprep.subr.mxu0 0.0
    %3490 = vmatpush1.msra.mxu0 0.0
    %3491 = vmatprep.subr.mxu0 0.0
    %3492 = vmatpush1.msra.mxu0 0.0
    %3493 = vmatprep.subr.mxu0 0.0
    %3494 = vmatpush1.msra.mxu0 0.0
    %3495 = vmatprep.subr.mxu0 0.0
    %3496 = vmatpush1.msra.mxu0 0.0
    %3497 = vmatprep.subr.mxu0 0.0
    %3498 = vmatpush1.msra.mxu0 0.0
    %3499 = vmatprep.subr.mxu0 0.0
    %3500 = vmatpush1.msra.mxu0 0.0
    %3501 = vmatprep.subr.mxu0 0.0
    %3502 = vmatpush1.msra.mxu0 0.0
    %3503 = vmatprep.subr.mxu0 0.0
    %3504 = vmatpush1.msra.mxu0 0.0
    %3505 = vmatprep.mubr.f32.mxu0 0.0
    %3506 = vmatmul.mubr.f32.gmra.mrb[0].mxu0 %v3439
    %v3507 = vpop.f32.mrb[0].mxu0
    %v3508 = vadd.f32 0.0, %v3507
    %v3509 = vpop.f32.mrb[0].mxu0
    %3510 = vdwg.mxu0
    %v3511 = vadd.f32 %v3431, %v3508
    %v3512 = vld [vmem:[#allocation3 + $0x3c] sm:$0x3]
    %s3513 = scalar_lea.vmem %s6, 704
    %v3514 = vld [vmem:[%s3513] sm:$0xff]
    %v3515 = vld [vmem:[%s3513 + $0x8] sm:$0xff]
    %v3516 = vld [vmem:[%s3513 + $0x10] sm:$0xff]
    %v3517 = vld [vmem:[%s3513 + $0x18] sm:$0xff]
    %v3519 = vsel %vm265, %v3512, 0
    %3521 = vmatprep.subr.mxu0 0.0
    %3522 = vmatpush1.msra.mxu0 %v3514
    %3523 = vmatprep.subr.mxu0 0.0
    %3524 = vmatpush1.msra.mxu0 %v3515
    %3525 = vmatprep.subr.mxu0 0.0
    %3526 = vmatpush1.msra.mxu0 %v3516
    %3527 = vmatprep.subr.mxu0 0.0
    %3528 = vmatpush1.msra.mxu0 %v3517
    %3529 = vmatprep.subr.mxu0 0.0
    %3530 = vmatpush1.msra.mxu0 0.0
    %3531 = vmatprep.subr.mxu0 0.0
    %3532 = vmatpush1.msra.mxu0 0.0
    %3533 = vmatprep.subr.mxu0 0.0
    %3534 = vmatpush1.msra.mxu0 0.0
    %3535 = vmatprep.subr.mxu0 0.0
    %3536 = vmatpush1.msra.mxu0 0.0
    %3537 = vmatprep.subr.mxu0 0.0
    %3538 = vmatpush1.msra.mxu0 0.0
    %3539 = vmatprep.subr.mxu0 0.0
    %3540 = vmatpush1.msra.mxu0 0.0
    %3541 = vmatprep.subr.mxu0 0.0
    %3542 = vmatpush1.msra.mxu0 0.0
    %3543 = vmatprep.subr.mxu0 0.0
    %3544 = vmatpush1.msra.mxu0 0.0
    %3545 = vmatprep.subr.mxu0 0.0
    %3546 = vmatpush1.msra.mxu0 0.0
    %3547 = vmatprep.subr.mxu0 0.0
    %3548 = vmatpush1.msra.mxu0 0.0
    %3549 = vmatprep.subr.mxu0 0.0
    %3550 = vmatpush1.msra.mxu0 0.0
    %3551 = vmatprep.subr.mxu0 0.0
    %3552 = vmatpush1.msra.mxu0 0.0
    %3553 = vmatprep.subr.mxu0 0.0
    %3554 = vmatpush1.msra.mxu0 0.0
    %3555 = vmatprep.subr.mxu0 0.0
    %3556 = vmatpush1.msra.mxu0 0.0
    %3557 = vmatprep.subr.mxu0 0.0
    %3558 = vmatpush1.msra.mxu0 0.0
    %3559 = vmatprep.subr.mxu0 0.0
    %3560 = vmatpush1.msra.mxu0 0.0
    %3561 = vmatprep.subr.mxu0 0.0
    %3562 = vmatpush1.msra.mxu0 0.0
    %3563 = vmatprep.subr.mxu0 0.0
    %3564 = vmatpush1.msra.mxu0 0.0
    %3565 = vmatprep.subr.mxu0 0.0
    %3566 = vmatpush1.msra.mxu0 0.0
    %3567 = vmatprep.subr.mxu0 0.0
    %3568 = vmatpush1.msra.mxu0 0.0
    %3569 = vmatprep.subr.mxu0 0.0
    %3570 = vmatpush1.msra.mxu0 0.0
    %3571 = vmatprep.subr.mxu0 0.0
    %3572 = vmatpush1.msra.mxu0 0.0
    %3573 = vmatprep.subr.mxu0 0.0
    %3574 = vmatpush1.msra.mxu0 0.0
    %3575 = vmatprep.subr.mxu0 0.0
    %3576 = vmatpush1.msra.mxu0 0.0
    %3577 = vmatprep.subr.mxu0 0.0
    %3578 = vmatpush1.msra.mxu0 0.0
    %3579 = vmatprep.subr.mxu0 0.0
    %3580 = vmatpush1.msra.mxu0 0.0
    %3581 = vmatprep.subr.mxu0 0.0
    %3582 = vmatpush1.msra.mxu0 0.0
    %3583 = vmatprep.subr.mxu0 0.0
    %3584 = vmatpush1.msra.mxu0 0.0
    %3585 = vmatprep.mubr.f32.mxu0 0.0
    %3586 = vmatmul.mubr.f32.gmra.mrb[0].mxu0 %v3519
    %v3587 = vpop.f32.mrb[0].mxu0
    %v3588 = vadd.f32 0.0, %v3587
    %v3589 = vpop.f32.mrb[0].mxu0
    %3590 = vdwg.mxu0
    %v3591 = vadd.f32 %v3511, %v3588
    %v3592 = vld [vmem:[#allocation3 + $0x3e] sm:$0x3]
    %s3593 = scalar_lea.vmem %s6, 736
    %v3594 = vld [vmem:[%s3593] sm:$0xff]
    %v3595 = vld [vmem:[%s3593 + $0x8] sm:$0xff]
    %v3596 = vld [vmem:[%s3593 + $0x10] sm:$0xff]
    %v3597 = vld [vmem:[%s3593 + $0x18] sm:$0xff]
    %v3599 = vsel %vm265, %v3592, 0
    %3601 = vmatprep.subr.mxu0 0.0
    %3602 = vmatpush1.msra.mxu0 %v3594
    %3603 = vmatprep.subr.mxu0 0.0
    %3604 = vmatpush1.msra.mxu0 %v3595
    %3605 = vmatprep.subr.mxu0 0.0
    %3606 = vmatpush1.msra.mxu0 %v3596
    %3607 = vmatprep.subr.mxu0 0.0
    %3608 = vmatpush1.msra.mxu0 %v3597
    %3609 = vmatprep.subr.mxu0 0.0
    %3610 = vmatpush1.msra.mxu0 0.0
    %3611 = vmatprep.subr.mxu0 0.0
    %3612 = vmatpush1.msra.mxu0 0.0
    %3613 = vmatprep.subr.mxu0 0.0
    %3614 = vmatpush1.msra.mxu0 0.0
    %3615 = vmatprep.subr.mxu0 0.0
    %3616 = vmatpush1.msra.mxu0 0.0
    %3617 = vmatprep.subr.mxu0 0.0
    %3618 = vmatpush1.msra.mxu0 0.0
    %3619 = vmatprep.subr.mxu0 0.0
    %3620 = vmatpush1.msra.mxu0 0.0
    %3621 = vmatprep.subr.mxu0 0.0
    %3622 = vmatpush1.msra.mxu0 0.0
    %3623 = vmatprep.subr.mxu0 0.0
    %3624 = vmatpush1.msra.mxu0 0.0
    %3625 = vmatprep.subr.mxu0 0.0
    %3626 = vmatpush1.msra.mxu0 0.0
    %3627 = vmatprep.subr.mxu0 0.0
    %3628 = vmatpush1.msra.mxu0 0.0
    %3629 = vmatprep.subr.mxu0 0.0
    %3630 = vmatpush1.msra.mxu0 0.0
    %3631 = vmatprep.subr.mxu0 0.0
    %3632 = vmatpush1.msra.mxu0 0.0
    %3633 = vmatprep.subr.mxu0 0.0
    %3634 = vmatpush1.msra.mxu0 0.0
    %3635 = vmatprep.subr.mxu0 0.0
    %3636 = vmatpush1.msra.mxu0 0.0
    %3637 = vmatprep.subr.mxu0 0.0
    %3638 = vmatpush1.msra.mxu0 0.0
    %3639 = vmatprep.subr.mxu0 0.0
    %3640 = vmatpush1.msra.mxu0 0.0
    %3641 = vmatprep.subr.mxu0 0.0
    %3642 = vmatpush1.msra.mxu0 0.0
    %3643 = vmatprep.subr.mxu0 0.0
    %3644 = vmatpush1.msra.mxu0 0.0
    %3645 = vmatprep.subr.mxu0 0.0
    %3646 = vmatpush1.msra.mxu0 0.0
    %3647 = vmatprep.subr.mxu0 0.0
    %3648 = vmatpush1.msra.mxu0 0.0
    %3649 = vmatprep.subr.mxu0 0.0
    %3650 = vmatpush1.msra.mxu0 0.0
    %3651 = vmatprep.subr.mxu0 0.0
    %3652 = vmatpush1.msra.mxu0 0.0
    %3653 = vmatprep.subr.mxu0 0.0
    %3654 = vmatpush1.msra.mxu0 0.0
    %3655 = vmatprep.subr.mxu0 0.0
    %3656 = vmatpush1.msra.mxu0 0.0
    %3657 = vmatprep.subr.mxu0 0.0
    %3658 = vmatpush1.msra.mxu0 0.0
    %3659 = vmatprep.subr.mxu0 0.0
    %3660 = vmatpush1.msra.mxu0 0.0
    %3661 = vmatprep.subr.mxu0 0.0
    %3662 = vmatpush1.msra.mxu0 0.0
    %3663 = vmatprep.subr.mxu0 0.0
    %3664 = vmatpush1.msra.mxu0 0.0
    %3665 = vmatprep.mubr.f32.mxu0 0.0
    %3666 = vmatmul.mubr.f32.gmra.mrb[0].mxu0 %v3599
    %v3667 = vpop.f32.mrb[0].mxu0
    %v3668 = vadd.f32 0.0, %v3667
    %v3669 = vpop.f32.mrb[0].mxu0
    %3670 = vdwg.mxu0
    %v3671 = vadd.f32 %v3591, %v3668
    %v3672 = vld [vmem:[#allocation3 + $0x40] sm:$0x3]
    %s3673 = scalar_lea.vmem %s6, 768
    %v3674 = vld [vmem:[%s3673] sm:$0xff]
    %v3675 = vld [vmem:[%s3673 + $0x8] sm:$0xff]
    %v3676 = vld [vmem:[%s3673 + $0x10] sm:$0xff]
    %v3677 = vld [vmem:[%s3673 + $0x18] sm:$0xff]
    %v3679 = vsel %vm265, %v3672, 0
    %3681 = vmatprep.subr.mxu0 0.0
    %3682 = vmatpush1.msra.mxu0 %v3674
    %3683 = vmatprep.subr.mxu0 0.0
    %3684 = vmatpush1.msra.mxu0 %v3675
    %3685 = vmatprep.subr.mxu0 0.0
    %3686 = vmatpush1.msra.mxu0 %v3676
    %3687 = vmatprep.subr.mxu0 0.0
    %3688 = vmatpush1.msra.mxu0 %v3677
    %3689 = vmatprep.subr.mxu0 0.0
    %3690 = vmatpush1.msra.mxu0 0.0
    %3691 = vmatprep.subr.mxu0 0.0
    %3692 = vmatpush1.msra.mxu0 0.0
    %3693 = vmatprep.subr.mxu0 0.0
    %3694 = vmatpush1.msra.mxu0 0.0
    %3695 = vmatprep.subr.mxu0 0.0
    %3696 = vmatpush1.msra.mxu0 0.0
    %3697 = vmatprep.subr.mxu0 0.0
    %3698 = vmatpush1.msra.mxu0 0.0
    %3699 = vmatprep.subr.mxu0 0.0
    %3700 = vmatpush1.msra.mxu0 0.0
    %3701 = vmatprep.subr.mxu0 0.0
    %3702 = vmatpush1.msra.mxu0 0.0
    %3703 = vmatprep.subr.mxu0 0.0
    %3704 = vmatpush1.msra.mxu0 0.0
    %3705 = vmatprep.subr.mxu0 0.0
    %3706 = vmatpush1.msra.mxu0 0.0
    %3707 = vmatprep.subr.mxu0 0.0
    %3708 = vmatpush1.msra.mxu0 0.0
    %3709 = vmatprep.subr.mxu0 0.0
    %3710 = vmatpush1.msra.mxu0 0.0
    %3711 = vmatprep.subr.mxu0 0.0
    %3712 = vmatpush1.msra.mxu0 0.0
    %3713 = vmatprep.subr.mxu0 0.0
    %3714 = vmatpush1.msra.mxu0 0.0
    %3715 = vmatprep.subr.mxu0 0.0
    %3716 = vmatpush1.msra.mxu0 0.0
    %3717 = vmatprep.subr.mxu0 0.0
    %3718 = vmatpush1.msra.mxu0 0.0
    %3719 = vmatprep.subr.mxu0 0.0
    %3720 = vmatpush1.msra.mxu0 0.0
    %3721 = vmatprep.subr.mxu0 0.0
    %3722 = vmatpush1.msra.mxu0 0.0
    %3723 = vmatprep.subr.mxu0 0.0
    %3724 = vmatpush1.msra.mxu0 0.0
    %3725 = vmatprep.subr.mxu0 0.0
    %3726 = vmatpush1.msra.mxu0 0.0
    %3727 = vmatprep.subr.mxu0 0.0
    %3728 = vmatpush1.msra.mxu0 0.0
    %3729 = vmatprep.subr.mxu0 0.0
    %3730 = vmatpush1.msra.mxu0 0.0
    %3731 = vmatprep.subr.mxu0 0.0
    %3732 = vmatpush1.msra.mxu0 0.0
    %3733 = vmatprep.subr.mxu0 0.0
    %3734 = vmatpush1.msra.mxu0 0.0
    %3735 = vmatprep.subr.mxu0 0.0
    %3736 = vmatpush1.msra.mxu0 0.0
    %3737 = vmatprep.subr.mxu0 0.0
    %3738 = vmatpush1.msra.mxu0 0.0
    %3739 = vmatprep.subr.mxu0 0.0
    %3740 = vmatpush1.msra.mxu0 0.0
    %3741 = vmatprep.subr.mxu0 0.0
    %3742 = vmatpush1.msra.mxu0 0.0
    %3743 = vmatprep.subr.mxu0 0.0
    %3744 = vmatpush1.msra.mxu0 0.0
    %3745 = vmatprep.mubr.f32.mxu0 0.0
    %3746 = vmatmul.mubr.f32.gmra.mrb[0].mxu0 %v3679
    %v3747 = vpop.f32.mrb[0].mxu0
    %v3748 = vadd.f32 0.0, %v3747
    %v3749 = vpop.f32.mrb[0].mxu0
    %3750 = vdwg.mxu0
    %v3751 = vadd.f32 %v3671, %v3748
    %v3752 = vsel %vm278, %v3751, 0.0
    %3753 = vadd.xlane.f32.xlu0 %v3752
    %v3754 = vpop.xlane.xlu0 %3753
    %v3755 = vrcp.pop 32.0
    %v3756 = vmul.f32 %v3754, %v3755
    %v3757 = vsub.f32 %v3751, %v3756
    %v3758 = vmul.f32 %v3757, %v3757
    %v3759 = vsel %vm278, %v3758, 0.0
    %3760 = vadd.xlane.f32.xlu0 %v3759
    %v3761 = vpop.xlane.xlu0 %3760
    %v3762 = vmul.f32 %v3761, %v3755
    %v3763 = vadd.f32 %v3762, 1e-05
    %v3764 = vrsqrt.pop %v3763
    %v3765 = vmul.f32 %v3757, %v3764
    %v3766 = vld [vmem:[%s8] sm:$0x1]
    %v3768 = vlaneseq
    %v3769 = vshrl.u32 %v3768, 7
    %v3770 = vsub.s32 0, %v3769
    %v3771 = vrot.slane %v3766, %v3770
    %v3773 = vmul.f32 %v3765, %v3771
    %v3774 = vld [vmem:[%s9] sm:$0x1]
    %v3776 = vlaneseq
    %v3777 = vshrl.u32 %v3776, 7
    %v3778 = vsub.s32 0, %v3777
    %v3779 = vrot.slane %v3774, %v3778
    %v3781 = vadd.f32 %v3773, %v3779
    %v3782 = vtanh.pop %v3781
    %v3783 = vld [vmem:[%s10] sm:$0xff]
    %v3784 = vld [vmem:[%s10 + $0x8] sm:$0xff]
    %v3785 = vld [vmem:[%s10 + $0x10] sm:$0xff]
    %v3786 = vld [vmem:[%s10 + $0x18] sm:$0xff]
    %v3787 = vld [vmem:[%s1] sm:$0x3]
    %v3788 = vld [vmem:[%s11] sm:$0x3f]
    %vm3789 = vcmask 48128
    %v3791 = vsel %vm3789, %v3787, 0
    %vm3793 = vcmask 1045504
    %v3795 = vsel %vm3793, %v3788, 0
    %3797 = vmatprep.subr.mxu0 0.0
    %3798 = vmatpush1.msra.mxu0 %v3795
    %3799 = vmatprep.subr.mxu0 0.0
    %3800 = vmatpush1.msra.mxu0 0.0
    %3801 = vmatprep.subr.mxu0 0.0
    %3802 = vmatpush1.msra.mxu0 0.0
    %3803 = vmatprep.subr.mxu0 0.0
    %3804 = vmatpush1.msra.mxu0 0.0
    %3805 = vmatprep.subr.mxu0 0.0
    %3806 = vmatpush1.msra.mxu0 0.0
    %3807 = vmatprep.subr.mxu0 0.0
    %3808 = vmatpush1.msra.mxu0 0.0
    %3809 = vmatprep.subr.mxu0 0.0
    %3810 = vmatpush1.msra.mxu0 0.0
    %3811 = vmatprep.subr.mxu0 0.0
    %3812 = vmatpush1.msra.mxu0 0.0
    %3813 = vmatprep.subr.mxu0 0.0
    %3814 = vmatpush1.msra.mxu0 0.0
    %3815 = vmatprep.subr.mxu0 0.0
    %3816 = vmatpush1.msra.mxu0 0.0
    %3817 = vmatprep.subr.mxu0 0.0
    %3818 = vmatpush1.msra.mxu0 0.0
    %3819 = vmatprep.subr.mxu0 0.0
    %3820 = vmatpush1.msra.mxu0 0.0
    %3821 = vmatprep.subr.mxu0 0.0
    %3822 = vmatpush1.msra.mxu0 0.0
    %3823 = vmatprep.subr.mxu0 0.0
    %3824 = vmatpush1.msra.mxu0 0.0
    %3825 = vmatprep.subr.mxu0 0.0
    %3826 = vmatpush1.msra.mxu0 0.0
    %3827 = vmatprep.subr.mxu0 0.0
    %3828 = vmatpush1.msra.mxu0 0.0
    %3829 = vmatprep.subr.mxu0 0.0
    %3830 = vmatpush1.msra.mxu0 0.0
    %3831 = vmatprep.subr.mxu0 0.0
    %3832 = vmatpush1.msra.mxu0 0.0
    %3833 = vmatprep.subr.mxu0 0.0
    %3834 = vmatpush1.msra.mxu0 0.0
    %3835 = vmatprep.subr.mxu0 0.0
    %3836 = vmatpush1.msra.mxu0 0.0
    %3837 = vmatprep.subr.mxu0 0.0
    %3838 = vmatpush1.msra.mxu0 0.0
    %3839 = vmatprep.subr.mxu0 0.0
    %3840 = vmatpush1.msra.mxu0 0.0
    %3841 = vmatprep.subr.mxu0 0.0
    %3842 = vmatpush1.msra.mxu0 0.0
    %3843 = vmatprep.subr.mxu0 0.0
    %3844 = vmatpush1.msra.mxu0 0.0
    %3845 = vmatprep.subr.mxu0 0.0
    %3846 = vmatpush1.msra.mxu0 0.0
    %3847 = vmatprep.subr.mxu0 0.0
    %3848 = vmatpush1.msra.mxu0 0.0
    %3849 = vmatprep.subr.mxu0 0.0
    %3850 = vmatpush1.msra.mxu0 0.0
    %3851 = vmatprep.subr.mxu0 0.0
    %3852 = vmatpush1.msra.mxu0 0.0
    %3853 = vmatprep.subr.mxu0 0.0
    %3854 = vmatpush1.msra.mxu0 0.0
    %3855 = vmatprep.subr.mxu0 0.0
    %3856 = vmatpush1.msra.mxu0 0.0
    %3857 = vmatprep.subr.mxu0 0.0
    %3858 = vmatpush1.msra.mxu0 0.0
    %3859 = vmatprep.subr.mxu0 0.0
    %3860 = vmatpush1.msra.mxu0 0.0
    %3861 = vmatprep.mubr.f32.mxu0 0.0
    %3862 = vmatmul.mubr.f32.gmra.mrb[0].mxu0 %v3791
    %v3863 = vpop.f32.mrb[0].mxu0
    %v3864 = vadd.f32 0.0, %v3863
    %v3865 = vpop.f32.mrb[0].mxu0
    %3866 = vdwg.mxu0
    %v3868 = vsel %vm265, %v3782, 0
    %3870 = vmatprep.subr.mxu0 0.0
    %3871 = vmatpush1.msra.mxu0 %v3783
    %3872 = vmatprep.subr.mxu0 0.0
    %3873 = vmatpush1.msra.mxu0 %v3784
    %3874 = vmatprep.subr.mxu0 0.0
    %3875 = vmatpush1.msra.mxu0 %v3785
    %3876 = vmatprep.subr.mxu0 0.0
    %3877 = vmatpush1.msra.mxu0 %v3786
    %3878 = vmatprep.subr.mxu0 0.0
    %3879 = vmatpush1.msra.mxu0 0.0
    %3880 = vmatprep.subr.mxu0 0.0
    %3881 = vmatpush1.msra.mxu0 0.0
    %3882 = vmatprep.subr.mxu0 0.0
    %3883 = vmatpush1.msra.mxu0 0.0
    %3884 = vmatprep.subr.mxu0 0.0
    %3885 = vmatpush1.msra.mxu0 0.0
    %3886 = vmatprep.subr.mxu0 0.0
    %3887 = vmatpush1.msra.mxu0 0.0
    %3888 = vmatprep.subr.mxu0 0.0
    %3889 = vmatpush1.msra.mxu0 0.0
    %3890 = vmatprep.subr.mxu0 0.0
    %3891 = vmatpush1.msra.mxu0 0.0
    %3892 = vmatprep.subr.mxu0 0.0
    %3893 = vmatpush1.msra.mxu0 0.0
    %3894 = vmatprep.subr.mxu0 0.0
    %3895 = vmatpush1.msra.mxu0 0.0
    %3896 = vmatprep.subr.mxu0 0.0
    %3897 = vmatpush1.msra.mxu0 0.0
    %3898 = vmatprep.subr.mxu0 0.0
    %3899 = vmatpush1.msra.mxu0 0.0
    %3900 = vmatprep.subr.mxu0 0.0
    %3901 = vmatpush1.msra.mxu0 0.0
    %3902 = vmatprep.subr.mxu0 0.0
    %3903 = vmatpush1.msra.mxu0 0.0
    %3904 = vmatprep.subr.mxu0 0.0
    %3905 = vmatpush1.msra.mxu0 0.0
    %3906 = vmatprep.subr.mxu0 0.0
    %3907 = vmatpush1.msra.mxu0 0.0
    %3908 = vmatprep.subr.mxu0 0.0
    %3909 = vmatpush1.msra.mxu0 0.0
    %3910 = vmatprep.subr.mxu0 0.0
    %3911 = vmatpush1.msra.mxu0 0.0
    %3912 = vmatprep.subr.mxu0 0.0
    %3913 = vmatpush1.msra.mxu0 0.0
    %3914 = vmatprep.subr.mxu0 0.0
    %3915 = vmatpush1.msra.mxu0 0.0
    %3916 = vmatprep.subr.mxu0 0.0
    %3917 = vmatpush1.msra.mxu0 0.0
    %3918 = vmatprep.subr.mxu0 0.0
    %3919 = vmatpush1.msra.mxu0 0.0
    %3920 = vmatprep.subr.mxu0 0.0
    %3921 = vmatpush1.msra.mxu0 0.0
    %3922 = vmatprep.subr.mxu0 0.0
    %3923 = vmatpush1.msra.mxu0 0.0
    %3924 = vmatprep.subr.mxu0 0.0
    %3925 = vmatpush1.msra.mxu0 0.0
    %3926 = vmatprep.subr.mxu0 0.0
    %3927 = vmatpush1.msra.mxu0 0.0
    %3928 = vmatprep.subr.mxu0 0.0
    %3929 = vmatpush1.msra.mxu0 0.0
    %3930 = vmatprep.subr.mxu0 0.0
    %3931 = vmatpush1.msra.mxu0 0.0
    %3932 = vmatprep.subr.mxu0 0.0
    %3933 = vmatpush1.msra.mxu0 0.0
    %3934 = vmatprep.mubr.f32.mxu0 0.0
    %3935 = vmatmul.mubr.f32.gmra.mrb[0].mxu0 %v3868
    %v3936 = vpop.f32.mrb[0].mxu0
    %v3937 = vadd.f32 %v3864, %v3936
    %v3938 = vpop.f32.mrb[0].mxu0
    %3939 = vdwg.mxu0
    %v3940 = vld [vmem:[%s12] sm:$0x1]
    %v3942 = vlaneseq
    %v3943 = vshrl.u32 %v3942, 7
    %v3944 = vsub.s32 0, %v3943
    %v3945 = vrot.slane %v3940, %v3944
    %v3947 = vadd.f32 %v3937, %v3945
    %v3948 = vmax.f32 %v3947, 0.0
    %v3949 = vld [vmem:[%s13] sm:$0xff]
    %v3950 = vld [vmem:[%s13 + $0x8] sm:$0xff]
    %v3951 = vld [vmem:[%s13 + $0x10] sm:$0xff]
    %v3952 = vld [vmem:[%s13 + $0x18] sm:$0xff]
    %v3953 = vld [vmem:[%s14] sm:$0x1]
    %v3955 = vlaneseq
    %v3956 = vshrl.u32 %v3955, 7
    %v3957 = vsub.s32 0, %v3956
    %v3958 = vrot.slane %v3953, %v3957
    %v3961 = vsel %vm265, %v3948, 0
    %3963 = vmatprep.subr.mxu0 0.0
    %3964 = vmatpush1.msra.mxu0 %v3949
    %3965 = vmatprep.subr.mxu0 0.0
    %3966 = vmatpush1.msra.mxu0 %v3950
    %3967 = vmatprep.subr.mxu0 0.0
    %3968 = vmatpush1.msra.mxu0 %v3951
    %3969 = vmatprep.subr.mxu0 0.0
    %3970 = vmatpush1.msra.mxu0 %v3952
    %3971 = vmatprep.subr.mxu0 0.0
    %3972 = vmatpush1.msra.mxu0 0.0
    %3973 = vmatprep.subr.mxu0 0.0
    %3974 = vmatpush1.msra.mxu0 0.0
    %3975 = vmatprep.subr.mxu0 0.0
    %3976 = vmatpush1.msra.mxu0 0.0
    %3977 = vmatprep.subr.mxu0 0.0
    %3978 = vmatpush1.msra.mxu0 0.0
    %3979 = vmatprep.subr.mxu0 0.0
    %3980 = vmatpush1.msra.mxu0 0.0
    %3981 = vmatprep.subr.mxu0 0.0
    %3982 = vmatpush1.msra.mxu0 0.0
    %3983 = vmatprep.subr.mxu0 0.0
    %3984 = vmatpush1.msra.mxu0 0.0
    %3985 = vmatprep.subr.mxu0 0.0
    %3986 = vmatpush1.msra.mxu0 0.0
    %3987 = vmatprep.subr.mxu0 0.0
    %3988 = vmatpush1.msra.mxu0 0.0
    %3989 = vmatprep.subr.mxu0 0.0
    %3990 = vmatpush1.msra.mxu0 0.0
    %3991 = vmatprep.subr.mxu0 0.0
    %3992 = vmatpush1.msra.mxu0 0.0
    %3993 = vmatprep.subr.mxu0 0.0
    %3994 = vmatpush1.msra.mxu0 0.0
    %3995 = vmatprep.subr.mxu0 0.0
    %3996 = vmatpush1.msra.mxu0 0.0
    %3997 = vmatprep.subr.mxu0 0.0
    %3998 = vmatpush1.msra.mxu0 0.0
    %3999 = vmatprep.subr.mxu0 0.0
    %4000 = vmatpush1.msra.mxu0 0.0
    %4001 = vmatprep.subr.mxu0 0.0
    %4002 = vmatpush1.msra.mxu0 0.0
    %4003 = vmatprep.subr.mxu0 0.0
    %4004 = vmatpush1.msra.mxu0 0.0
    %4005 = vmatprep.subr.mxu0 0.0
    %4006 = vmatpush1.msra.mxu0 0.0
    %4007 = vmatprep.subr.mxu0 0.0
    %4008 = vmatpush1.msra.mxu0 0.0
    %4009 = vmatprep.subr.mxu0 0.0
    %4010 = vmatpush1.msra.mxu0 0.0
    %4011 = vmatprep.subr.mxu0 0.0
    %4012 = vmatpush1.msra.mxu0 0.0
    %4013 = vmatprep.subr.mxu0 0.0
    %4014 = vmatpush1.msra.mxu0 0.0
    %4015 = vmatprep.subr.mxu0 0.0
    %4016 = vmatpush1.msra.mxu0 0.0
    %4017 = vmatprep.subr.mxu0 0.0
    %4018 = vmatpush1.msra.mxu0 0.0
    %4019 = vmatprep.subr.mxu0 0.0
    %4020 = vmatpush1.msra.mxu0 0.0
    %4021 = vmatprep.subr.mxu0 0.0
    %4022 = vmatpush1.msra.mxu0 0.0
    %4023 = vmatprep.subr.mxu0 0.0
    %4024 = vmatpush1.msra.mxu0 0.0
    %4025 = vmatprep.subr.mxu0 0.0
    %4026 = vmatpush1.msra.mxu0 0.0
    %4027 = vmatprep.mubr.f32.mxu0 0.0
    %4028 = vmatmul.mubr.f32.gmra.mrb[0].mxu0 %v3961
    %v4029 = vpop.f32.mrb[0].mxu0
    %v4030 = vadd.f32 %v3958, %v4029
    %v4031 = vpop.f32.mrb[0].mxu0
    %4032 = vdwg.mxu0
    %v4033 = vmax.f32 %v4030, 0.0
    %v4034 = vld [vmem:[%s15] sm:$0xff]
    %v4035 = vld [vmem:[%s15 + $0x8] sm:$0xff]
    %v4036 = vld [vmem:[%s15 + $0x10] sm:$0xff]
    %v4037 = vld [vmem:[%s15 + $0x18] sm:$0xff]
    %v4038 = vld [vmem:[%s16] sm:$0x1]
    %v4040 = vlaneseq
    %v4041 = vshrl.u32 %v4040, 7
    %v4042 = vsub.s32 0, %v4041
    %v4043 = vrot.slane %v4038, %v4042
    %v4046 = vsel %vm265, %v4033, 0
    %4048 = vmatprep.subr.mxu0 0.0
    %4049 = vmatpush1.msra.mxu0 %v4034
    %4050 = vmatprep.subr.mxu0 0.0
    %4051 = vmatpush1.msra.mxu0 %v4035
    %4052 = vmatprep.subr.mxu0 0.0
    %4053 = vmatpush1.msra.mxu0 %v4036
    %4054 = vmatprep.subr.mxu0 0.0
    %4055 = vmatpush1.msra.mxu0 %v4037
    %4056 = vmatprep.subr.mxu0 0.0
    %4057 = vmatpush1.msra.mxu0 0.0
    %4058 = vmatprep.subr.mxu0 0.0
    %4059 = vmatpush1.msra.mxu0 0.0
    %4060 = vmatprep.subr.mxu0 0.0
    %4061 = vmatpush1.msra.mxu0 0.0
    %4062 = vmatprep.subr.mxu0 0.0
    %4063 = vmatpush1.msra.mxu0 0.0
    %4064 = vmatprep.subr.mxu0 0.0
    %4065 = vmatpush1.msra.mxu0 0.0
    %4066 = vmatprep.subr.mxu0 0.0
    %4067 = vmatpush1.msra.mxu0 0.0
    %4068 = vmatprep.subr.mxu0 0.0
    %4069 = vmatpush1.msra.mxu0 0.0
    %4070 = vmatprep.subr.mxu0 0.0
    %4071 = vmatpush1.msra.mxu0 0.0
    %4072 = vmatprep.subr.mxu0 0.0
    %4073 = vmatpush1.msra.mxu0 0.0
    %4074 = vmatprep.subr.mxu0 0.0
    %4075 = vmatpush1.msra.mxu0 0.0
    %4076 = vmatprep.subr.mxu0 0.0
    %4077 = vmatpush1.msra.mxu0 0.0
    %4078 = vmatprep.subr.mxu0 0.0
    %4079 = vmatpush1.msra.mxu0 0.0
    %4080 = vmatprep.subr.mxu0 0.0
    %4081 = vmatpush1.msra.mxu0 0.0
    %4082 = vmatprep.subr.mxu0 0.0
    %4083 = vmatpush1.msra.mxu0 0.0
    %4084 = vmatprep.subr.mxu0 0.0
    %4085 = vmatpush1.msra.mxu0 0.0
    %4086 = vmatprep.subr.mxu0 0.0
    %4087 = vmatpush1.msra.mxu0 0.0
    %4088 = vmatprep.subr.mxu0 0.0
    %4089 = vmatpush1.msra.mxu0 0.0
    %4090 = vmatprep.subr.mxu0 0.0
    %4091 = vmatpush1.msra.mxu0 0.0
    %4092 = vmatprep.subr.mxu0 0.0
    %4093 = vmatpush1.msra.mxu0 0.0
    %4094 = vmatprep.subr.mxu0 0.0
    %4095 = vmatpush1.msra.mxu0 0.0
    %4096 = vmatprep.subr.mxu0 0.0
    %4097 = vmatpush1.msra.mxu0 0.0
    %4098 = vmatprep.subr.mxu0 0.0
    %4099 = vmatpush1.msra.mxu0 0.0
    %4100 = vmatprep.subr.mxu0 0.0
    %4101 = vmatpush1.msra.mxu0 0.0
    %4102 = vmatprep.subr.mxu0 0.0
    %4103 = vmatpush1.msra.mxu0 0.0
    %4104 = vmatprep.subr.mxu0 0.0
    %4105 = vmatpush1.msra.mxu0 0.0
    %4106 = vmatprep.subr.mxu0 0.0
    %4107 = vmatpush1.msra.mxu0 0.0
    %4108 = vmatprep.subr.mxu0 0.0
    %4109 = vmatpush1.msra.mxu0 0.0
    %4110 = vmatprep.subr.mxu0 0.0
    %4111 = vmatpush1.msra.mxu0 0.0
    %4112 = vmatprep.mubr.f32.mxu0 0.0
    %4113 = vmatmul.mubr.f32.gmra.mrb[0].mxu0 %v4046
    %v4114 = vpop.f32.mrb[0].mxu0
    %v4115 = vadd.f32 %v4043, %v4114
    %v4116 = vpop.f32.mrb[0].mxu0
    %4117 = vdwg.mxu0
    %4118 = vst.msk [vmem:[#allocation4] sm:$0x3] %vm278, %v4115
    // Predicated region
    $region70: #{dynamics_forward.1} parent=1 // pred_check
      _
    $region71: #{dynamics_forward.1} parent=1 // pred_check_branch
      %4120 = sbr.rel (0) target = $region73
    $region72: #{dynamics_forward.1} parent=1 // pred_region
      %s4122 = ssub.s32 32, 32
      %4123 = vsyncadd [#allocation5], %s4122
      %s4125 = sshll.u32 [#allocation4], 4
      %s4126 = int_to_ptr.vmem [resolvable:$true] %s4125
      %4128 = dma.vmem_to_hbm [thread:$0]  %s4126, 32, %s17, [#allocation5]
    $region73: #{dynamics_forward.1} parent=1 // pred_fallthru
      _
    // Predicated region
    $region74: #{dynamics_forward.1} parent=1 // pred_check
      _
    $region75: #{dynamics_forward.1} parent=1 // pred_check_branch
      %4130 = sbr.rel (0) target = $region77
    $region76: #{dynamics_forward.1} parent=1 // pred_region
      %4131 = dma.done [#allocation5], 32
    $region77: #{dynamics_forward.1} parent=1 // pred_fallthru
      _
    %4132 = vsyncpa [#allocation5], 1

</llo_original>
